<compile_context>
chip_gen: v5e
topology: v5e:2x2
jax: 0.10.0
libtpu: 0.0.40
codegen_flags: <defaults>
</compile_context>

<pallas_src>
import functools
import math

import numpy as np
import jax
import jax.numpy as jnp
from jax.experimental import pallas as pl
from jax.experimental.pallas import tpu as pltpu


# --------------------------------------------------------------------------
# configuration (small synthetic sizes consistent with the module)
# --------------------------------------------------------------------------
class Config:
    d_model = 32
    d_inner_hid = 64
    n_head = 4
    d_k = 8
    d_v = 8
    n_layer = 2
    input_size = 16
    window_size = [2, 2, 2]
    inner_size = 3
    covariate_size = 3
    num_seq = 7
    batch = 2


# --------------------------------------------------------------------------
# host-side setup (identical to Pyraformer's get_mask / refer_points)
# --------------------------------------------------------------------------
def get_mask(input_size, window_size, inner_size):
    all_size = [input_size]
    for w in window_size:
        all_size.append(all_size[-1] // w)
    L = sum(all_size)
    mask = np.zeros((L, L), dtype=np.float32)
    inner = inner_size // 2
    starts = [sum(all_size[:i]) for i in range(len(all_size))]

    # intra-scale
    for li in range(len(all_size)):
        start = starts[li]
        for i in range(start, start + all_size[li]):
            l = max(i - inner, start)
            r = min(i + inner + 1, start + all_size[li])
            mask[i, l:r] = 1
    # inter-scale
    for li in range(1, len(all_size)):
        start = starts[li]
        for i in range(start, start + all_size[li]):
            l = (start - all_size[li - 1]) + (i - start) * window_size[li - 1]
            if i == start + all_size[li] - 1:
                r = start
            else:
                r = (start - all_size[li - 1]) + (i - start + 1) * window_size[li - 1]
            mask[i, l:r] = 1
            mask[l:r, i] = 1
    return (1.0 - mask), all_size        # 1.0 == masked (torch: (1-mask).bool())


def refer_points(all_sizes, window_size):
    input_size = all_sizes[0]
    idx = np.zeros((input_size, len(all_sizes)), dtype=np.int32)
    for i in range(input_size):
        idx[i, 0] = i
        former = i
        for j in range(1, len(all_sizes)):
            start = sum(all_sizes[:j])
            inner_layer_idx = former - (start - all_sizes[j - 1])
            former = start + min(inner_layer_idx // window_size[j - 1], all_sizes[j] - 1)
            idx[i, j] = former
    return idx


# --------------------------------------------------------------------------
# slab layouts (shared between host packing and the kernel)
# --------------------------------------------------------------------------
def _const_layout(T, Lp, n_scales):
    lay = {"pe": 0, "mask": T, "gather": T + Lp, "place": T + Lp + n_scales * T}
    lay["rows"] = lay["place"] + n_scales * Lp
    return lay


def _bneck_layout(D, Ck, T, window_size):
    lay = {}
    r = 0
    lay["down"] = r; r += D
    lay["wcat"] = []
    for _ in window_size:
        lay["wcat"].append(r); r += Ck
    lay["up"] = r; r += Ck
    lay["sel"] = []
    Tc = T
    for w in window_size:
        To = Tc // w
        taps = []
        for _ in range(w):
            taps.append((r, To, Tc)); r += To
        lay["sel"].append(taps)
        Tc = To
    lay["rows"] = r
    lay["width"] = max(D, Ck, T, max(w * Ck for w in window_size))
    return lay


def _vec_layout(nconv):
    lay = {"seq_w": 0, "cov_b": 1, "down_b": 2,
           "cvb": [3 + i for i in range(nconv)]}
    lay["up_b"] = 3 + nconv
    lay["norm_g"] = 4 + nconv
    lay["norm_b"] = 5 + nconv
    lay["layer"] = 6 + nconv
    return lay


# --------------------------------------------------------------------------
# batch-invariant constants (PE, additive mask, gather / placement matrices)
# --------------------------------------------------------------------------
def build_constants(cfg):
    mask_np, all_size = get_mask(cfg.input_size, cfg.window_size, cfg.inner_size)
    idx_np = refer_points(all_size, cfg.window_size)
    T, D = cfg.input_size, cfg.d_model
    L = int(mask_np.shape[0])
    Lp = ((L + 7) // 8) * 8
    n_scales = len(all_size)

    # additive mask: 0 where attended, -1e9 where masked; pad rows/cols masked
    add = np.full((Lp, Lp), -1e9, dtype=np.float32)
    add[:L, :L] = mask_np * (-1e9)

    # per-scale gather selection: G[j] @ pyramid == pyramid[idx[:, j], :]
    G = np.zeros((n_scales, T, Lp), dtype=np.float32)
    for t in range(T):
        for j in range(n_scales):
            G[j, t, idx_np[t, j]] = 1.0

    # pyramid row-placement matrices: full = sum_i P[i] @ scale_i
    P = np.zeros((n_scales, Lp, T), dtype=np.float32)
    off = 0
    for i, sz in enumerate(all_size):
        P[i, off:off + sz, 0:sz] = np.eye(sz, dtype=np.float32)
        off += sz

    # sinusoidal positional embedding
    pos_vec = np.array([math.pow(10000.0, 2.0 * (i // 2) / D) for i in range(D)],
                       dtype=np.float64)
    ang = np.arange(T, dtype=np.float64)[:, None] / pos_vec[None, :]
    pe = np.zeros((T, D), dtype=np.float32)
    pe[:, 0::2] = np.sin(ang[:, 0::2])
    pe[:, 1::2] = np.cos(ang[:, 1::2])

    # pack every 32-lane-wide constant into one slab
    cl = _const_layout(T, Lp, n_scales)
    Wc = max(D, Lp, T)
    cs = np.zeros((cl["rows"], Wc), dtype=np.float32)
    cs[cl["pe"]:cl["pe"] + T, 0:D] = pe
    cs[cl["mask"]:cl["mask"] + Lp, 0:Lp] = add
    cs[cl["gather"]:cl["gather"] + n_scales * T, 0:Lp] = G.reshape(n_scales * T, Lp)
    for i in range(n_scales):
        r = cl["place"] + i * Lp
        cs[r:r + Lp, 0:T] = P[i]

    # lane-placement matrices: E[j] puts a (*, D) block into lanes [j*D, (j+1)*D)
    E = np.zeros((n_scales, D, n_scales * D), dtype=np.float32)
    for j in range(n_scales):
        E[j, :, j * D:(j + 1) * D] = np.eye(D, dtype=np.float32)

    return {"const": jnp.asarray(cs), "eplace": jnp.asarray(E),
            "all_size": tuple(int(s) for s in all_size),
            "L_real": L, "L_pad": Lp, "n_scales": n_scales}


# --------------------------------------------------------------------------
# small in-kernel helpers
# --------------------------------------------------------------------------
def _ln(x, g, b, eps):
    mu = jnp.mean(x, axis=-1, keepdims=True)
    xc = x - mu
    var = jnp.mean(xc * xc, axis=-1, keepdims=True)
    return xc * jax.lax.rsqrt(var + eps) * g + b


def _gelu(x):
    # TODO(synk): torch F.gelu defaults to the exact erf form; the tanh
    # approximation (|err| ~1e-3) is used so the activation runs on the EUP.
    c = math.sqrt(2.0 / math.pi)
    return 0.5 * x * (1.0 + jnp.tanh(c * (x + 0.044715 * x * x * x)))


def _elu(y):
    # exact ELU(alpha=1); exp arg clamped to <=0 so the discarded branch is finite
    return jnp.where(y > 0.0, y, jnp.exp(jnp.minimum(y, 0.0)) - 1.0)


def _rows(ref, r0, nrows, ncols):
    """Load `nrows` rows starting at static row r0, keep the first `ncols` lanes."""
    return ref[r0:r0 + nrows, :][:, 0:ncols]


# --------------------------------------------------------------------------
# single fused kernel: embedding + bottleneck + attention layers + gather
# --------------------------------------------------------------------------
def _fused_encoder_kernel(
        x_ref, patch_ref, const_ref, eplace_ref, embw_ref, bneck_ref,
        mat_ref, w2_ref, vec_ref,
        o_ref,
        *, cov_size, num_seq, n_head, d_k, d_model, d_bneck, d_hid,
        window_size, scale_sizes, n_layer, n_scales, seq_len, l_pad, batch_block):
    f32 = jnp.float32
    D, Ck, Dh = d_model, d_bneck, d_hid
    H, dk = n_head, d_k
    T, Lp = seq_len, l_pad
    nconv = len(window_size)
    inv_temp = 1.0 / math.sqrt(dk)

    cl = _const_layout(T, Lp, n_scales)
    bl = _bneck_layout(D, Ck, T, window_size)
    vl = _vec_layout(nconv)

    # ---------------- batch-invariant constants & weights (loaded once) ------
    pe = _rows(const_ref, cl["pe"], T, D)                     # (T, D)
    amask = _rows(const_ref, cl["mask"], Lp, Lp)              # (Lp, Lp) additive

    emb_all = embw_ref[...]                                   # (rows_e, 2D)
    cov_w = emb_all[0:cov_size, 0:D]                          # (cov, D)
    conv_w = emb_all[0:3, D:2 * D]                            # (3, D) circular taps

    down_w = _rows(bneck_ref, bl["down"], D, Ck)              # (D, Ck)
    up_w = _rows(bneck_ref, bl["up"], Ck, D)                  # (Ck, D)

    def vrow(row, width):                                     # (1, width) bias rows
        return _rows(vec_ref, row, 1, width)

    seq_w, cov_b = vrow(vl["seq_w"], D), vrow(vl["cov_b"], D)
    down_b = vrow(vl["down_b"], Ck)
    up_b = vrow(vl["up_b"], D)
    norm_g, norm_b = vrow(vl["norm_g"], D), vrow(vl["norm_b"], D)

    for bb in range(batch_block):
        # ---------------- SingleStepEmbedding ----------------
        xb = x_ref[bb].astype(f32)                            # (T, F)
        Fdim = xb.shape[1]
        covs = xb[:, 1:1 + cov_size]                          # (T, cov)
        seq_id = xb[:, Fdim - 1:Fdim] / float(num_seq) - 0.5  # (T, 1)
        cov_emb = (jnp.dot(covs, cov_w, preferred_element_type=f32)
                   + seq_id * seq_w + cov_b)
        data_emb = jnp.dot(patch_ref[bb].astype(f32), conv_w,
                           preferred_element_type=f32)        # circular conv (im2col)
        seq_enc = cov_emb + data_emb + pe                     # (T, D)

        # ---------------- Bottleneck_Construct ----------------
        temp = jnp.dot(seq_enc, down_w, preferred_element_type=f32) + down_b
        pieces = [seq_enc]
        Tc = T
        for i, w in enumerate(window_size):
            To = Tc // w
            # fat conv weight [W_0 | .. | W_{w-1}] (BN folded), one MXU push:
            Wcat = _rows(bneck_ref, bl["wcat"][i], Ck, w * Ck)      # (Ck, w*Ck)
            Y = jnp.dot(temp, Wcat, preferred_element_type=f32)     # (Tc, w*Ck)
            conv = None
            for j in range(w):
                so, _, _ = bl["sel"][i][j]
                Sj = _rows(bneck_ref, so, To, Tc)                   # picks rows w*r + j
                term = jnp.dot(Sj, Y[:, j * Ck:(j + 1) * Ck],
                               preferred_element_type=f32)
                conv = term if conv is None else conv + term
            temp = _elu(conv + vrow(vl["cvb"][i], Ck))              # (To, Ck)
            pieces.append(jnp.dot(temp, up_w, preferred_element_type=f32) + up_b)
            Tc = To

        # place all scales into the padded pyramid (pure matmuls, no masked stores)
        full = None
        for i, sz in enumerate(scale_sizes):
            Pi = _rows(const_ref, cl["place"] + i * Lp, Lp, sz)     # (Lp, sz)
            contrib = jnp.dot(Pi, pieces[i], preferred_element_type=f32)
            full = contrib if full is None else full + contrib
        cur = _ln(full, norm_g, norm_b, 1e-5)                 # nn.LayerNorm default eps

        # ---------------- pyramid-attention encoder layers (post-LN) ---------
        for l in range(n_layer):
            ml = mat_ref[l]                                   # (D, H*D + Dh + 2*H*dk)
            wvp = ml[:, 0:H * D]                              # per-head Wv @ Wo (folded)
            w1 = ml[:, H * D:H * D + Dh]
            wq = ml[:, H * D + Dh:H * D + Dh + H * dk]
            wk = ml[:, H * D + Dh + H * dk:H * D + Dh + 2 * H * dk]
            r0 = vl["layer"] + 7 * l
            bo, ln1g, ln1b = vrow(r0, D), vrow(r0 + 1, D), vrow(r0 + 2, D)
            b1, b2 = vrow(r0 + 3, Dh), vrow(r0 + 4, D)
            ln2g, ln2b = vrow(r0 + 5, D), vrow(r0 + 6, D)

            q = jnp.dot(cur, wq, preferred_element_type=f32)      # (Lp, H*dk)
            kx = jnp.dot(cur, wk, preferred_element_type=f32)     # (Lp, H*dk)
            vp = jnp.dot(cur, wvp, preferred_element_type=f32)    # (Lp, H*D)
            attn = cur + bo                                       # residual + fc bias
            for h in range(H):
                qh = q[:, h * dk:(h + 1) * dk]
                kh = kx[:, h * dk:(h + 1) * dk]
                s = (jnp.einsum('qd,kd->qk', qh, kh, preferred_element_type=f32)
                     * inv_temp + amask)
                e = jnp.exp(s - jnp.max(s, axis=-1, keepdims=True))
                p = e * pl.reciprocal(jnp.sum(e, axis=-1, keepdims=True), approx=True)
                attn = attn + jnp.dot(p, vp[:, h * D:(h + 1) * D],
                                      preferred_element_type=f32)
            y = _ln(attn, ln1g, ln1b, 1e-6)                   # Pyraformer LN eps=1e-6
            h1 = _gelu(jnp.dot(y, w1, preferred_element_type=f32) + b1)
            h2 = jnp.dot(h1, w2_ref[l], preferred_element_type=f32) + b2
            cur = _ln(h2 + y, ln2g, ln2b, 1e-6)

        # -------- refer_points gather: one lane-dense (T, n_scales*D) store --
        out = None
        for j in range(n_scales):
            Gj = _rows(const_ref, cl["gather"] + j * T, T, Lp)      # (T, Lp)
            gj = jnp.dot(Gj, cur, preferred_element_type=f32)       # (T, D)
            contrib = jnp.dot(gj, eplace_ref[j],                    # lanes j*D:(j+1)*D
                              preferred_element_type=f32)
            out = contrib if out is None else out + contrib
        o_ref[bb] = out.astype(o_ref.dtype)


# --------------------------------------------------------------------------
# wrapper: one pallas_call over batch blocks
# --------------------------------------------------------------------------
def encoder_forward(x, packed, consts, cfg):
    B, T, F = x.shape
    D = cfg.d_model
    n_scales = consts["n_scales"]
    Lp = consts["L_pad"]

    # circular-conv im2col patches [x_{t-1}, x_t, x_{t+1}] (tiny host-side glue)
    data = x[:, :, 0]
    patches = jnp.stack([jnp.roll(data, 1, axis=1), data, jnp.roll(data, -1, axis=1)],
                        axis=-1)                              # (B, T, 3)

    # batch blocking: at most 2 grid steps -> both v7x TensorCores busy,
    # per-step pipeline overhead amortized on single-TC v5e/v6e.
    num_blocks = 2 if (B >= 2 and B % 2 == 0) else B
    bblk = B // num_blocks

    in_arrays = [x, patches, consts["const"], consts["eplace"],
                 packed["embw"], packed["bneck"], packed["mat"], packed["w2"],
                 packed["vec"]]

    def const_spec(a):
        nd = a.ndim
        return pl.BlockSpec(a.shape, lambda g, _nd=nd: (0,) * _nd)

    in_specs = [pl.BlockSpec((bblk, T, F), lambda g: (g, 0, 0)),
                pl.BlockSpec((bblk, T, 3), lambda g: (g, 0, 0))]
    in_specs += [const_spec(a) for a in in_arrays[2:]]

    kernel = functools.partial(
        _fused_encoder_kernel,
        cov_size=cfg.covariate_size, num_seq=cfg.num_seq,
        n_head=cfg.n_head, d_k=cfg.d_k,
        d_model=D, d_bneck=cfg.d_k, d_hid=cfg.d_inner_hid,
        window_size=tuple(cfg.window_size), scale_sizes=tuple(consts["all_size"]),
        n_layer=cfg.n_layer, n_scales=n_scales,
        seq_len=T, l_pad=Lp, batch_block=bblk)

    return pl.pallas_call(
        kernel,
        grid=(num_blocks,),
        in_specs=in_specs,
        out_specs=pl.BlockSpec((bblk, T, n_scales * D), lambda g: (g, 0, 0)),
        out_shape=jax.ShapeDtypeStruct((B, T, n_scales * D), jnp.float32),
        compiler_params=pltpu.CompilerParams(
            dimension_semantics=("parallel",)),
    )(*in_arrays)


# --------------------------------------------------------------------------
# deterministic parameter init (torch layouts, restructured + packed for TPU)
# --------------------------------------------------------------------------
def init_params(cfg, key):
    D, Ck, H = cfg.d_model, cfg.d_k, cfg.n_head
    dk, dv, Dh = cfg.d_k, cfg.d_v, cfg.d_inner_hid
    cov, nconv = cfg.covariate_size, len(cfg.window_size)
    keys = iter(jax.random.split(key, 256))

    def nrm(shape, s=0.1):
        return (s * jax.random.normal(next(keys), shape)).astype(jnp.float32)

    # ---- SingleStepEmbedding ----
    cov_w, seq_w, cov_b = nrm((cov, D)), nrm((1, D)), nrm((1, D))
    conv_w = nrm((3, D))                       # Conv1d(1, D, 3, circular, bias=False)

    # ---- Bottleneck_Construct (eval-mode BatchNorm folded as a scale) ----
    # TODO(synk): loading trained Pyraformer weights requires the full BN fold.
    bn_scale = 1.0 / math.sqrt(1.0 + 1e-5)
    down_w, down_b = nrm((D, Ck)), nrm((1, Ck))
    up_w, up_b = nrm((Ck, D)), nrm((1, D))
    wcat, cvb = [], []
    for w in cfg.window_size:
        W = nrm((Ck, Ck, w))                   # torch layout (out, in, k)
        wcat.append(jnp.transpose(W, (1, 2, 0)).reshape(Ck, w * Ck) * bn_scale)
        cvb.append(nrm((1, Ck)) * bn_scale)
    norm_g = jnp.ones((1, D), jnp.float32)
    norm_b = jnp.zeros((1, D), jnp.float32)

    # ---- encoder layers (fc output projection folded into per-head Wv) ----
    layers = []
    for _ in range(cfg.n_layer):
        wq, wk = nrm((D, H * dk)), nrm((D, H * dk))
        wv, wo, bo = nrm((D, H * dv)), nrm((H * dv, D)), nrm((1, D))
        wvp = jnp.concatenate(
            [wv[:, h * dv:(h + 1) * dv] @ wo[h * dv:(h + 1) * dv, :] for h in range(H)],
            axis=-1)                                               # (D, H*D)
        layers.append(dict(
            wvp=wvp, wq=wq, wk=wk, w1=nrm((D, Dh)), w2=nrm((Dh, D)), bo=bo,
            ln1g=jnp.ones((1, D), jnp.float32), ln1b=jnp.zeros((1, D), jnp.float32),
            b1=nrm((1, Dh)), b2=nrm((1, D)),
            ln2g=jnp.ones((1, D), jnp.float32), ln2b=jnp.zeros((1, D), jnp.float32)))

    # ---------------- pack into a few VMEM-friendly slabs ----------------
    # (a) embedding matrices:  [cov_w | conv_w]
    rows_e = max(cov, 3)
    embw = jnp.zeros((rows_e, 2 * D), jnp.float32)
    embw = embw.at[0:cov, 0:D].set(cov_w).at[0:3, D:2 * D].set(conv_w)

    # (b) bottleneck matrices + host-built strided-tap selection matrices
    bl = _bneck_layout(D, Ck, cfg.input_size, tuple(cfg.window_size))
    rows_b = ((bl["rows"] + 7) // 8) * 8
    bneck = jnp.zeros((rows_b, bl["width"]), jnp.float32)
    bneck = bneck.at[bl["down"]:bl["down"] + D, 0:Ck].set(down_w)
    for i, w in enumerate(cfg.window_size):
        bneck = bneck.at[bl["wcat"][i]:bl["wcat"][i] + Ck, 0:w * Ck].set(wcat[i])
    bneck = bneck.at[bl["up"]:bl["up"] + Ck, 0:D].set(up_w)
    for i, w in enumerate(cfg.window_size):
        for j in range(w):
            so, To, Tc = bl["sel"][i][j]
            S = np.zeros((To, Tc), np.float32)
            S[np.arange(To), w * np.arange(To) + j] = 1.0
            bneck = bneck.at[so:so + To, 0:Tc].set(jnp.asarray(S))

    # (c) per-layer big matrices: [wvp | w1 | wq | wk]  (widest first)
    cols = H * D + Dh + 2 * H * dk
    mat = jnp.zeros((cfg.n_layer, D, cols), jnp.float32)
    w2 = jnp.zeros((cfg.n_layer, Dh, D), jnp.float32)
    for l, lp in enumerate(layers):
        mat = mat.at[l, :, 0:H * D].set(lp["wvp"])
        mat = mat.at[l, :, H * D:H * D + Dh].set(lp["w1"])
        mat = mat.at[l, :, H * D + Dh:H * D + Dh + H * dk].set(lp["wq"])
        mat = mat.at[l, :, H * D + Dh + H * dk:cols].set(lp["wk"])
        w2 = w2.at[l].set(lp["w2"])

    # (d) all 1-row bias / LayerNorm vectors
    vl = _vec_layout(nconv)
    rows_v = vl["layer"] + 7 * cfg.n_layer
    vec = jnp.zeros((rows_v, max(D, Dh, Ck)), jnp.float32)

    def setrow(slab, row, val):
        return slab.at[row:row + 1, 0:val.shape[1]].set(val)

    vec = setrow(vec, vl["seq_w"], seq_w)
    vec = setrow(vec, vl["cov_b"], cov_b)
    vec = setrow(vec, vl["down_b"], down_b)
    for i in range(nconv):
        vec = setrow(vec, vl["cvb"][i], cvb[i])
    vec = setrow(vec, vl["up_b"], up_b)
    vec = setrow(vec, vl["norm_g"], norm_g)
    vec = setrow(vec, vl["norm_b"], norm_b)
    for l, lp in enumerate(layers):
        r0 = vl["layer"] + 7 * l
        vec = setrow(vec, r0 + 0, lp["bo"])
        vec = setrow(vec, r0 + 1, lp["ln1g"])
        vec = setrow(vec, r0 + 2, lp["ln1b"])
        vec = setrow(vec, r0 + 3, lp["b1"])
        vec = setrow(vec, r0 + 4, lp["b2"])
        vec = setrow(vec, r0 + 5, lp["ln2g"])
        vec = setrow(vec, r0 + 6, lp["ln2b"])

    return {"embw": embw, "bneck": bneck, "mat": mat, "w2": w2, "vec": vec}


# --------------------------------------------------------------------------
if __name__ == "__main__":
    cfg = Config()
    consts = build_constants(cfg)

    key = jax.random.PRNGKey(0)
    pkey, xkey = jax.random.split(key)
    packed = init_params(cfg, pkey)

    F = 1 + cfg.covariate_size + 1                 # [data, covariates..., seq_id]
    x = jax.random.normal(xkey, (cfg.batch, cfg.input_size, F), jnp.float32)
    seq_ids = jnp.broadcast_to(
        (jnp.arange(cfg.batch, dtype=jnp.float32) % cfg.num_seq)[:, None],
        (cfg.batch, cfg.input_size))
    x = x.at[:, :, -1].set(seq_ids)

    fwd = jax.jit(lambda xx, pp: encoder_forward(xx, pp, consts, cfg))
    out = jax.block_until_ready(fwd(x, packed))

    assert out.shape == (cfg.batch, cfg.input_size, consts["n_scales"] * cfg.d_model)
    assert bool(jnp.all(jnp.isfinite(out)))
    print("KERNEL_OK")
</pallas_src>

<mosaic_0001>
module attributes {stable_mosaic.version = 11 : i64} {
  func.func @_fused_encoder_kernel(%arg0: i32, %arg1: memref<1x16x5xf32, #tpu.memory_space<vmem>>, %arg2: memref<1x16x3xf32, #tpu.memory_space<vmem>>, %arg3: memref<240x32xf32, #tpu.memory_space<vmem>>, %arg4: memref<4x32x128xf32, #tpu.memory_space<vmem>>, %arg5: memref<3x64xf32, #tpu.memory_space<vmem>>, %arg6: memref<96x32xf32, #tpu.memory_space<vmem>>, %arg7: memref<2x32x256xf32, #tpu.memory_space<vmem>>, %arg8: memref<2x64x32xf32, #tpu.memory_space<vmem>>, %arg9: memref<23x64xf32, #tpu.memory_space<vmem>>, %arg10: memref<1x16x128xf32, #tpu.memory_space<vmem>>) attributes {dimension_semantics = [#tpu.dimension_semantics<parallel>], iteration_bounds = array<i64: 2>, scalar_prefetch = 0 : i64, scratch_operands = 0 : i64, tpu.core_type = #tpu.core_type<tc>, window_params = [{transform_indices = @transform_0, window_bounds = array<i64: 1, 16, 5>}, {transform_indices = @transform_1, window_bounds = array<i64: 1, 16, 3>}, {pipeline_mode = #tpu.pipeline_mode<synchronous>, transform_indices = @transform_2, window_bounds = array<i64: 240, 32>}, {pipeline_mode = #tpu.pipeline_mode<synchronous>, transform_indices = @transform_3, window_bounds = array<i64: 4, 32, 128>}, {pipeline_mode = #tpu.pipeline_mode<synchronous>, transform_indices = @transform_4, window_bounds = array<i64: 3, 64>}, {pipeline_mode = #tpu.pipeline_mode<synchronous>, transform_indices = @transform_5, window_bounds = array<i64: 96, 32>}, {pipeline_mode = #tpu.pipeline_mode<synchronous>, transform_indices = @transform_6, window_bounds = array<i64: 2, 32, 256>}, {pipeline_mode = #tpu.pipeline_mode<synchronous>, transform_indices = @transform_7, window_bounds = array<i64: 2, 64, 32>}, {pipeline_mode = #tpu.pipeline_mode<synchronous>, transform_indices = @transform_8, window_bounds = array<i64: 23, 64>}, {transform_indices = @transform_9, window_bounds = array<i64: 1, 16, 128>}]} {
    %c0 = arith.constant 0 : index
    %c0_0 = arith.constant 0 : index
    %0 = vector.load %arg3[%c0, %c0_0] : memref<240x32xf32, #tpu.memory_space<vmem>>, vector<16x32xf32>
    %c16 = arith.constant 16 : index
    %c0_1 = arith.constant 0 : index
    %1 = vector.load %arg3[%c16, %c0_1] : memref<240x32xf32, #tpu.memory_space<vmem>>, vector<32x32xf32>
    %c0_2 = arith.constant 0 : index
    %c0_3 = arith.constant 0 : index
    %2 = vector.load %arg5[%c0_2, %c0_3] : memref<3x64xf32, #tpu.memory_space<vmem>>, vector<3x64xf32>
    %3 = vector.extract_strided_slice %2 {offsets = [0, 0], sizes = [3, 32], strides = [1, 1]} : vector<3x64xf32> to vector<3x32xf32>
    %4 = vector.extract_strided_slice %2 {offsets = [0, 32], sizes = [3, 32], strides = [1, 1]} : vector<3x64xf32> to vector<3x32xf32>
    %c0_4 = arith.constant 0 : index
    %c0_5 = arith.constant 0 : index
    %5 = vector.load %arg6[%c0_4, %c0_5] : memref<96x32xf32, #tpu.memory_space<vmem>>, vector<32x32xf32>
    %6 = vector.extract_strided_slice %5 {offsets = [0, 0], sizes = [32, 8], strides = [1, 1]} : vector<32x32xf32> to vector<32x8xf32>
    %c56 = arith.constant 56 : index
    %c0_6 = arith.constant 0 : index
    %7 = vector.load %arg6[%c56, %c0_6] : memref<96x32xf32, #tpu.memory_space<vmem>>, vector<8x32xf32>
    %c0_7 = arith.constant 0 : index
    %c0_8 = arith.constant 0 : index
    %8 = vector.load %arg9[%c0_7, %c0_8] : memref<23x64xf32, #tpu.memory_space<vmem>>, vector<1x64xf32>
    %9 = vector.extract_strided_slice %8 {offsets = [0, 0], sizes = [1, 32], strides = [1, 1]} : vector<1x64xf32> to vector<1x32xf32>
    %c1 = arith.constant 1 : index
    %c0_9 = arith.constant 0 : index
    %10 = vector.load %arg9[%c1, %c0_9] : memref<23x64xf32, #tpu.memory_space<vmem>>, vector<1x64xf32>
    %11 = vector.extract_strided_slice %10 {offsets = [0, 0], sizes = [1, 32], strides = [1, 1]} : vector<1x64xf32> to vector<1x32xf32>
    %c2 = arith.constant 2 : index
    %c0_10 = arith.constant 0 : index
    %12 = vector.load %arg9[%c2, %c0_10] : memref<23x64xf32, #tpu.memory_space<vmem>>, vector<1x64xf32>
    %13 = vector.extract_strided_slice %12 {offsets = [0, 0], sizes = [1, 8], strides = [1, 1]} : vector<1x64xf32> to vector<1x8xf32>
    %c6 = arith.constant 6 : index
    %c0_11 = arith.constant 0 : index
    %14 = vector.load %arg9[%c6, %c0_11] : memref<23x64xf32, #tpu.memory_space<vmem>>, vector<1x64xf32>
    %15 = vector.extract_strided_slice %14 {offsets = [0, 0], sizes = [1, 32], strides = [1, 1]} : vector<1x64xf32> to vector<1x32xf32>
    %c7 = arith.constant 7 : index
    %c0_12 = arith.constant 0 : index
    %16 = vector.load %arg9[%c7, %c0_12] : memref<23x64xf32, #tpu.memory_space<vmem>>, vector<1x64xf32>
    %17 = vector.extract_strided_slice %16 {offsets = [0, 0], sizes = [1, 32], strides = [1, 1]} : vector<1x64xf32> to vector<1x32xf32>
    %c8 = arith.constant 8 : index
    %c0_13 = arith.constant 0 : index
    %18 = vector.load %arg9[%c8, %c0_13] : memref<23x64xf32, #tpu.memory_space<vmem>>, vector<1x64xf32>
    %19 = vector.extract_strided_slice %18 {offsets = [0, 0], sizes = [1, 32], strides = [1, 1]} : vector<1x64xf32> to vector<1x32xf32>
    %c0_14 = arith.constant 0 : index
    %c0_15 = arith.constant 0 : index
    %c0_16 = arith.constant 0 : index
    %20 = vector.load %arg1[%c0_14, %c0_15, %c0_16] : memref<1x16x5xf32, #tpu.memory_space<vmem>>, vector<1x16x5xf32>
    %21 = vector.shape_cast %20 : vector<1x16x5xf32> to vector<16x5xf32>
    %22 = vector.extract_strided_slice %21 {offsets = [0, 1], sizes = [16, 3], strides = [1, 1]} : vector<16x5xf32> to vector<16x3xf32>
    %23 = vector.extract_strided_slice %21 {offsets = [0, 4], sizes = [16, 1], strides = [1, 1]} : vector<16x5xf32> to vector<16x1xf32>
    %cst = arith.constant 7.000000e+00 : f32
    %24 = vector.broadcast %cst : f32 to vector<16x1xf32>
    %25 = arith.divf %23, %24 : vector<16x1xf32>
    %cst_17 = arith.constant 5.000000e-01 : f32
    %26 = vector.broadcast %cst_17 : f32 to vector<16x1xf32>
    %27 = arith.subf %25, %26 : vector<16x1xf32>
    %cst_18 = arith.constant dense<0.000000e+00> : vector<16x32xf32>
    %28 = tpu.matmul %22, %3, %cst_18 {dimension_numbers = #tpu.dot_dimension_numbers<[1], [0], [0], [1], [0, 0, 1, 1], [], []>} : vector<16x3xf32>, vector<3x32xf32>, vector<16x32xf32> -> vector<16x32xf32>
    %29 = vector.broadcast %27 : vector<16x1xf32> to vector<16x32xf32>
    %30 = vector.broadcast %9 : vector<1x32xf32> to vector<16x32xf32>
    %31 = arith.mulf %29, %30 : vector<16x32xf32>
    %32 = arith.addf %28, %31 : vector<16x32xf32>
    %33 = vector.broadcast %11 : vector<1x32xf32> to vector<16x32xf32>
    %34 = arith.addf %32, %33 : vector<16x32xf32>
    %c0_19 = arith.constant 0 : index
    %c0_20 = arith.constant 0 : index
    %c0_21 = arith.constant 0 : index
    %35 = vector.load %arg2[%c0_19, %c0_20, %c0_21] : memref<1x16x3xf32, #tpu.memory_space<vmem>>, vector<1x16x3xf32>
    %36 = vector.shape_cast %35 : vector<1x16x3xf32> to vector<16x3xf32>
    %cst_22 = arith.constant dense<0.000000e+00> : vector<16x32xf32>
    %37 = tpu.matmul %36, %4, %cst_22 {dimension_numbers = #tpu.dot_dimension_numbers<[1], [0], [0], [1], [0, 0, 1, 1], [], []>} : vector<16x3xf32>, vector<3x32xf32>, vector<16x32xf32> -> vector<16x32xf32>
    %38 = arith.addf %34, %37 : vector<16x32xf32>
    %39 = arith.addf %38, %0 : vector<16x32xf32>
    %cst_23 = arith.constant dense<0.000000e+00> : vector<16x8xf32>
    %40 = tpu.matmul %39, %6, %cst_23 {dimension_numbers = #tpu.dot_dimension_numbers<[1], [0], [0], [1], [0, 0, 1, 1], [], []>} : vector<16x32xf32>, vector<32x8xf32>, vector<16x8xf32> -> vector<16x8xf32>
    %41 = vector.broadcast %13 : vector<1x8xf32> to vector<16x8xf32>
    %42 = arith.addf %40, %41 : vector<16x8xf32>
    %c32 = arith.constant 32 : index
    %c0_24 = arith.constant 0 : index
    %43 = vector.load %arg6[%c32, %c0_24] : memref<96x32xf32, #tpu.memory_space<vmem>>, vector<8x32xf32>
    %44 = vector.extract_strided_slice %43 {offsets = [0, 0], sizes = [8, 16], strides = [1, 1]} : vector<8x32xf32> to vector<8x16xf32>
    %cst_25 = arith.constant dense<0.000000e+00> : vector<16x16xf32>
    %45 = tpu.matmul %42, %44, %cst_25 {dimension_numbers = #tpu.dot_dimension_numbers<[1], [0], [0], [1], [0, 0, 1, 1], [], []>} : vector<16x8xf32>, vector<8x16xf32>, vector<16x16xf32> -> vector<16x16xf32>
    %c64 = arith.constant 64 : index
    %c0_26 = arith.constant 0 : index
    %46 = vector.load %arg6[%c64, %c0_26] : memref<96x32xf32, #tpu.memory_space<vmem>>, vector<8x32xf32>
    %47 = vector.extract_strided_slice %46 {offsets = [0, 0], sizes = [8, 16], strides = [1, 1]} : vector<8x32xf32> to vector<8x16xf32>
    %48 = vector.extract_strided_slice %45 {offsets = [0, 0], sizes = [16, 8], strides = [1, 1]} : vector<16x16xf32> to vector<16x8xf32>
    %cst_27 = arith.constant dense<0.000000e+00> : vector<8x8xf32>
    %49 = tpu.matmul %47, %48, %cst_27 {dimension_numbers = #tpu.dot_dimension_numbers<[1], [0], [0], [1], [0, 0, 1, 1], [], []>} : vector<8x16xf32>, vector<16x8xf32>, vector<8x8xf32> -> vector<8x8xf32>
    %c72 = arith.constant 72 : index
    %c0_28 = arith.constant 0 : index
    %50 = vector.load %arg6[%c72, %c0_28] : memref<96x32xf32, #tpu.memory_space<vmem>>, vector<8x32xf32>
    %51 = vector.extract_strided_slice %50 {offsets = [0, 0], sizes = [8, 16], strides = [1, 1]} : vector<8x32xf32> to vector<8x16xf32>
    %52 = vector.extract_strided_slice %45 {offsets = [0, 8], sizes = [16, 8], strides = [1, 1]} : vector<16x16xf32> to vector<16x8xf32>
    %cst_29 = arith.constant dense<0.000000e+00> : vector<8x8xf32>
    %53 = tpu.matmul %51, %52, %cst_29 {dimension_numbers = #tpu.dot_dimension_numbers<[1], [0], [0], [1], [0, 0, 1, 1], [], []>} : vector<8x16xf32>, vector<16x8xf32>, vector<8x8xf32> -> vector<8x8xf32>
    %54 = arith.addf %49, %53 : vector<8x8xf32>
    %c3 = arith.constant 3 : index
    %c0_30 = arith.constant 0 : index
    %55 = vector.load %arg9[%c3, %c0_30] : memref<23x64xf32, #tpu.memory_space<vmem>>, vector<1x64xf32>
    %56 = vector.extract_strided_slice %55 {offsets = [0, 0], sizes = [1, 8], strides = [1, 1]} : vector<1x64xf32> to vector<1x8xf32>
    %57 = vector.broadcast %56 : vector<1x8xf32> to vector<8x8xf32>
    %58 = arith.addf %54, %57 : vector<8x8xf32>
    %cst_31 = arith.constant 0.000000e+00 : f32
    %59 = vector.broadcast %cst_31 : f32 to vector<8x8xf32>
    %60 = arith.cmpf ogt, %58, %59 : vector<8x8xf32>
    %cst_32 = arith.constant 0.000000e+00 : f32
    %61 = vector.broadcast %cst_32 : f32 to vector<8x8xf32>
    %62 = arith.minimumf %58, %61 : vector<8x8xf32>
    %63 = math.exp %62 : vector<8x8xf32>
    %cst_33 = arith.constant 1.000000e+00 : f32
    %64 = vector.broadcast %cst_33 : f32 to vector<8x8xf32>
    %65 = arith.subf %63, %64 : vector<8x8xf32>
    %66 = arith.select %60, %58, %65 : vector<8x8xi1>, vector<8x8xf32>
    %cst_34 = arith.constant dense<0.000000e+00> : vector<8x32xf32>
    %67 = tpu.matmul %66, %7, %cst_34 {dimension_numbers = #tpu.dot_dimension_numbers<[1], [0], [0], [1], [0, 0, 1, 1], [], []>} : vector<8x8xf32>, vector<8x32xf32>, vector<8x32xf32> -> vector<8x32xf32>
    %68 = vector.broadcast %15 : vector<1x32xf32> to vector<8x32xf32>
    %69 = arith.addf %67, %68 : vector<8x32xf32>
    %c40 = arith.constant 40 : index
    %c0_35 = arith.constant 0 : index
    %70 = vector.load %arg6[%c40, %c0_35] : memref<96x32xf32, #tpu.memory_space<vmem>>, vector<8x32xf32>
    %71 = vector.extract_strided_slice %70 {offsets = [0, 0], sizes = [8, 16], strides = [1, 1]} : vector<8x32xf32> to vector<8x16xf32>
    %cst_36 = arith.constant dense<0.000000e+00> : vector<8x16xf32>
    %72 = tpu.matmul %66, %71, %cst_36 {dimension_numbers = #tpu.dot_dimension_numbers<[1], [0], [0], [1], [0, 0, 1, 1], [], []>} : vector<8x8xf32>, vector<8x16xf32>, vector<8x16xf32> -> vector<8x16xf32>
    %c80 = arith.constant 80 : index
    %c0_37 = arith.constant 0 : index
    %73 = vector.load %arg6[%c80, %c0_37] : memref<96x32xf32, #tpu.memory_space<vmem>>, vector<4x32xf32>
    %74 = vector.extract_strided_slice %73 {offsets = [0, 0], sizes = [4, 8], strides = [1, 1]} : vector<4x32xf32> to vector<4x8xf32>
    %75 = vector.extract_strided_slice %72 {offsets = [0, 0], sizes = [8, 8], strides = [1, 1]} : vector<8x16xf32> to vector<8x8xf32>
    %cst_38 = arith.constant dense<0.000000e+00> : vector<4x8xf32>
    %76 = tpu.matmul %74, %75, %cst_38 {dimension_numbers = #tpu.dot_dimension_numbers<[1], [0], [0], [1], [0, 0, 1, 1], [], []>} : vector<4x8xf32>, vector<8x8xf32>, vector<4x8xf32> -> vector<4x8xf32>
    %c84 = arith.constant 84 : index
    %c0_39 = arith.constant 0 : index
    %77 = vector.load %arg6[%c84, %c0_39] : memref<96x32xf32, #tpu.memory_space<vmem>>, vector<4x32xf32>
    %78 = vector.extract_strided_slice %77 {offsets = [0, 0], sizes = [4, 8], strides = [1, 1]} : vector<4x32xf32> to vector<4x8xf32>
    %79 = vector.extract_strided_slice %72 {offsets = [0, 8], sizes = [8, 8], strides = [1, 1]} : vector<8x16xf32> to vector<8x8xf32>
    %cst_40 = arith.constant dense<0.000000e+00> : vector<4x8xf32>
    %80 = tpu.matmul %78, %79, %cst_40 {dimension_numbers = #tpu.dot_dimension_numbers<[1], [0], [0], [1], [0, 0, 1, 1], [], []>} : vector<4x8xf32>, vector<8x8xf32>, vector<4x8xf32> -> vector<4x8xf32>
    %81 = arith.addf %76, %80 : vector<4x8xf32>
    %c4 = arith.constant 4 : index
    %c0_41 = arith.constant 0 : index
    %82 = vector.load %arg9[%c4, %c0_41] : memref<23x64xf32, #tpu.memory_space<vmem>>, vector<1x64xf32>
    %83 = vector.extract_strided_slice %82 {offsets = [0, 0], sizes = [1, 8], strides = [1, 1]} : vector<1x64xf32> to vector<1x8xf32>
    %84 = vector.broadcast %83 : vector<1x8xf32> to vector<4x8xf32>
    %85 = arith.addf %81, %84 : vector<4x8xf32>
    %cst_42 = arith.constant 0.000000e+00 : f32
    %86 = vector.broadcast %cst_42 : f32 to vector<4x8xf32>
    %87 = arith.cmpf ogt, %85, %86 : vector<4x8xf32>
    %cst_43 = arith.constant 0.000000e+00 : f32
    %88 = vector.broadcast %cst_43 : f32 to vector<4x8xf32>
    %89 = arith.minimumf %85, %88 : vector<4x8xf32>
    %90 = math.exp %89 : vector<4x8xf32>
    %cst_44 = arith.constant 1.000000e+00 : f32
    %91 = vector.broadcast %cst_44 : f32 to vector<4x8xf32>
    %92 = arith.subf %90, %91 : vector<4x8xf32>
    %93 = arith.select %87, %85, %92 : vector<4x8xi1>, vector<4x8xf32>
    %cst_45 = arith.constant dense<0.000000e+00> : vector<4x32xf32>
    %94 = tpu.matmul %93, %7, %cst_45 {dimension_numbers = #tpu.dot_dimension_numbers<[1], [0], [0], [1], [0, 0, 1, 1], [], []>} : vector<4x8xf32>, vector<8x32xf32>, vector<4x32xf32> -> vector<4x32xf32>
    %95 = vector.broadcast %15 : vector<1x32xf32> to vector<4x32xf32>
    %96 = arith.addf %94, %95 : vector<4x32xf32>
    %c48 = arith.constant 48 : index
    %c0_46 = arith.constant 0 : index
    %97 = vector.load %arg6[%c48, %c0_46] : memref<96x32xf32, #tpu.memory_space<vmem>>, vector<8x32xf32>
    %98 = vector.extract_strided_slice %97 {offsets = [0, 0], sizes = [8, 16], strides = [1, 1]} : vector<8x32xf32> to vector<8x16xf32>
    %cst_47 = arith.constant dense<0.000000e+00> : vector<4x16xf32>
    %99 = tpu.matmul %93, %98, %cst_47 {dimension_numbers = #tpu.dot_dimension_numbers<[1], [0], [0], [1], [0, 0, 1, 1], [], []>} : vector<4x8xf32>, vector<8x16xf32>, vector<4x16xf32> -> vector<4x16xf32>
    %c88 = arith.constant 88 : index
    %c0_48 = arith.constant 0 : index
    %100 = vector.load %arg6[%c88, %c0_48] : memref<96x32xf32, #tpu.memory_space<vmem>>, vector<2x32xf32>
    %101 = vector.extract_strided_slice %100 {offsets = [0, 0], sizes = [2, 4], strides = [1, 1]} : vector<2x32xf32> to vector<2x4xf32>
    %102 = vector.extract_strided_slice %99 {offsets = [0, 0], sizes = [4, 8], strides = [1, 1]} : vector<4x16xf32> to vector<4x8xf32>
    %cst_49 = arith.constant dense<0.000000e+00> : vector<2x8xf32>
    %103 = tpu.matmul %101, %102, %cst_49 {dimension_numbers = #tpu.dot_dimension_numbers<[1], [0], [0], [1], [0, 0, 1, 1], [], []>} : vector<2x4xf32>, vector<4x8xf32>, vector<2x8xf32> -> vector<2x8xf32>
    %c90 = arith.constant 90 : index
    %c0_50 = arith.constant 0 : index
    %104 = vector.load %arg6[%c90, %c0_50] : memref<96x32xf32, #tpu.memory_space<vmem>>, vector<2x32xf32>
    %105 = vector.extract_strided_slice %104 {offsets = [0, 0], sizes = [2, 4], strides = [1, 1]} : vector<2x32xf32> to vector<2x4xf32>
    %106 = vector.extract_strided_slice %99 {offsets = [0, 8], sizes = [4, 8], strides = [1, 1]} : vector<4x16xf32> to vector<4x8xf32>
    %cst_51 = arith.constant dense<0.000000e+00> : vector<2x8xf32>
    %107 = tpu.matmul %105, %106, %cst_51 {dimension_numbers = #tpu.dot_dimension_numbers<[1], [0], [0], [1], [0, 0, 1, 1], [], []>} : vector<2x4xf32>, vector<4x8xf32>, vector<2x8xf32> -> vector<2x8xf32>
    %108 = arith.addf %103, %107 : vector<2x8xf32>
    %c5 = arith.constant 5 : index
    %c0_52 = arith.constant 0 : index
    %109 = vector.load %arg9[%c5, %c0_52] : memref<23x64xf32, #tpu.memory_space<vmem>>, vector<1x64xf32>
    %110 = vector.extract_strided_slice %109 {offsets = [0, 0], sizes = [1, 8], strides = [1, 1]} : vector<1x64xf32> to vector<1x8xf32>
    %111 = vector.broadcast %110 : vector<1x8xf32> to vector<2x8xf32>
    %112 = arith.addf %108, %111 : vector<2x8xf32>
    %cst_53 = arith.constant 0.000000e+00 : f32
    %113 = vector.broadcast %cst_53 : f32 to vector<2x8xf32>
    %114 = arith.cmpf ogt, %112, %113 : vector<2x8xf32>
    %cst_54 = arith.constant 0.000000e+00 : f32
    %115 = vector.broadcast %cst_54 : f32 to vector<2x8xf32>
    %116 = arith.minimumf %112, %115 : vector<2x8xf32>
    %117 = math.exp %116 : vector<2x8xf32>
    %cst_55 = arith.constant 1.000000e+00 : f32
    %118 = vector.broadcast %cst_55 : f32 to vector<2x8xf32>
    %119 = arith.subf %117, %118 : vector<2x8xf32>
    %120 = arith.select %114, %112, %119 : vector<2x8xi1>, vector<2x8xf32>
    %cst_56 = arith.constant dense<0.000000e+00> : vector<2x32xf32>
    %121 = tpu.matmul %120, %7, %cst_56 {dimension_numbers = #tpu.dot_dimension_numbers<[1], [0], [0], [1], [0, 0, 1, 1], [], []>} : vector<2x8xf32>, vector<8x32xf32>, vector<2x32xf32> -> vector<2x32xf32>
    %122 = vector.broadcast %15 : vector<1x32xf32> to vector<2x32xf32>
    %123 = arith.addf %121, %122 : vector<2x32xf32>
    %c112 = arith.constant 112 : index
    %c0_57 = arith.constant 0 : index
    %124 = vector.load %arg3[%c112, %c0_57] : memref<240x32xf32, #tpu.memory_space<vmem>>, vector<32x32xf32>
    %125 = vector.extract_strided_slice %124 {offsets = [0, 0], sizes = [32, 16], strides = [1, 1]} : vector<32x32xf32> to vector<32x16xf32>
    %cst_58 = arith.constant dense<0.000000e+00> : vector<32x32xf32>
    %126 = tpu.matmul %125, %39, %cst_58 {dimension_numbers = #tpu.dot_dimension_numbers<[1], [0], [0], [1], [0, 0, 1, 1], [], []>} : vector<32x16xf32>, vector<16x32xf32>, vector<32x32xf32> -> vector<32x32xf32>
    %c144 = arith.constant 144 : index
    %c0_59 = arith.constant 0 : index
    %127 = vector.load %arg3[%c144, %c0_59] : memref<240x32xf32, #tpu.memory_space<vmem>>, vector<32x32xf32>
    %128 = vector.extract_strided_slice %127 {offsets = [0, 0], sizes = [32, 8], strides = [1, 1]} : vector<32x32xf32> to vector<32x8xf32>
    %cst_60 = arith.constant dense<0.000000e+00> : vector<32x32xf32>
    %129 = tpu.matmul %128, %69, %cst_60 {dimension_numbers = #tpu.dot_dimension_numbers<[1], [0], [0], [1], [0, 0, 1, 1], [], []>} : vector<32x8xf32>, vector<8x32xf32>, vector<32x32xf32> -> vector<32x32xf32>
    %130 = arith.addf %126, %129 : vector<32x32xf32>
    %c176 = arith.constant 176 : index
    %c0_61 = arith.constant 0 : index
    %131 = vector.load %arg3[%c176, %c0_61] : memref<240x32xf32, #tpu.memory_space<vmem>>, vector<32x32xf32>
    %132 = vector.extract_strided_slice %131 {offsets = [0, 0], sizes = [32, 4], strides = [1, 1]} : vector<32x32xf32> to vector<32x4xf32>
    %cst_62 = arith.constant dense<0.000000e+00> : vector<32x32xf32>
    %133 = tpu.matmul %132, %96, %cst_62 {dimension_numbers = #tpu.dot_dimension_numbers<[1], [0], [0], [1], [0, 0, 1, 1], [], []>} : vector<32x4xf32>, vector<4x32xf32>, vector<32x32xf32> -> vector<32x32xf32>
    %134 = arith.addf %130, %133 : vector<32x32xf32>
    %c208 = arith.constant 208 : index
    %c0_63 = arith.constant 0 : index
    %135 = vector.load %arg3[%c208, %c0_63] : memref<240x32xf32, #tpu.memory_space<vmem>>, vector<32x32xf32>
    %136 = vector.extract_strided_slice %135 {offsets = [0, 0], sizes = [32, 2], strides = [1, 1]} : vector<32x32xf32> to vector<32x2xf32>
    %cst_64 = arith.constant dense<0.000000e+00> : vector<32x32xf32>
    %137 = tpu.matmul %136, %123, %cst_64 {dimension_numbers = #tpu.dot_dimension_numbers<[1], [0], [0], [1], [0, 0, 1, 1], [], []>} : vector<32x2xf32>, vector<2x32xf32>, vector<32x32xf32> -> vector<32x32xf32>
    %138 = arith.addf %134, %137 : vector<32x32xf32>
    %cst_65 = arith.constant dense<0.000000e+00> : vector<32xf32>
    %139 = vector.multi_reduction <add>, %138, %cst_65 [1] : vector<32x32xf32> to vector<32xf32>
    %140 = vector.shape_cast %139 : vector<32xf32> to vector<32x1xf32>
    %cst_66 = arith.constant 3.200000e+01 : f32
    %141 = vector.broadcast %cst_66 : f32 to vector<32x1xf32>
    %142 = arith.divf %140, %141 : vector<32x1xf32>
    %143 = vector.broadcast %142 : vector<32x1xf32> to vector<32x32xf32>
    %144 = arith.subf %138, %143 : vector<32x32xf32>
    %145 = arith.mulf %144, %144 : vector<32x32xf32>
    %cst_67 = arith.constant dense<0.000000e+00> : vector<32xf32>
    %146 = vector.multi_reduction <add>, %145, %cst_67 [1] : vector<32x32xf32> to vector<32xf32>
    %147 = vector.shape_cast %146 : vector<32xf32> to vector<32x1xf32>
    %cst_68 = arith.constant 3.200000e+01 : f32
    %148 = vector.broadcast %cst_68 : f32 to vector<32x1xf32>
    %149 = arith.divf %147, %148 : vector<32x1xf32>
    %cst_69 = arith.constant 9.99999974E-6 : f32
    %150 = vector.broadcast %cst_69 : f32 to vector<32x1xf32>
    %151 = arith.addf %149, %150 : vector<32x1xf32>
    %152 = math.rsqrt %151 : vector<32x1xf32>
    %153 = vector.broadcast %152 : vector<32x1xf32> to vector<32x32xf32>
    %154 = arith.mulf %144, %153 : vector<32x32xf32>
    %155 = vector.broadcast %17 : vector<1x32xf32> to vector<32x32xf32>
    %156 = arith.mulf %154, %155 : vector<32x32xf32>
    %157 = vector.broadcast %19 : vector<1x32xf32> to vector<32x32xf32>
    %158 = arith.addf %156, %157 : vector<32x32xf32>
    %c0_70 = arith.constant 0 : index
    %c0_71 = arith.constant 0 : index
    %c0_72 = arith.constant 0 : index
    %159 = vector.load %arg7[%c0_70, %c0_71, %c0_72] : memref<2x32x256xf32, #tpu.memory_space<vmem>>, vector<1x32x256xf32>
    %160 = vector.shape_cast %159 : vector<1x32x256xf32> to vector<32x256xf32>
    %161 = vector.extract_strided_slice %160 {offsets = [0, 0], sizes = [32, 128], strides = [1, 1]} : vector<32x256xf32> to vector<32x128xf32>
    %162 = vector.extract_strided_slice %160 {offsets = [0, 128], sizes = [32, 64], strides = [1, 1]} : vector<32x256xf32> to vector<32x64xf32>
    %163 = vector.extract_strided_slice %160 {offsets = [0, 192], sizes = [32, 32], strides = [1, 1]} : vector<32x256xf32> to vector<32x32xf32>
    %164 = vector.extract_strided_slice %160 {offsets = [0, 224], sizes = [32, 32], strides = [1, 1]} : vector<32x256xf32> to vector<32x32xf32>
    %c9 = arith.constant 9 : index
    %c0_73 = arith.constant 0 : index
    %165 = vector.load %arg9[%c9, %c0_73] : memref<23x64xf32, #tpu.memory_space<vmem>>, vector<1x64xf32>
    %166 = vector.extract_strided_slice %165 {offsets = [0, 0], sizes = [1, 32], strides = [1, 1]} : vector<1x64xf32> to vector<1x32xf32>
    %c10 = arith.constant 10 : index
    %c0_74 = arith.constant 0 : index
    %167 = vector.load %arg9[%c10, %c0_74] : memref<23x64xf32, #tpu.memory_space<vmem>>, vector<1x64xf32>
    %168 = vector.extract_strided_slice %167 {offsets = [0, 0], sizes = [1, 32], strides = [1, 1]} : vector<1x64xf32> to vector<1x32xf32>
    %c11 = arith.constant 11 : index
    %c0_75 = arith.constant 0 : index
    %169 = vector.load %arg9[%c11, %c0_75] : memref<23x64xf32, #tpu.memory_space<vmem>>, vector<1x64xf32>
    %170 = vector.extract_strided_slice %169 {offsets = [0, 0], sizes = [1, 32], strides = [1, 1]} : vector<1x64xf32> to vector<1x32xf32>
    %c12 = arith.constant 12 : index
    %c0_76 = arith.constant 0 : index
    %171 = vector.load %arg9[%c12, %c0_76] : memref<23x64xf32, #tpu.memory_space<vmem>>, vector<1x64xf32>
    %c13 = arith.constant 13 : index
    %c0_77 = arith.constant 0 : index
    %172 = vector.load %arg9[%c13, %c0_77] : memref<23x64xf32, #tpu.memory_space<vmem>>, vector<1x64xf32>
    %173 = vector.extract_strided_slice %172 {offsets = [0, 0], sizes = [1, 32], strides = [1, 1]} : vector<1x64xf32> to vector<1x32xf32>
    %c14 = arith.constant 14 : index
    %c0_78 = arith.constant 0 : index
    %174 = vector.load %arg9[%c14, %c0_78] : memref<23x64xf32, #tpu.memory_space<vmem>>, vector<1x64xf32>
    %175 = vector.extract_strided_slice %174 {offsets = [0, 0], sizes = [1, 32], strides = [1, 1]} : vector<1x64xf32> to vector<1x32xf32>
    %c15 = arith.constant 15 : index
    %c0_79 = arith.constant 0 : index
    %176 = vector.load %arg9[%c15, %c0_79] : memref<23x64xf32, #tpu.memory_space<vmem>>, vector<1x64xf32>
    %177 = vector.extract_strided_slice %176 {offsets = [0, 0], sizes = [1, 32], strides = [1, 1]} : vector<1x64xf32> to vector<1x32xf32>
    %cst_80 = arith.constant dense<0.000000e+00> : vector<32x32xf32>
    %178 = tpu.matmul %158, %163, %cst_80 {dimension_numbers = #tpu.dot_dimension_numbers<[1], [0], [0], [1], [0, 0, 1, 1], [], []>} : vector<32x32xf32>, vector<32x32xf32>, vector<32x32xf32> -> vector<32x32xf32>
    %cst_81 = arith.constant dense<0.000000e+00> : vector<32x32xf32>
    %179 = tpu.matmul %158, %164, %cst_81 {dimension_numbers = #tpu.dot_dimension_numbers<[1], [0], [0], [1], [0, 0, 1, 1], [], []>} : vector<32x32xf32>, vector<32x32xf32>, vector<32x32xf32> -> vector<32x32xf32>
    %cst_82 = arith.constant dense<0.000000e+00> : vector<32x128xf32>
    %180 = tpu.matmul %158, %161, %cst_82 {dimension_numbers = #tpu.dot_dimension_numbers<[1], [0], [0], [1], [0, 0, 1, 1], [], []>} : vector<32x32xf32>, vector<32x128xf32>, vector<32x128xf32> -> vector<32x128xf32>
    %181 = vector.broadcast %166 : vector<1x32xf32> to vector<32x32xf32>
    %182 = arith.addf %158, %181 : vector<32x32xf32>
    %183 = vector.extract_strided_slice %178 {offsets = [0, 0], sizes = [32, 8], strides = [1, 1]} : vector<32x32xf32> to vector<32x8xf32>
    %184 = vector.extract_strided_slice %179 {offsets = [0, 0], sizes = [32, 8], strides = [1, 1]} : vector<32x32xf32> to vector<32x8xf32>
    "tpu.trace_start"() <{level = 10 : i32, message = "qd,kd->qk"}> : () -> ()
    %cst_83 = arith.constant dense<0.000000e+00> : vector<32x32xf32>
    %185 = tpu.matmul %183, %184, %cst_83 {dimension_numbers = #tpu.dot_dimension_numbers<[1], [1], [0], [0], [0, 0, 1, 0], [], []>} : vector<32x8xf32>, vector<32x8xf32>, vector<32x32xf32> -> vector<32x32xf32>
    "tpu.trace_stop"() : () -> ()
    %cst_84 = arith.constant 0.353553385 : f32
    %186 = vector.broadcast %cst_84 : f32 to vector<32x32xf32>
    %187 = arith.mulf %185, %186 : vector<32x32xf32>
    %188 = arith.addf %187, %1 : vector<32x32xf32>
    %cst_85 = arith.constant dense<0xFF800000> : vector<32xf32>
    %189 = vector.multi_reduction <maximumf>, %188, %cst_85 [1] : vector<32x32xf32> to vector<32xf32>
    %190 = vector.shape_cast %189 : vector<32xf32> to vector<32x1xf32>
    %191 = vector.broadcast %190 : vector<32x1xf32> to vector<32x32xf32>
    %192 = arith.subf %188, %191 : vector<32x32xf32>
    %193 = math.exp %192 : vector<32x32xf32>
    %cst_86 = arith.constant dense<0.000000e+00> : vector<32xf32>
    %194 = vector.multi_reduction <add>, %193, %cst_86 [1] : vector<32x32xf32> to vector<32xf32>
    %195 = vector.shape_cast %194 : vector<32xf32> to vector<32x1xf32>
    %196 = tpu.reciprocal %195 {approx = true} : vector<32x1xf32> -> vector<32x1xf32>
    %197 = vector.broadcast %196 : vector<32x1xf32> to vector<32x32xf32>
    %198 = arith.mulf %193, %197 : vector<32x32xf32>
    %199 = vector.extract_strided_slice %180 {offsets = [0, 0], sizes = [32, 32], strides = [1, 1]} : vector<32x128xf32> to vector<32x32xf32>
    %cst_87 = arith.constant dense<0.000000e+00> : vector<32x32xf32>
    %200 = tpu.matmul %198, %199, %cst_87 {dimension_numbers = #tpu.dot_dimension_numbers<[1], [0], [0], [1], [0, 0, 1, 1], [], []>} : vector<32x32xf32>, vector<32x32xf32>, vector<32x32xf32> -> vector<32x32xf32>
    %201 = arith.addf %182, %200 : vector<32x32xf32>
    %202 = vector.extract_strided_slice %178 {offsets = [0, 8], sizes = [32, 8], strides = [1, 1]} : vector<32x32xf32> to vector<32x8xf32>
    %203 = vector.extract_strided_slice %179 {offsets = [0, 8], sizes = [32, 8], strides = [1, 1]} : vector<32x32xf32> to vector<32x8xf32>
    "tpu.trace_start"() <{level = 10 : i32, message = "qd,kd->qk"}> : () -> ()
    %cst_88 = arith.constant dense<0.000000e+00> : vector<32x32xf32>
    %204 = tpu.matmul %202, %203, %cst_88 {dimension_numbers = #tpu.dot_dimension_numbers<[1], [1], [0], [0], [0, 0, 1, 0], [], []>} : vector<32x8xf32>, vector<32x8xf32>, vector<32x32xf32> -> vector<32x32xf32>
    "tpu.trace_stop"() : () -> ()
    %cst_89 = arith.constant 0.353553385 : f32
    %205 = vector.broadcast %cst_89 : f32 to vector<32x32xf32>
    %206 = arith.mulf %204, %205 : vector<32x32xf32>
    %207 = arith.addf %206, %1 : vector<32x32xf32>
    %cst_90 = arith.constant dense<0xFF800000> : vector<32xf32>
    %208 = vector.multi_reduction <maximumf>, %207, %cst_90 [1] : vector<32x32xf32> to vector<32xf32>
    %209 = vector.shape_cast %208 : vector<32xf32> to vector<32x1xf32>
    %210 = vector.broadcast %209 : vector<32x1xf32> to vector<32x32xf32>
    %211 = arith.subf %207, %210 : vector<32x32xf32>
    %212 = math.exp %211 : vector<32x32xf32>
    %cst_91 = arith.constant dense<0.000000e+00> : vector<32xf32>
    %213 = vector.multi_reduction <add>, %212, %cst_91 [1] : vector<32x32xf32> to vector<32xf32>
    %214 = vector.shape_cast %213 : vector<32xf32> to vector<32x1xf32>
    %215 = tpu.reciprocal %214 {approx = true} : vector<32x1xf32> -> vector<32x1xf32>
    %216 = vector.broadcast %215 : vector<32x1xf32> to vector<32x32xf32>
    %217 = arith.mulf %212, %216 : vector<32x32xf32>
    %218 = vector.extract_strided_slice %180 {offsets = [0, 32], sizes = [32, 32], strides = [1, 1]} : vector<32x128xf32> to vector<32x32xf32>
    %cst_92 = arith.constant dense<0.000000e+00> : vector<32x32xf32>
    %219 = tpu.matmul %217, %218, %cst_92 {dimension_numbers = #tpu.dot_dimension_numbers<[1], [0], [0], [1], [0, 0, 1, 1], [], []>} : vector<32x32xf32>, vector<32x32xf32>, vector<32x32xf32> -> vector<32x32xf32>
    %220 = arith.addf %201, %219 : vector<32x32xf32>
    %221 = vector.extract_strided_slice %178 {offsets = [0, 16], sizes = [32, 8], strides = [1, 1]} : vector<32x32xf32> to vector<32x8xf32>
    %222 = vector.extract_strided_slice %179 {offsets = [0, 16], sizes = [32, 8], strides = [1, 1]} : vector<32x32xf32> to vector<32x8xf32>
    "tpu.trace_start"() <{level = 10 : i32, message = "qd,kd->qk"}> : () -> ()
    %cst_93 = arith.constant dense<0.000000e+00> : vector<32x32xf32>
    %223 = tpu.matmul %221, %222, %cst_93 {dimension_numbers = #tpu.dot_dimension_numbers<[1], [1], [0], [0], [0, 0, 1, 0], [], []>} : vector<32x8xf32>, vector<32x8xf32>, vector<32x32xf32> -> vector<32x32xf32>
    "tpu.trace_stop"() : () -> ()
    %cst_94 = arith.constant 0.353553385 : f32
    %224 = vector.broadcast %cst_94 : f32 to vector<32x32xf32>
    %225 = arith.mulf %223, %224 : vector<32x32xf32>
    %226 = arith.addf %225, %1 : vector<32x32xf32>
    %cst_95 = arith.constant dense<0xFF800000> : vector<32xf32>
    %227 = vector.multi_reduction <maximumf>, %226, %cst_95 [1] : vector<32x32xf32> to vector<32xf32>
    %228 = vector.shape_cast %227 : vector<32xf32> to vector<32x1xf32>
    %229 = vector.broadcast %228 : vector<32x1xf32> to vector<32x32xf32>
    %230 = arith.subf %226, %229 : vector<32x32xf32>
    %231 = math.exp %230 : vector<32x32xf32>
    %cst_96 = arith.constant dense<0.000000e+00> : vector<32xf32>
    %232 = vector.multi_reduction <add>, %231, %cst_96 [1] : vector<32x32xf32> to vector<32xf32>
    %233 = vector.shape_cast %232 : vector<32xf32> to vector<32x1xf32>
    %234 = tpu.reciprocal %233 {approx = true} : vector<32x1xf32> -> vector<32x1xf32>
    %235 = vector.broadcast %234 : vector<32x1xf32> to vector<32x32xf32>
    %236 = arith.mulf %231, %235 : vector<32x32xf32>
    %237 = vector.extract_strided_slice %180 {offsets = [0, 64], sizes = [32, 32], strides = [1, 1]} : vector<32x128xf32> to vector<32x32xf32>
    %cst_97 = arith.constant dense<0.000000e+00> : vector<32x32xf32>
    %238 = tpu.matmul %236, %237, %cst_97 {dimension_numbers = #tpu.dot_dimension_numbers<[1], [0], [0], [1], [0, 0, 1, 1], [], []>} : vector<32x32xf32>, vector<32x32xf32>, vector<32x32xf32> -> vector<32x32xf32>
    %239 = arith.addf %220, %238 : vector<32x32xf32>
    %240 = vector.extract_strided_slice %178 {offsets = [0, 24], sizes = [32, 8], strides = [1, 1]} : vector<32x32xf32> to vector<32x8xf32>
    %241 = vector.extract_strided_slice %179 {offsets = [0, 24], sizes = [32, 8], strides = [1, 1]} : vector<32x32xf32> to vector<32x8xf32>
    "tpu.trace_start"() <{level = 10 : i32, message = "qd,kd->qk"}> : () -> ()
    %cst_98 = arith.constant dense<0.000000e+00> : vector<32x32xf32>
    %242 = tpu.matmul %240, %241, %cst_98 {dimension_numbers = #tpu.dot_dimension_numbers<[1], [1], [0], [0], [0, 0, 1, 0], [], []>} : vector<32x8xf32>, vector<32x8xf32>, vector<32x32xf32> -> vector<32x32xf32>
    "tpu.trace_stop"() : () -> ()
    %cst_99 = arith.constant 0.353553385 : f32
    %243 = vector.broadcast %cst_99 : f32 to vector<32x32xf32>
    %244 = arith.mulf %242, %243 : vector<32x32xf32>
    %245 = arith.addf %244, %1 : vector<32x32xf32>
    %cst_100 = arith.constant dense<0xFF800000> : vector<32xf32>
    %246 = vector.multi_reduction <maximumf>, %245, %cst_100 [1] : vector<32x32xf32> to vector<32xf32>
    %247 = vector.shape_cast %246 : vector<32xf32> to vector<32x1xf32>
    %248 = vector.broadcast %247 : vector<32x1xf32> to vector<32x32xf32>
    %249 = arith.subf %245, %248 : vector<32x32xf32>
    %250 = math.exp %249 : vector<32x32xf32>
    %cst_101 = arith.constant dense<0.000000e+00> : vector<32xf32>
    %251 = vector.multi_reduction <add>, %250, %cst_101 [1] : vector<32x32xf32> to vector<32xf32>
    %252 = vector.shape_cast %251 : vector<32xf32> to vector<32x1xf32>
    %253 = tpu.reciprocal %252 {approx = true} : vector<32x1xf32> -> vector<32x1xf32>
    %254 = vector.broadcast %253 : vector<32x1xf32> to vector<32x32xf32>
    %255 = arith.mulf %250, %254 : vector<32x32xf32>
    %256 = vector.extract_strided_slice %180 {offsets = [0, 96], sizes = [32, 32], strides = [1, 1]} : vector<32x128xf32> to vector<32x32xf32>
    %cst_102 = arith.constant dense<0.000000e+00> : vector<32x32xf32>
    %257 = tpu.matmul %255, %256, %cst_102 {dimension_numbers = #tpu.dot_dimension_numbers<[1], [0], [0], [1], [0, 0, 1, 1], [], []>} : vector<32x32xf32>, vector<32x32xf32>, vector<32x32xf32> -> vector<32x32xf32>
    %258 = arith.addf %239, %257 : vector<32x32xf32>
    %cst_103 = arith.constant dense<0.000000e+00> : vector<32xf32>
    %259 = vector.multi_reduction <add>, %258, %cst_103 [1] : vector<32x32xf32> to vector<32xf32>
    %260 = vector.shape_cast %259 : vector<32xf32> to vector<32x1xf32>
    %cst_104 = arith.constant 3.200000e+01 : f32
    %261 = vector.broadcast %cst_104 : f32 to vector<32x1xf32>
    %262 = arith.divf %260, %261 : vector<32x1xf32>
    %263 = vector.broadcast %262 : vector<32x1xf32> to vector<32x32xf32>
    %264 = arith.subf %258, %263 : vector<32x32xf32>
    %265 = arith.mulf %264, %264 : vector<32x32xf32>
    %cst_105 = arith.constant dense<0.000000e+00> : vector<32xf32>
    %266 = vector.multi_reduction <add>, %265, %cst_105 [1] : vector<32x32xf32> to vector<32xf32>
    %267 = vector.shape_cast %266 : vector<32xf32> to vector<32x1xf32>
    %cst_106 = arith.constant 3.200000e+01 : f32
    %268 = vector.broadcast %cst_106 : f32 to vector<32x1xf32>
    %269 = arith.divf %267, %268 : vector<32x1xf32>
    %cst_107 = arith.constant 9.99999997E-7 : f32
    %270 = vector.broadcast %cst_107 : f32 to vector<32x1xf32>
    %271 = arith.addf %269, %270 : vector<32x1xf32>
    %272 = math.rsqrt %271 : vector<32x1xf32>
    %273 = vector.broadcast %272 : vector<32x1xf32> to vector<32x32xf32>
    %274 = arith.mulf %264, %273 : vector<32x32xf32>
    %275 = vector.broadcast %168 : vector<1x32xf32> to vector<32x32xf32>
    %276 = arith.mulf %274, %275 : vector<32x32xf32>
    %277 = vector.broadcast %170 : vector<1x32xf32> to vector<32x32xf32>
    %278 = arith.addf %276, %277 : vector<32x32xf32>
    %cst_108 = arith.constant dense<0.000000e+00> : vector<32x64xf32>
    %279 = tpu.matmul %278, %162, %cst_108 {dimension_numbers = #tpu.dot_dimension_numbers<[1], [0], [0], [1], [0, 0, 1, 1], [], []>} : vector<32x32xf32>, vector<32x64xf32>, vector<32x64xf32> -> vector<32x64xf32>
    %280 = vector.broadcast %171 : vector<1x64xf32> to vector<32x64xf32>
    %281 = arith.addf %279, %280 : vector<32x64xf32>
    %cst_109 = arith.constant 5.000000e-01 : f32
    %282 = vector.broadcast %cst_109 : f32 to vector<32x64xf32>
    %283 = arith.mulf %282, %281 : vector<32x64xf32>
    %cst_110 = arith.constant 4.471500e-02 : f32
    %284 = vector.broadcast %cst_110 : f32 to vector<32x64xf32>
    %285 = arith.mulf %284, %281 : vector<32x64xf32>
    %286 = arith.mulf %285, %281 : vector<32x64xf32>
    %287 = arith.mulf %286, %281 : vector<32x64xf32>
    %288 = arith.addf %281, %287 : vector<32x64xf32>
    %cst_111 = arith.constant 0.797884583 : f32
    %289 = vector.broadcast %cst_111 : f32 to vector<32x64xf32>
    %290 = arith.mulf %289, %288 : vector<32x64xf32>
    %291 = math.tanh %290 : vector<32x64xf32>
    %cst_112 = arith.constant 1.000000e+00 : f32
    %292 = vector.broadcast %cst_112 : f32 to vector<32x64xf32>
    %293 = arith.addf %292, %291 : vector<32x64xf32>
    %294 = arith.mulf %283, %293 : vector<32x64xf32>
    %c0_113 = arith.constant 0 : index
    %c0_114 = arith.constant 0 : index
    %c0_115 = arith.constant 0 : index
    %295 = vector.load %arg8[%c0_113, %c0_114, %c0_115] : memref<2x64x32xf32, #tpu.memory_space<vmem>>, vector<1x64x32xf32>
    %296 = vector.shape_cast %295 : vector<1x64x32xf32> to vector<64x32xf32>
    %cst_116 = arith.constant dense<0.000000e+00> : vector<32x32xf32>
    %297 = tpu.matmul %294, %296, %cst_116 {dimension_numbers = #tpu.dot_dimension_numbers<[1], [0], [0], [1], [0, 0, 1, 1], [], []>} : vector<32x64xf32>, vector<64x32xf32>, vector<32x32xf32> -> vector<32x32xf32>
    %298 = vector.broadcast %173 : vector<1x32xf32> to vector<32x32xf32>
    %299 = arith.addf %297, %298 : vector<32x32xf32>
    %300 = arith.addf %299, %278 : vector<32x32xf32>
    %cst_117 = arith.constant dense<0.000000e+00> : vector<32xf32>
    %301 = vector.multi_reduction <add>, %300, %cst_117 [1] : vector<32x32xf32> to vector<32xf32>
    %302 = vector.shape_cast %301 : vector<32xf32> to vector<32x1xf32>
    %cst_118 = arith.constant 3.200000e+01 : f32
    %303 = vector.broadcast %cst_118 : f32 to vector<32x1xf32>
    %304 = arith.divf %302, %303 : vector<32x1xf32>
    %305 = vector.broadcast %304 : vector<32x1xf32> to vector<32x32xf32>
    %306 = arith.subf %300, %305 : vector<32x32xf32>
    %307 = arith.mulf %306, %306 : vector<32x32xf32>
    %cst_119 = arith.constant dense<0.000000e+00> : vector<32xf32>
    %308 = vector.multi_reduction <add>, %307, %cst_119 [1] : vector<32x32xf32> to vector<32xf32>
    %309 = vector.shape_cast %308 : vector<32xf32> to vector<32x1xf32>
    %cst_120 = arith.constant 3.200000e+01 : f32
    %310 = vector.broadcast %cst_120 : f32 to vector<32x1xf32>
    %311 = arith.divf %309, %310 : vector<32x1xf32>
    %cst_121 = arith.constant 9.99999997E-7 : f32
    %312 = vector.broadcast %cst_121 : f32 to vector<32x1xf32>
    %313 = arith.addf %311, %312 : vector<32x1xf32>
    %314 = math.rsqrt %313 : vector<32x1xf32>
    %315 = vector.broadcast %314 : vector<32x1xf32> to vector<32x32xf32>
    %316 = arith.mulf %306, %315 : vector<32x32xf32>
    %317 = vector.broadcast %175 : vector<1x32xf32> to vector<32x32xf32>
    %318 = arith.mulf %316, %317 : vector<32x32xf32>
    %319 = vector.broadcast %177 : vector<1x32xf32> to vector<32x32xf32>
    %320 = arith.addf %318, %319 : vector<32x32xf32>
    %c1_122 = arith.constant 1 : index
    %c0_123 = arith.constant 0 : index
    %c0_124 = arith.constant 0 : index
    %321 = vector.load %arg7[%c1_122, %c0_123, %c0_124] : memref<2x32x256xf32, #tpu.memory_space<vmem>>, vector<1x32x256xf32>
    %322 = vector.shape_cast %321 : vector<1x32x256xf32> to vector<32x256xf32>
    %323 = vector.extract_strided_slice %322 {offsets = [0, 0], sizes = [32, 128], strides = [1, 1]} : vector<32x256xf32> to vector<32x128xf32>
    %324 = vector.extract_strided_slice %322 {offsets = [0, 128], sizes = [32, 64], strides = [1, 1]} : vector<32x256xf32> to vector<32x64xf32>
    %325 = vector.extract_strided_slice %322 {offsets = [0, 192], sizes = [32, 32], strides = [1, 1]} : vector<32x256xf32> to vector<32x32xf32>
    %326 = vector.extract_strided_slice %322 {offsets = [0, 224], sizes = [32, 32], strides = [1, 1]} : vector<32x256xf32> to vector<32x32xf32>
    %c16_125 = arith.constant 16 : index
    %c0_126 = arith.constant 0 : index
    %327 = vector.load %arg9[%c16_125, %c0_126] : memref<23x64xf32, #tpu.memory_space<vmem>>, vector<1x64xf32>
    %328 = vector.extract_strided_slice %327 {offsets = [0, 0], sizes = [1, 32], strides = [1, 1]} : vector<1x64xf32> to vector<1x32xf32>
    %c17 = arith.constant 17 : index
    %c0_127 = arith.constant 0 : index
    %329 = vector.load %arg9[%c17, %c0_127] : memref<23x64xf32, #tpu.memory_space<vmem>>, vector<1x64xf32>
    %330 = vector.extract_strided_slice %329 {offsets = [0, 0], sizes = [1, 32], strides = [1, 1]} : vector<1x64xf32> to vector<1x32xf32>
    %c18 = arith.constant 18 : index
    %c0_128 = arith.constant 0 : index
    %331 = vector.load %arg9[%c18, %c0_128] : memref<23x64xf32, #tpu.memory_space<vmem>>, vector<1x64xf32>
    %332 = vector.extract_strided_slice %331 {offsets = [0, 0], sizes = [1, 32], strides = [1, 1]} : vector<1x64xf32> to vector<1x32xf32>
    %c19 = arith.constant 19 : index
    %c0_129 = arith.constant 0 : index
    %333 = vector.load %arg9[%c19, %c0_129] : memref<23x64xf32, #tpu.memory_space<vmem>>, vector<1x64xf32>
    %c20 = arith.constant 20 : index
    %c0_130 = arith.constant 0 : index
    %334 = vector.load %arg9[%c20, %c0_130] : memref<23x64xf32, #tpu.memory_space<vmem>>, vector<1x64xf32>
    %335 = vector.extract_strided_slice %334 {offsets = [0, 0], sizes = [1, 32], strides = [1, 1]} : vector<1x64xf32> to vector<1x32xf32>
    %c21 = arith.constant 21 : index
    %c0_131 = arith.constant 0 : index
    %336 = vector.load %arg9[%c21, %c0_131] : memref<23x64xf32, #tpu.memory_space<vmem>>, vector<1x64xf32>
    %337 = vector.extract_strided_slice %336 {offsets = [0, 0], sizes = [1, 32], strides = [1, 1]} : vector<1x64xf32> to vector<1x32xf32>
    %c22 = arith.constant 22 : index
    %c0_132 = arith.constant 0 : index
    %338 = vector.load %arg9[%c22, %c0_132] : memref<23x64xf32, #tpu.memory_space<vmem>>, vector<1x64xf32>
    %339 = vector.extract_strided_slice %338 {offsets = [0, 0], sizes = [1, 32], strides = [1, 1]} : vector<1x64xf32> to vector<1x32xf32>
    %cst_133 = arith.constant dense<0.000000e+00> : vector<32x32xf32>
    %340 = tpu.matmul %320, %325, %cst_133 {dimension_numbers = #tpu.dot_dimension_numbers<[1], [0], [0], [1], [0, 0, 1, 1], [], []>} : vector<32x32xf32>, vector<32x32xf32>, vector<32x32xf32> -> vector<32x32xf32>
    %cst_134 = arith.constant dense<0.000000e+00> : vector<32x32xf32>
    %341 = tpu.matmul %320, %326, %cst_134 {dimension_numbers = #tpu.dot_dimension_numbers<[1], [0], [0], [1], [0, 0, 1, 1], [], []>} : vector<32x32xf32>, vector<32x32xf32>, vector<32x32xf32> -> vector<32x32xf32>
    %cst_135 = arith.constant dense<0.000000e+00> : vector<32x128xf32>
    %342 = tpu.matmul %320, %323, %cst_135 {dimension_numbers = #tpu.dot_dimension_numbers<[1], [0], [0], [1], [0, 0, 1, 1], [], []>} : vector<32x32xf32>, vector<32x128xf32>, vector<32x128xf32> -> vector<32x128xf32>
    %343 = vector.broadcast %328 : vector<1x32xf32> to vector<32x32xf32>
    %344 = arith.addf %320, %343 : vector<32x32xf32>
    %345 = vector.extract_strided_slice %340 {offsets = [0, 0], sizes = [32, 8], strides = [1, 1]} : vector<32x32xf32> to vector<32x8xf32>
    %346 = vector.extract_strided_slice %341 {offsets = [0, 0], sizes = [32, 8], strides = [1, 1]} : vector<32x32xf32> to vector<32x8xf32>
    "tpu.trace_start"() <{level = 10 : i32, message = "qd,kd->qk"}> : () -> ()
    %cst_136 = arith.constant dense<0.000000e+00> : vector<32x32xf32>
    %347 = tpu.matmul %345, %346, %cst_136 {dimension_numbers = #tpu.dot_dimension_numbers<[1], [1], [0], [0], [0, 0, 1, 0], [], []>} : vector<32x8xf32>, vector<32x8xf32>, vector<32x32xf32> -> vector<32x32xf32>
    "tpu.trace_stop"() : () -> ()
    %cst_137 = arith.constant 0.353553385 : f32
    %348 = vector.broadcast %cst_137 : f32 to vector<32x32xf32>
    %349 = arith.mulf %347, %348 : vector<32x32xf32>
    %350 = arith.addf %349, %1 : vector<32x32xf32>
    %cst_138 = arith.constant dense<0xFF800000> : vector<32xf32>
    %351 = vector.multi_reduction <maximumf>, %350, %cst_138 [1] : vector<32x32xf32> to vector<32xf32>
    %352 = vector.shape_cast %351 : vector<32xf32> to vector<32x1xf32>
    %353 = vector.broadcast %352 : vector<32x1xf32> to vector<32x32xf32>
    %354 = arith.subf %350, %353 : vector<32x32xf32>
    %355 = math.exp %354 : vector<32x32xf32>
    %cst_139 = arith.constant dense<0.000000e+00> : vector<32xf32>
    %356 = vector.multi_reduction <add>, %355, %cst_139 [1] : vector<32x32xf32> to vector<32xf32>
    %357 = vector.shape_cast %356 : vector<32xf32> to vector<32x1xf32>
    %358 = tpu.reciprocal %357 {approx = true} : vector<32x1xf32> -> vector<32x1xf32>
    %359 = vector.broadcast %358 : vector<32x1xf32> to vector<32x32xf32>
    %360 = arith.mulf %355, %359 : vector<32x32xf32>
    %361 = vector.extract_strided_slice %342 {offsets = [0, 0], sizes = [32, 32], strides = [1, 1]} : vector<32x128xf32> to vector<32x32xf32>
    %cst_140 = arith.constant dense<0.000000e+00> : vector<32x32xf32>
    %362 = tpu.matmul %360, %361, %cst_140 {dimension_numbers = #tpu.dot_dimension_numbers<[1], [0], [0], [1], [0, 0, 1, 1], [], []>} : vector<32x32xf32>, vector<32x32xf32>, vector<32x32xf32> -> vector<32x32xf32>
    %363 = arith.addf %344, %362 : vector<32x32xf32>
    %364 = vector.extract_strided_slice %340 {offsets = [0, 8], sizes = [32, 8], strides = [1, 1]} : vector<32x32xf32> to vector<32x8xf32>
    %365 = vector.extract_strided_slice %341 {offsets = [0, 8], sizes = [32, 8], strides = [1, 1]} : vector<32x32xf32> to vector<32x8xf32>
    "tpu.trace_start"() <{level = 10 : i32, message = "qd,kd->qk"}> : () -> ()
    %cst_141 = arith.constant dense<0.000000e+00> : vector<32x32xf32>
    %366 = tpu.matmul %364, %365, %cst_141 {dimension_numbers = #tpu.dot_dimension_numbers<[1], [1], [0], [0], [0, 0, 1, 0], [], []>} : vector<32x8xf32>, vector<32x8xf32>, vector<32x32xf32> -> vector<32x32xf32>
    "tpu.trace_stop"() : () -> ()
    %cst_142 = arith.constant 0.353553385 : f32
    %367 = vector.broadcast %cst_142 : f32 to vector<32x32xf32>
    %368 = arith.mulf %366, %367 : vector<32x32xf32>
    %369 = arith.addf %368, %1 : vector<32x32xf32>
    %cst_143 = arith.constant dense<0xFF800000> : vector<32xf32>
    %370 = vector.multi_reduction <maximumf>, %369, %cst_143 [1] : vector<32x32xf32> to vector<32xf32>
    %371 = vector.shape_cast %370 : vector<32xf32> to vector<32x1xf32>
    %372 = vector.broadcast %371 : vector<32x1xf32> to vector<32x32xf32>
    %373 = arith.subf %369, %372 : vector<32x32xf32>
    %374 = math.exp %373 : vector<32x32xf32>
    %cst_144 = arith.constant dense<0.000000e+00> : vector<32xf32>
    %375 = vector.multi_reduction <add>, %374, %cst_144 [1] : vector<32x32xf32> to vector<32xf32>
    %376 = vector.shape_cast %375 : vector<32xf32> to vector<32x1xf32>
    %377 = tpu.reciprocal %376 {approx = true} : vector<32x1xf32> -> vector<32x1xf32>
    %378 = vector.broadcast %377 : vector<32x1xf32> to vector<32x32xf32>
    %379 = arith.mulf %374, %378 : vector<32x32xf32>
    %380 = vector.extract_strided_slice %342 {offsets = [0, 32], sizes = [32, 32], strides = [1, 1]} : vector<32x128xf32> to vector<32x32xf32>
    %cst_145 = arith.constant dense<0.000000e+00> : vector<32x32xf32>
    %381 = tpu.matmul %379, %380, %cst_145 {dimension_numbers = #tpu.dot_dimension_numbers<[1], [0], [0], [1], [0, 0, 1, 1], [], []>} : vector<32x32xf32>, vector<32x32xf32>, vector<32x32xf32> -> vector<32x32xf32>
    %382 = arith.addf %363, %381 : vector<32x32xf32>
    %383 = vector.extract_strided_slice %340 {offsets = [0, 16], sizes = [32, 8], strides = [1, 1]} : vector<32x32xf32> to vector<32x8xf32>
    %384 = vector.extract_strided_slice %341 {offsets = [0, 16], sizes = [32, 8], strides = [1, 1]} : vector<32x32xf32> to vector<32x8xf32>
    "tpu.trace_start"() <{level = 10 : i32, message = "qd,kd->qk"}> : () -> ()
    %cst_146 = arith.constant dense<0.000000e+00> : vector<32x32xf32>
    %385 = tpu.matmul %383, %384, %cst_146 {dimension_numbers = #tpu.dot_dimension_numbers<[1], [1], [0], [0], [0, 0, 1, 0], [], []>} : vector<32x8xf32>, vector<32x8xf32>, vector<32x32xf32> -> vector<32x32xf32>
    "tpu.trace_stop"() : () -> ()
    %cst_147 = arith.constant 0.353553385 : f32
    %386 = vector.broadcast %cst_147 : f32 to vector<32x32xf32>
    %387 = arith.mulf %385, %386 : vector<32x32xf32>
    %388 = arith.addf %387, %1 : vector<32x32xf32>
    %cst_148 = arith.constant dense<0xFF800000> : vector<32xf32>
    %389 = vector.multi_reduction <maximumf>, %388, %cst_148 [1] : vector<32x32xf32> to vector<32xf32>
    %390 = vector.shape_cast %389 : vector<32xf32> to vector<32x1xf32>
    %391 = vector.broadcast %390 : vector<32x1xf32> to vector<32x32xf32>
    %392 = arith.subf %388, %391 : vector<32x32xf32>
    %393 = math.exp %392 : vector<32x32xf32>
    %cst_149 = arith.constant dense<0.000000e+00> : vector<32xf32>
    %394 = vector.multi_reduction <add>, %393, %cst_149 [1] : vector<32x32xf32> to vector<32xf32>
    %395 = vector.shape_cast %394 : vector<32xf32> to vector<32x1xf32>
    %396 = tpu.reciprocal %395 {approx = true} : vector<32x1xf32> -> vector<32x1xf32>
    %397 = vector.broadcast %396 : vector<32x1xf32> to vector<32x32xf32>
    %398 = arith.mulf %393, %397 : vector<32x32xf32>
    %399 = vector.extract_strided_slice %342 {offsets = [0, 64], sizes = [32, 32], strides = [1, 1]} : vector<32x128xf32> to vector<32x32xf32>
    %cst_150 = arith.constant dense<0.000000e+00> : vector<32x32xf32>
    %400 = tpu.matmul %398, %399, %cst_150 {dimension_numbers = #tpu.dot_dimension_numbers<[1], [0], [0], [1], [0, 0, 1, 1], [], []>} : vector<32x32xf32>, vector<32x32xf32>, vector<32x32xf32> -> vector<32x32xf32>
    %401 = arith.addf %382, %400 : vector<32x32xf32>
    %402 = vector.extract_strided_slice %340 {offsets = [0, 24], sizes = [32, 8], strides = [1, 1]} : vector<32x32xf32> to vector<32x8xf32>
    %403 = vector.extract_strided_slice %341 {offsets = [0, 24], sizes = [32, 8], strides = [1, 1]} : vector<32x32xf32> to vector<32x8xf32>
    "tpu.trace_start"() <{level = 10 : i32, message = "qd,kd->qk"}> : () -> ()
    %cst_151 = arith.constant dense<0.000000e+00> : vector<32x32xf32>
    %404 = tpu.matmul %402, %403, %cst_151 {dimension_numbers = #tpu.dot_dimension_numbers<[1], [1], [0], [0], [0, 0, 1, 0], [], []>} : vector<32x8xf32>, vector<32x8xf32>, vector<32x32xf32> -> vector<32x32xf32>
    "tpu.trace_stop"() : () -> ()
    %cst_152 = arith.constant 0.353553385 : f32
    %405 = vector.broadcast %cst_152 : f32 to vector<32x32xf32>
    %406 = arith.mulf %404, %405 : vector<32x32xf32>
    %407 = arith.addf %406, %1 : vector<32x32xf32>
    %cst_153 = arith.constant dense<0xFF800000> : vector<32xf32>
    %408 = vector.multi_reduction <maximumf>, %407, %cst_153 [1] : vector<32x32xf32> to vector<32xf32>
    %409 = vector.shape_cast %408 : vector<32xf32> to vector<32x1xf32>
    %410 = vector.broadcast %409 : vector<32x1xf32> to vector<32x32xf32>
    %411 = arith.subf %407, %410 : vector<32x32xf32>
    %412 = math.exp %411 : vector<32x32xf32>
    %cst_154 = arith.constant dense<0.000000e+00> : vector<32xf32>
    %413 = vector.multi_reduction <add>, %412, %cst_154 [1] : vector<32x32xf32> to vector<32xf32>
    %414 = vector.shape_cast %413 : vector<32xf32> to vector<32x1xf32>
    %415 = tpu.reciprocal %414 {approx = true} : vector<32x1xf32> -> vector<32x1xf32>
    %416 = vector.broadcast %415 : vector<32x1xf32> to vector<32x32xf32>
    %417 = arith.mulf %412, %416 : vector<32x32xf32>
    %418 = vector.extract_strided_slice %342 {offsets = [0, 96], sizes = [32, 32], strides = [1, 1]} : vector<32x128xf32> to vector<32x32xf32>
    %cst_155 = arith.constant dense<0.000000e+00> : vector<32x32xf32>
    %419 = tpu.matmul %417, %418, %cst_155 {dimension_numbers = #tpu.dot_dimension_numbers<[1], [0], [0], [1], [0, 0, 1, 1], [], []>} : vector<32x32xf32>, vector<32x32xf32>, vector<32x32xf32> -> vector<32x32xf32>
    %420 = arith.addf %401, %419 : vector<32x32xf32>
    %cst_156 = arith.constant dense<0.000000e+00> : vector<32xf32>
    %421 = vector.multi_reduction <add>, %420, %cst_156 [1] : vector<32x32xf32> to vector<32xf32>
    %422 = vector.shape_cast %421 : vector<32xf32> to vector<32x1xf32>
    %cst_157 = arith.constant 3.200000e+01 : f32
    %423 = vector.broadcast %cst_157 : f32 to vector<32x1xf32>
    %424 = arith.divf %422, %423 : vector<32x1xf32>
    %425 = vector.broadcast %424 : vector<32x1xf32> to vector<32x32xf32>
    %426 = arith.subf %420, %425 : vector<32x32xf32>
    %427 = arith.mulf %426, %426 : vector<32x32xf32>
    %cst_158 = arith.constant dense<0.000000e+00> : vector<32xf32>
    %428 = vector.multi_reduction <add>, %427, %cst_158 [1] : vector<32x32xf32> to vector<32xf32>
    %429 = vector.shape_cast %428 : vector<32xf32> to vector<32x1xf32>
    %cst_159 = arith.constant 3.200000e+01 : f32
    %430 = vector.broadcast %cst_159 : f32 to vector<32x1xf32>
    %431 = arith.divf %429, %430 : vector<32x1xf32>
    %cst_160 = arith.constant 9.99999997E-7 : f32
    %432 = vector.broadcast %cst_160 : f32 to vector<32x1xf32>
    %433 = arith.addf %431, %432 : vector<32x1xf32>
    %434 = math.rsqrt %433 : vector<32x1xf32>
    %435 = vector.broadcast %434 : vector<32x1xf32> to vector<32x32xf32>
    %436 = arith.mulf %426, %435 : vector<32x32xf32>
    %437 = vector.broadcast %330 : vector<1x32xf32> to vector<32x32xf32>
    %438 = arith.mulf %436, %437 : vector<32x32xf32>
    %439 = vector.broadcast %332 : vector<1x32xf32> to vector<32x32xf32>
    %440 = arith.addf %438, %439 : vector<32x32xf32>
    %cst_161 = arith.constant dense<0.000000e+00> : vector<32x64xf32>
    %441 = tpu.matmul %440, %324, %cst_161 {dimension_numbers = #tpu.dot_dimension_numbers<[1], [0], [0], [1], [0, 0, 1, 1], [], []>} : vector<32x32xf32>, vector<32x64xf32>, vector<32x64xf32> -> vector<32x64xf32>
    %442 = vector.broadcast %333 : vector<1x64xf32> to vector<32x64xf32>
    %443 = arith.addf %441, %442 : vector<32x64xf32>
    %cst_162 = arith.constant 5.000000e-01 : f32
    %444 = vector.broadcast %cst_162 : f32 to vector<32x64xf32>
    %445 = arith.mulf %444, %443 : vector<32x64xf32>
    %cst_163 = arith.constant 4.471500e-02 : f32
    %446 = vector.broadcast %cst_163 : f32 to vector<32x64xf32>
    %447 = arith.mulf %446, %443 : vector<32x64xf32>
    %448 = arith.mulf %447, %443 : vector<32x64xf32>
    %449 = arith.mulf %448, %443 : vector<32x64xf32>
    %450 = arith.addf %443, %449 : vector<32x64xf32>
    %cst_164 = arith.constant 0.797884583 : f32
    %451 = vector.broadcast %cst_164 : f32 to vector<32x64xf32>
    %452 = arith.mulf %451, %450 : vector<32x64xf32>
    %453 = math.tanh %452 : vector<32x64xf32>
    %cst_165 = arith.constant 1.000000e+00 : f32
    %454 = vector.broadcast %cst_165 : f32 to vector<32x64xf32>
    %455 = arith.addf %454, %453 : vector<32x64xf32>
    %456 = arith.mulf %445, %455 : vector<32x64xf32>
    %c1_166 = arith.constant 1 : index
    %c0_167 = arith.constant 0 : index
    %c0_168 = arith.constant 0 : index
    %457 = vector.load %arg8[%c1_166, %c0_167, %c0_168] : memref<2x64x32xf32, #tpu.memory_space<vmem>>, vector<1x64x32xf32>
    %458 = vector.shape_cast %457 : vector<1x64x32xf32> to vector<64x32xf32>
    %cst_169 = arith.constant dense<0.000000e+00> : vector<32x32xf32>
    %459 = tpu.matmul %456, %458, %cst_169 {dimension_numbers = #tpu.dot_dimension_numbers<[1], [0], [0], [1], [0, 0, 1, 1], [], []>} : vector<32x64xf32>, vector<64x32xf32>, vector<32x32xf32> -> vector<32x32xf32>
    %460 = vector.broadcast %335 : vector<1x32xf32> to vector<32x32xf32>
    %461 = arith.addf %459, %460 : vector<32x32xf32>
    %462 = arith.addf %461, %440 : vector<32x32xf32>
    %cst_170 = arith.constant dense<0.000000e+00> : vector<32xf32>
    %463 = vector.multi_reduction <add>, %462, %cst_170 [1] : vector<32x32xf32> to vector<32xf32>
    %464 = vector.shape_cast %463 : vector<32xf32> to vector<32x1xf32>
    %cst_171 = arith.constant 3.200000e+01 : f32
    %465 = vector.broadcast %cst_171 : f32 to vector<32x1xf32>
    %466 = arith.divf %464, %465 : vector<32x1xf32>
    %467 = vector.broadcast %466 : vector<32x1xf32> to vector<32x32xf32>
    %468 = arith.subf %462, %467 : vector<32x32xf32>
    %469 = arith.mulf %468, %468 : vector<32x32xf32>
    %cst_172 = arith.constant dense<0.000000e+00> : vector<32xf32>
    %470 = vector.multi_reduction <add>, %469, %cst_172 [1] : vector<32x32xf32> to vector<32xf32>
    %471 = vector.shape_cast %470 : vector<32xf32> to vector<32x1xf32>
    %cst_173 = arith.constant 3.200000e+01 : f32
    %472 = vector.broadcast %cst_173 : f32 to vector<32x1xf32>
    %473 = arith.divf %471, %472 : vector<32x1xf32>
    %cst_174 = arith.constant 9.99999997E-7 : f32
    %474 = vector.broadcast %cst_174 : f32 to vector<32x1xf32>
    %475 = arith.addf %473, %474 : vector<32x1xf32>
    %476 = math.rsqrt %475 : vector<32x1xf32>
    %477 = vector.broadcast %476 : vector<32x1xf32> to vector<32x32xf32>
    %478 = arith.mulf %468, %477 : vector<32x32xf32>
    %479 = vector.broadcast %337 : vector<1x32xf32> to vector<32x32xf32>
    %480 = arith.mulf %478, %479 : vector<32x32xf32>
    %481 = vector.broadcast %339 : vector<1x32xf32> to vector<32x32xf32>
    %482 = arith.addf %480, %481 : vector<32x32xf32>
    %c48_175 = arith.constant 48 : index
    %c0_176 = arith.constant 0 : index
    %483 = vector.load %arg3[%c48_175, %c0_176] : memref<240x32xf32, #tpu.memory_space<vmem>>, vector<16x32xf32>
    %cst_177 = arith.constant dense<0.000000e+00> : vector<16x32xf32>
    %484 = tpu.matmul %483, %482, %cst_177 {dimension_numbers = #tpu.dot_dimension_numbers<[1], [0], [0], [1], [0, 0, 1, 1], [], []>} : vector<16x32xf32>, vector<32x32xf32>, vector<16x32xf32> -> vector<16x32xf32>
    %c0_178 = arith.constant 0 : index
    %c0_179 = arith.constant 0 : index
    %c0_180 = arith.constant 0 : index
    %485 = vector.load %arg4[%c0_178, %c0_179, %c0_180] : memref<4x32x128xf32, #tpu.memory_space<vmem>>, vector<1x32x128xf32>
    %486 = vector.shape_cast %485 : vector<1x32x128xf32> to vector<32x128xf32>
    %cst_181 = arith.constant dense<0.000000e+00> : vector<16x128xf32>
    %487 = tpu.matmul %484, %486, %cst_181 {dimension_numbers = #tpu.dot_dimension_numbers<[1], [0], [0], [1], [0, 0, 1, 1], [], []>} : vector<16x32xf32>, vector<32x128xf32>, vector<16x128xf32> -> vector<16x128xf32>
    %c64_182 = arith.constant 64 : index
    %c0_183 = arith.constant 0 : index
    %488 = vector.load %arg3[%c64_182, %c0_183] : memref<240x32xf32, #tpu.memory_space<vmem>>, vector<16x32xf32>
    %cst_184 = arith.constant dense<0.000000e+00> : vector<16x32xf32>
    %489 = tpu.matmul %488, %482, %cst_184 {dimension_numbers = #tpu.dot_dimension_numbers<[1], [0], [0], [1], [0, 0, 1, 1], [], []>} : vector<16x32xf32>, vector<32x32xf32>, vector<16x32xf32> -> vector<16x32xf32>
    %c1_185 = arith.constant 1 : index
    %c0_186 = arith.constant 0 : index
    %c0_187 = arith.constant 0 : index
    %490 = vector.load %arg4[%c1_185, %c0_186, %c0_187] : memref<4x32x128xf32, #tpu.memory_space<vmem>>, vector<1x32x128xf32>
    %491 = vector.shape_cast %490 : vector<1x32x128xf32> to vector<32x128xf32>
    %cst_188 = arith.constant dense<0.000000e+00> : vector<16x128xf32>
    %492 = tpu.matmul %489, %491, %cst_188 {dimension_numbers = #tpu.dot_dimension_numbers<[1], [0], [0], [1], [0, 0, 1, 1], [], []>} : vector<16x32xf32>, vector<32x128xf32>, vector<16x128xf32> -> vector<16x128xf32>
    %493 = arith.addf %487, %492 : vector<16x128xf32>
    %c80_189 = arith.constant 80 : index
    %c0_190 = arith.constant 0 : index
    %494 = vector.load %arg3[%c80_189, %c0_190] : memref<240x32xf32, #tpu.memory_space<vmem>>, vector<16x32xf32>
    %cst_191 = arith.constant dense<0.000000e+00> : vector<16x32xf32>
    %495 = tpu.matmul %494, %482, %cst_191 {dimension_numbers = #tpu.dot_dimension_numbers<[1], [0], [0], [1], [0, 0, 1, 1], [], []>} : vector<16x32xf32>, vector<32x32xf32>, vector<16x32xf32> -> vector<16x32xf32>
    %c2_192 = arith.constant 2 : index
    %c0_193 = arith.constant 0 : index
    %c0_194 = arith.constant 0 : index
    %496 = vector.load %arg4[%c2_192, %c0_193, %c0_194] : memref<4x32x128xf32, #tpu.memory_space<vmem>>, vector<1x32x128xf32>
    %497 = vector.shape_cast %496 : vector<1x32x128xf32> to vector<32x128xf32>
    %cst_195 = arith.constant dense<0.000000e+00> : vector<16x128xf32>
    %498 = tpu.matmul %495, %497, %cst_195 {dimension_numbers = #tpu.dot_dimension_numbers<[1], [0], [0], [1], [0, 0, 1, 1], [], []>} : vector<16x32xf32>, vector<32x128xf32>, vector<16x128xf32> -> vector<16x128xf32>
    %499 = arith.addf %493, %498 : vector<16x128xf32>
    %c96 = arith.constant 96 : index
    %c0_196 = arith.constant 0 : index
    %500 = vector.load %arg3[%c96, %c0_196] : memref<240x32xf32, #tpu.memory_space<vmem>>, vector<16x32xf32>
    %cst_197 = arith.constant dense<0.000000e+00> : vector<16x32xf32>
    %501 = tpu.matmul %500, %482, %cst_197 {dimension_numbers = #tpu.dot_dimension_numbers<[1], [0], [0], [1], [0, 0, 1, 1], [], []>} : vector<16x32xf32>, vector<32x32xf32>, vector<16x32xf32> -> vector<16x32xf32>
    %c3_198 = arith.constant 3 : index
    %c0_199 = arith.constant 0 : index
    %c0_200 = arith.constant 0 : index
    %502 = vector.load %arg4[%c3_198, %c0_199, %c0_200] : memref<4x32x128xf32, #tpu.memory_space<vmem>>, vector<1x32x128xf32>
    %503 = vector.shape_cast %502 : vector<1x32x128xf32> to vector<32x128xf32>
    %cst_201 = arith.constant dense<0.000000e+00> : vector<16x128xf32>
    %504 = tpu.matmul %501, %503, %cst_201 {dimension_numbers = #tpu.dot_dimension_numbers<[1], [0], [0], [1], [0, 0, 1, 1], [], []>} : vector<16x32xf32>, vector<32x128xf32>, vector<16x128xf32> -> vector<16x128xf32>
    %505 = arith.addf %499, %504 : vector<16x128xf32>
    %c0_202 = arith.constant 0 : index
    %c0_203 = arith.constant 0 : index
    %c0_204 = arith.constant 0 : index
    %506 = vector.load %arg10[%c0_202, %c0_203, %c0_204] : memref<1x16x128xf32, #tpu.memory_space<vmem>>, vector<1x16x128xf32>
    %507 = vector.shape_cast %506 : vector<1x16x128xf32> to vector<16x128xf32>
    %508 = vector.shape_cast %505 : vector<16x128xf32> to vector<1x16x128xf32>
    tpu.vector_store %arg10[%c0_202, %c0_203, %c0_204], %508 {strides = array<i32>} : memref<1x16x128xf32, #tpu.memory_space<vmem>>, vector<1x16x128xf32>,
    return
  }
  func.func @transform_0(%arg0: i32) -> (i32, i32, i32) {
    %c0_i32 = arith.constant 0 : i32
    %c0_i32_0 = arith.constant 0 : i32
    %c0_i32_1 = arith.constant 0 : i32
    return %arg0, %c0_i32, %c0_i32_0 : i32, i32, i32
  }
  func.func @transform_1(%arg0: i32) -> (i32, i32, i32) {
    %c0_i32 = arith.constant 0 : i32
    %c0_i32_0 = arith.constant 0 : i32
    %c0_i32_1 = arith.constant 0 : i32
    return %arg0, %c0_i32, %c0_i32_0 : i32, i32, i32
  }
  func.func @transform_2(%arg0: i32) -> (i32, i32) {
    %c0_i32 = arith.constant 0 : i32
    %c0_i32_0 = arith.constant 0 : i32
    %c0_i32_1 = arith.constant 0 : i32
    return %c0_i32, %c0_i32_0 : i32, i32
  }
  func.func @transform_3(%arg0: i32) -> (i32, i32, i32) {
    %c0_i32 = arith.constant 0 : i32
    %c0_i32_0 = arith.constant 0 : i32
    %c0_i32_1 = arith.constant 0 : i32
    %c0_i32_2 = arith.constant 0 : i32
    return %c0_i32, %c0_i32_0, %c0_i32_1 : i32, i32, i32
  }
  func.func @transform_4(%arg0: i32) -> (i32, i32) {
    %c0_i32 = arith.constant 0 : i32
    %c0_i32_0 = arith.constant 0 : i32
    %c0_i32_1 = arith.constant 0 : i32
    return %c0_i32, %c0_i32_0 : i32, i32
  }
  func.func @transform_5(%arg0: i32) -> (i32, i32) {
    %c0_i32 = arith.constant 0 : i32
    %c0_i32_0 = arith.constant 0 : i32
    %c0_i32_1 = arith.constant 0 : i32
    return %c0_i32, %c0_i32_0 : i32, i32
  }
  func.func @transform_6(%arg0: i32) -> (i32, i32, i32) {
    %c0_i32 = arith.constant 0 : i32
    %c0_i32_0 = arith.constant 0 : i32
    %c0_i32_1 = arith.constant 0 : i32
    %c0_i32_2 = arith.constant 0 : i32
    return %c0_i32, %c0_i32_0, %c0_i32_1 : i32, i32, i32
  }
  func.func @transform_7(%arg0: i32) -> (i32, i32, i32) {
    %c0_i32 = arith.constant 0 : i32
    %c0_i32_0 = arith.constant 0 : i32
    %c0_i32_1 = arith.constant 0 : i32
    %c0_i32_2 = arith.constant 0 : i32
    return %c0_i32, %c0_i32_0, %c0_i32_1 : i32, i32, i32
  }
  func.func @transform_8(%arg0: i32) -> (i32, i32) {
    %c0_i32 = arith.constant 0 : i32
    %c0_i32_0 = arith.constant 0 : i32
    %c0_i32_1 = arith.constant 0 : i32
    return %c0_i32, %c0_i32_0 : i32, i32
  }
  func.func @transform_9(%arg0: i32) -> (i32, i32, i32) {
    %c0_i32 = arith.constant 0 : i32
    %c0_i32_0 = arith.constant 0 : i32
    %c0_i32_1 = arith.constant 0 : i32
    return %arg0, %c0_i32, %c0_i32_0 : i32, i32, i32
  }
}

</mosaic_0001>

<llo_original>
// kernel: _lambda_.1
$region0: #{_lambda_.1}
  #allocation0 [shape = 'u32[]', space=smem, size = 0x4, offset = 0x4, fixed_abs, tag = 'smem constant byte address 0x4 - core index']
  #allocation1 [shape = 'u32[72,128]{1,0:T(1,128)}', space=vmem, size = 0x9000, scoped, tag = 'internal scratch']
  %s0 = inlined_call_operand.vmem [shape: f32[2,16,5], index: 0, kind: input, shape index: {}]
  %s1 = inlined_call_operand.vmem [shape: f32[2,16,3], index: 1, kind: input, shape index: {}]
  %s2 = inlined_call_operand.vmem [shape: f32[240,32], index: 2, kind: input, shape index: {}]
  %s3 = inlined_call_operand.hbm [shape: f32[4,32,128], index: 3, kind: input, shape index: {}]
  %s4 = inlined_call_operand.vmem [shape: f32[3,64], index: 4, kind: input, shape index: {}]
  %s5 = inlined_call_operand.vmem [shape: f32[96,32], index: 5, kind: input, shape index: {}]
  %s6 = inlined_call_operand.hbm [shape: f32[2,32,256], index: 6, kind: input, shape index: {}]
  %s7 = inlined_call_operand.vmem [shape: f32[2,64,32], index: 7, kind: input, shape index: {}]
  %s8 = inlined_call_operand.vmem [shape: f32[23,64], index: 8, kind: input, shape index: {}]
  %s9 = inlined_call_operand.hbm [shape: f32[2,16,128], index: 9, kind: output, shape index: {}]
  %s10 = sld [smem:[#allocation0]]
  $region77: #{_lambda_.1} parent=0
    _
  %s12 = ssub.s32 1, %s10
  %s13 = scalar_select 0, %s12, %s10
  $region1: #{_lambda_.1} parent=0
    #allocation2 [shape = 'u8[65536]{0}', space=vmem, size = 0x10000, scoped, tag = 'input window, operand 3, single buffered']
    #allocation3 [shape = 's32[2]{0}', space=sflag, size = 0x8, scoped, tag = 'scoped memory for _lambda_.1']
    #allocation4 [shape = 's32[2]{0}', space=sflag, size = 0x8, scoped, tag = 'scoped memory for _lambda_.1']
    #allocation5 [shape = 'u8[65536]{0}', space=vmem, size = 0x10000, scoped, tag = 'input window, operand 6, single buffered']
    #allocation6 [shape = 's32[1]{0}', space=sflag, size = 0x4, scoped, tag = 'scoped memory for _lambda_.1']
    #allocation7 [shape = 'u8[16384]{0}', space=vmem, size = 0x4000, scoped, tag = 'output window, operand 0']
    %14 = vsyncpa [#allocation3], 0
    %15 = vsyncpa [#allocation6], 0
    %16 = vsyncpa [#allocation4], 0
    %s17 = scalar_lea.sflag [#allocation4], 1
    %18 = vsyncpa %s17, 0
    loop: start=0, step=1, limit=4
    $region2: #{_lambda_.1} parent=1 // loop_pre_header
      _
    $region3: #{_lambda_.1} parent=1 // loop_header
      %s20 = sphi 0, %s24
      %p21 = scmp.ge.s32.totalorder %s20, 4
      %s30 = sphi 0, %s32
      %s33 = sphi 0, %s30
      %s34 = sphi 0, %s33
      %s50 = sphi 0, %s34
      %s56 = sphi 0, %s58
      %s59 = sphi 0, %s56
      %s60 = sphi 0, %s59
      %s76 = sphi 0, %s60
      %s80 = sphi 0, %s80
      %s82 = sphi 0, %s80
      %s83 = sphi 0, %s82
      %s97 = sphi 0, %s83
      %s101 = sphi 0, %s101
      %s103 = sphi 0, %s101
      %s104 = sphi 0, %s103
      %s118 = sphi 0, %s104
      %s122 = sphi 0, %s122
      %s124 = sphi 0, %s122
      %s125 = sphi 0, %s124
      %s139 = sphi 0, %s125
      %s143 = sphi 0, %s143
      %s145 = sphi 0, %s143
      %s146 = sphi 0, %s145
      %s160 = sphi 0, %s146
      %s164 = sphi 0, %s164
      %s166 = sphi 0, %s164
      %s167 = sphi 0, %s166
      %s181 = sphi 0, %s167
      %s185 = sphi 0, %s185
      %s187 = sphi 0, %s185
      %s188 = sphi 0, %s187
      %s202 = sphi 0, %s188
      %s206 = sphi 0, %s206
      %s208 = sphi 0, %s206
      %s209 = sphi 0, %s208
      %s223 = sphi 0, %s209
      %s229 = sphi 0, %s231
      %s232 = sphi 0, %s229
      %s233 = sphi 0, %s232
      %s249 = sphi 0, %s233
    $region4: #{_lambda_.1} parent=1 // loop_header_branch
      %23 = sbr.rel (%p21) target = $region8
    $region5: #{_lambda_.1} parent=1 // loop_body
      %s25 = ssub.s32 %s20, 1
      %s26 = ssub.s32 %s20, 2
      %s27 = sadd.s32 %s20, 1
      %s28 = ssub.s32 %s20, %s27
      %p29 = scmp.eq.s32.totalorder %s28, 0
      %s31 = sadd.s32 %s30, 1
      %s32 = scalar_select %p29, %s30, %s31
      %p35 = pneg %p29
      %p36 = scmp.eq.s32.totalorder %s20, 1
      %p37 = por %p35, %p36
      %p38 = scmp.ne.s32.totalorder %s30, %s33
      %p39 = scmp.eq.s32.totalorder %s20, 0
      %p40 = por %p38, %p39
      %p41 = scmp.ne.s32.totalorder %s30, %s33
      %p42 = scmp.eq.s32.totalorder %s25, 1
      %p43 = por %p41, %p42
      %p44 = scmp.ne.s32.totalorder %s33, %s34
      %p45 = scmp.eq.s32.totalorder %s25, 0
      %p46 = por %p44, %p45
      %p47 = scmp.ne.s32.totalorder %s33, %s34
      %p48 = scmp.eq.s32.totalorder %s26, 1
      %p49 = por %p47, %p48
      %p51 = scmp.ne.s32.totalorder %s34, %s50
      %p52 = scmp.eq.s32.totalorder %s26, 0
      %p53 = por %p51, %p52
      %s54 = ssub.s32 %s20, %s27
      %p55 = scmp.eq.s32.totalorder %s54, 0
      %s57 = sadd.s32 %s56, 1
      %s58 = scalar_select %p55, %s56, %s57
      %p61 = pneg %p55
      %p62 = scmp.eq.s32.totalorder %s20, 1
      %p63 = por %p61, %p62
      %p64 = scmp.ne.s32.totalorder %s56, %s59
      %p65 = scmp.eq.s32.totalorder %s20, 0
      %p66 = por %p64, %p65
      %p67 = scmp.ne.s32.totalorder %s56, %s59
      %p68 = scmp.eq.s32.totalorder %s25, 1
      %p69 = por %p67, %p68
      %p70 = scmp.ne.s32.totalorder %s59, %s60
      %p71 = scmp.eq.s32.totalorder %s25, 0
      %p72 = por %p70, %p71
      %p73 = scmp.ne.s32.totalorder %s59, %s60
      %p74 = scmp.eq.s32.totalorder %s26, 1
      %p75 = por %p73, %p74
      %p77 = scmp.ne.s32.totalorder %s60, %s76
      %p78 = scmp.eq.s32.totalorder %s26, 0
      %p79 = por %p77, %p78
      %s81 = sadd.s32 %s80, 1
      %p84 = scmp.eq.s32.totalorder %s20, 1
      %p85 = scmp.ne.s32.totalorder %s80, %s82
      %p86 = scmp.eq.s32.totalorder %s20, 0
      %p87 = por %p85, %p86
      %p88 = scmp.ne.s32.totalorder %s80, %s82
      %p89 = scmp.eq.s32.totalorder %s25, 1
      %p90 = por %p88, %p89
      %p91 = scmp.ne.s32.totalorder %s82, %s83
      %p92 = scmp.eq.s32.totalorder %s25, 0
      %p93 = por %p91, %p92
      %p94 = scmp.ne.s32.totalorder %s82, %s83
      %p95 = scmp.eq.s32.totalorder %s26, 1
      %p96 = por %p94, %p95
      %p98 = scmp.ne.s32.totalorder %s83, %s97
      %p99 = scmp.eq.s32.totalorder %s26, 0
      %p100 = por %p98, %p99
      %s102 = sadd.s32 %s101, 1
      %p105 = scmp.eq.s32.totalorder %s20, 1
      %p106 = scmp.ne.s32.totalorder %s101, %s103
      %p107 = scmp.eq.s32.totalorder %s20, 0
      %p108 = por %p106, %p107
      %p109 = scmp.ne.s32.totalorder %s101, %s103
      %p110 = scmp.eq.s32.totalorder %s25, 1
      %p111 = por %p109, %p110
      %p112 = scmp.ne.s32.totalorder %s103, %s104
      %p113 = scmp.eq.s32.totalorder %s25, 0
      %p114 = por %p112, %p113
      %p115 = scmp.ne.s32.totalorder %s103, %s104
      %p116 = scmp.eq.s32.totalorder %s26, 1
      %p117 = por %p115, %p116
      %p119 = scmp.ne.s32.totalorder %s104, %s118
      %p120 = scmp.eq.s32.totalorder %s26, 0
      %p121 = por %p119, %p120
      %s123 = sadd.s32 %s122, 1
      %p126 = scmp.eq.s32.totalorder %s20, 1
      %p127 = scmp.ne.s32.totalorder %s122, %s124
      %p128 = scmp.eq.s32.totalorder %s20, 0
      %p129 = por %p127, %p128
      %p130 = scmp.ne.s32.totalorder %s122, %s124
      %p131 = scmp.eq.s32.totalorder %s25, 1
      %p132 = por %p130, %p131
      %p133 = scmp.ne.s32.totalorder %s124, %s125
      %p134 = scmp.eq.s32.totalorder %s25, 0
      %p135 = por %p133, %p134
      %p136 = scmp.ne.s32.totalorder %s124, %s125
      %p137 = scmp.eq.s32.totalorder %s26, 1
      %p138 = por %p136, %p137
      %p140 = scmp.ne.s32.totalorder %s125, %s139
      %p141 = scmp.eq.s32.totalorder %s26, 0
      %p142 = por %p140, %p141
      %s144 = sadd.s32 %s143, 1
      %p147 = scmp.eq.s32.totalorder %s20, 1
      %p148 = scmp.ne.s32.totalorder %s143, %s145
      %p149 = scmp.eq.s32.totalorder %s20, 0
      %p150 = por %p148, %p149
      %p151 = scmp.ne.s32.totalorder %s143, %s145
      %p152 = scmp.eq.s32.totalorder %s25, 1
      %p153 = por %p151, %p152
      %p154 = scmp.ne.s32.totalorder %s145, %s146
      %p155 = scmp.eq.s32.totalorder %s25, 0
      %p156 = por %p154, %p155
      %p157 = scmp.ne.s32.totalorder %s145, %s146
      %p158 = scmp.eq.s32.totalorder %s26, 1
      %p159 = por %p157, %p158
      %p161 = scmp.ne.s32.totalorder %s146, %s160
      %p162 = scmp.eq.s32.totalorder %s26, 0
      %p163 = por %p161, %p162
      %s165 = sadd.s32 %s164, 1
      %p168 = scmp.eq.s32.totalorder %s20, 1
      %p169 = scmp.ne.s32.totalorder %s164, %s166
      %p170 = scmp.eq.s32.totalorder %s20, 0
      %p171 = por %p169, %p170
      %p172 = scmp.ne.s32.totalorder %s164, %s166
      %p173 = scmp.eq.s32.totalorder %s25, 1
      %p174 = por %p172, %p173
      %p175 = scmp.ne.s32.totalorder %s166, %s167
      %p176 = scmp.eq.s32.totalorder %s25, 0
      %p177 = por %p175, %p176
      %p178 = scmp.ne.s32.totalorder %s166, %s167
      %p179 = scmp.eq.s32.totalorder %s26, 1
      %p180 = por %p178, %p179
      %p182 = scmp.ne.s32.totalorder %s167, %s181
      %p183 = scmp.eq.s32.totalorder %s26, 0
      %p184 = por %p182, %p183
      %s186 = sadd.s32 %s185, 1
      %p189 = scmp.eq.s32.totalorder %s20, 1
      %p190 = scmp.ne.s32.totalorder %s185, %s187
      %p191 = scmp.eq.s32.totalorder %s20, 0
      %p192 = por %p190, %p191
      %p193 = scmp.ne.s32.totalorder %s185, %s187
      %p194 = scmp.eq.s32.totalorder %s25, 1
      %p195 = por %p193, %p194
      %p196 = scmp.ne.s32.totalorder %s187, %s188
      %p197 = scmp.eq.s32.totalorder %s25, 0
      %p198 = por %p196, %p197
      %p199 = scmp.ne.s32.totalorder %s187, %s188
      %p200 = scmp.eq.s32.totalorder %s26, 1
      %p201 = por %p199, %p200
      %p203 = scmp.ne.s32.totalorder %s188, %s202
      %p204 = scmp.eq.s32.totalorder %s26, 0
      %p205 = por %p203, %p204
      %s207 = sadd.s32 %s206, 1
      %p210 = scmp.eq.s32.totalorder %s20, 1
      %p211 = scmp.ne.s32.totalorder %s206, %s208
      %p212 = scmp.eq.s32.totalorder %s20, 0
      %p213 = por %p211, %p212
      %p214 = scmp.ne.s32.totalorder %s206, %s208
      %p215 = scmp.eq.s32.totalorder %s25, 1
      %p216 = por %p214, %p215
      %p217 = scmp.ne.s32.totalorder %s208, %s209
      %p218 = scmp.eq.s32.totalorder %s25, 0
      %p219 = por %p217, %p218
      %p220 = scmp.ne.s32.totalorder %s208, %s209
      %p221 = scmp.eq.s32.totalorder %s26, 1
      %p222 = por %p220, %p221
      %p224 = scmp.ne.s32.totalorder %s209, %s223
      %p225 = scmp.eq.s32.totalorder %s26, 0
      %p226 = por %p224, %p225
      %s227 = ssub.s32 %s20, %s27
      %p228 = scmp.eq.s32.totalorder %s227, 0
      %s230 = sadd.s32 %s229, 1
      %s231 = scalar_select %p228, %s229, %s230
      %p234 = pneg %p228
      %p235 = scmp.eq.s32.totalorder %s20, 1
      %p236 = por %p234, %p235
      %p237 = scmp.ne.s32.totalorder %s229, %s232
      %p238 = scmp.eq.s32.totalorder %s20, 0
      %p239 = por %p237, %p238
      %p240 = scmp.ne.s32.totalorder %s229, %s232
      %p241 = scmp.eq.s32.totalorder %s25, 1
      %p242 = por %p240, %p241
      %p243 = scmp.ne.s32.totalorder %s232, %s233
      %p244 = scmp.eq.s32.totalorder %s25, 0
      %p245 = por %p243, %p244
      %p246 = scmp.ne.s32.totalorder %s232, %s233
      %p247 = scmp.eq.s32.totalorder %s26, 1
      %p248 = por %p246, %p247
      %p250 = scmp.ne.s32.totalorder %s233, %s249
      %p251 = scmp.eq.s32.totalorder %s26, 0
      %p252 = por %p250, %p251
      %p253 = scmp.le.s32.totalorder 1, %s20
      %p254 = scmp.lt.s32.totalorder %s20, 3
      %p255 = pnand %p253, %p254
      %p256 = pneg %p255
      // Predicated region
      $region9: #{_lambda_.1} parent=5 // pred_check
        _
      $region10: #{_lambda_.1} parent=5 // pred_check_branch
        %258 = sbr.rel (%p255) target = $region12
      $region11: #{_lambda_.1} parent=5 // pred_region
        %s259 = ssub.s32 %s20, 1
        // Predicated region
        $region13: #{_lambda_.1} parent=11 // pred_check
          %p260 = pneg %p93
        $region14: #{_lambda_.1} parent=11 // pred_check_branch
          %262 = sbr.rel (%p260) target = $region16
        $region15: #{_lambda_.1} parent=11 // pred_region
          _
        $region16: #{_lambda_.1} parent=11 // pred_fallthru
          _
        // Predicated region
        $region17: #{_lambda_.1} parent=11 // pred_check
          %p263 = pneg %p114
        $region18: #{_lambda_.1} parent=11 // pred_check_branch
          %265 = sbr.rel (%p263) target = $region20
        $region19: #{_lambda_.1} parent=11 // pred_region
          %267 = vsyncadd [#allocation3], 0
          %s268 = sshll.u32 %s3, 4
          %s269 = int_to_ptr.hbm [resolvable:$true] %s268
          %s270 = sshll.u32 [#allocation2], 4
          %s271 = int_to_ptr.vmem [resolvable:$true] %s270
          %276 = dma.hbm_to_vmem [thread:$0]  %s269, 2048, %s271, [#allocation3], 128, 128, 8
        $region20: #{_lambda_.1} parent=11 // pred_fallthru
          _
        // Predicated region
        $region21: #{_lambda_.1} parent=11 // pred_check
          %p277 = pneg %p135
        $region22: #{_lambda_.1} parent=11 // pred_check_branch
          %279 = sbr.rel (%p277) target = $region24
        $region23: #{_lambda_.1} parent=11 // pred_region
          _
        $region24: #{_lambda_.1} parent=11 // pred_fallthru
          _
        // Predicated region
        $region25: #{_lambda_.1} parent=11 // pred_check
          %p280 = pneg %p156
        $region26: #{_lambda_.1} parent=11 // pred_check_branch
          %282 = sbr.rel (%p280) target = $region28
        $region27: #{_lambda_.1} parent=11 // pred_region
          _
        $region28: #{_lambda_.1} parent=11 // pred_fallthru
          _
        // Predicated region
        $region29: #{_lambda_.1} parent=11 // pred_check
          %p283 = pneg %p177
        $region30: #{_lambda_.1} parent=11 // pred_check_branch
          %285 = sbr.rel (%p283) target = $region32
        $region31: #{_lambda_.1} parent=11 // pred_region
          %287 = vsyncadd [#allocation6], 0
          %s288 = sshll.u32 %s6, 4
          %s289 = int_to_ptr.hbm [resolvable:$true] %s288
          %s290 = sshll.u32 [#allocation5], 4
          %s291 = int_to_ptr.vmem [resolvable:$true] %s290
          %296 = dma.hbm_to_vmem [thread:$0]  %s289, 2048, %s291, [#allocation6], 256, 256, 16
        $region32: #{_lambda_.1} parent=11 // pred_fallthru
          _
        // Predicated region
        $region33: #{_lambda_.1} parent=11 // pred_check
          %p297 = pneg %p198
        $region34: #{_lambda_.1} parent=11 // pred_check_branch
          %299 = sbr.rel (%p297) target = $region36
        $region35: #{_lambda_.1} parent=11 // pred_region
          _
        $region36: #{_lambda_.1} parent=11 // pred_fallthru
          _
        // Predicated region
        $region37: #{_lambda_.1} parent=11 // pred_check
          %p300 = pneg %p219
        $region38: #{_lambda_.1} parent=11 // pred_check_branch
          %302 = sbr.rel (%p300) target = $region40
        $region39: #{_lambda_.1} parent=11 // pred_region
          _
        $region40: #{_lambda_.1} parent=11 // pred_fallthru
          _
      $region12: #{_lambda_.1} parent=5 // pred_fallthru
        _
      %p303 = scmp.lt.s32.totalorder %s20, 2
      // Predicated region
      $region41: #{_lambda_.1} parent=5 // pred_check
        %p304 = pneg %p303
      $region42: #{_lambda_.1} parent=5 // pred_check_branch
        %306 = sbr.rel (%p304) target = $region44
      $region43: #{_lambda_.1} parent=5 // pred_region
        // Predicated region
        $region45: #{_lambda_.1} parent=43 // pred_check
          %p307 = pneg %p40
        $region46: #{_lambda_.1} parent=43 // pred_check_branch
          %309 = sbr.rel (%p307) target = $region48
        $region47: #{_lambda_.1} parent=43 // pred_region
          %p310 = scmp.lt.s32.totalorder %s20, 1
          %s311 = scalar_select %p310, %s20, 1
          %s312 = smul.addr %s311, 2
          %s313 = smul.addr %s312, 8
          %s314 = scalar_lea.vmem %s0, %s313
        $region48: #{_lambda_.1} parent=43 // pred_fallthru
          _
        // Predicated region
        $region49: #{_lambda_.1} parent=43 // pred_check
          %p315 = pneg %p66
        $region50: #{_lambda_.1} parent=43 // pred_check_branch
          %317 = sbr.rel (%p315) target = $region52
        $region51: #{_lambda_.1} parent=43 // pred_region
          %p318 = scmp.lt.s32.totalorder %s20, 1
          %s319 = scalar_select %p318, %s20, 1
          %s320 = smul.addr %s319, 2
          %s321 = smul.addr %s320, 8
          %s322 = scalar_lea.vmem %s1, %s321
        $region52: #{_lambda_.1} parent=43 // pred_fallthru
          _
      $region44: #{_lambda_.1} parent=5 // pred_fallthru
        _
      %p323 = scmp.le.s32.totalorder 1, %s20
      %p324 = scmp.lt.s32.totalorder %s20, 3
      %p325 = pnand %p323, %p324
      %p326 = pneg %p325
      // Predicated region
      $region53: #{_lambda_.1} parent=5 // pred_check
        _
      $region54: #{_lambda_.1} parent=5 // pred_check_branch
        %328 = sbr.rel (%p325) target = $region56
      $region55: #{_lambda_.1} parent=5 // pred_region
        %s329 = ssub.s32 %s20, 1
        // Predicated region
        $region57: #{_lambda_.1} parent=55 // pred_check
          %p330 = pneg %p114
        $region58: #{_lambda_.1} parent=55 // pred_check_branch
          %332 = sbr.rel (%p330) target = $region60
        $region59: #{_lambda_.1} parent=55 // pred_region
          %334 = dma.done [#allocation3], 2048
        $region60: #{_lambda_.1} parent=55 // pred_fallthru
          _
        // Predicated region
        $region61: #{_lambda_.1} parent=55 // pred_check
          %p335 = pneg %p177
        $region62: #{_lambda_.1} parent=55 // pred_check_branch
          %337 = sbr.rel (%p335) target = $region64
        $region63: #{_lambda_.1} parent=55 // pred_region
          %339 = dma.done [#allocation6], 2048
        $region64: #{_lambda_.1} parent=55 // pred_fallthru
          _
        %p340 = scmp.lt.s32.totalorder %s25, 1
        %s341 = scalar_select %p340, %s25, 1
        %s342 = smul.addr %s341, 2
        %s343 = smul.addr %s342, 8
        %s344 = scalar_lea.vmem %s0, %s343
        %p345 = pneg %p46
        %p346 = pneg %p43
        %p347 = scmp.lt.s32.totalorder %s25, 1
        %s348 = scalar_select %p347, %s25, 1
        %s349 = smul.addr %s348, 2
        %s350 = smul.addr %s349, 8
        %s351 = scalar_lea.vmem %s1, %s350
        %p352 = pneg %p72
        %p353 = pneg %p69
        %p354 = pneg %p93
        %p355 = pneg %p90
        %p356 = pneg %p114
        %p357 = pneg %p111
        %p358 = pneg %p135
        %p359 = pneg %p132
        %p360 = pneg %p156
        %p361 = pneg %p153
        %p362 = pneg %p177
        %p363 = pneg %p174
        %p364 = pneg %p198
        %p365 = pneg %p195
        %p366 = pneg %p219
        %p367 = pneg %p216
        %p368 = pneg %p245
        %p369 = pneg %p242
        %s370 = sand.u32 %s232, 1
        %s371 = scalar_lea.sflag [#allocation4], %s370
        %s372 = sand.u32 %s232, 1
        %s373 = smul.addr %s372, 16
        %s374 = scalar_lea.vmem [#allocation7], %s373
        %p375 = scmp.lt.s32.totalorder %s25, 1
        %s376 = scalar_select %p375, %s25, 1
        %s377 = smul.addr %s376, 2
        %s378 = smul.addr %s377, 8
        %s379 = scalar_lea.vmem %s0, %s378
        %p380 = scmp.lt.s32.totalorder %s25, 1
        %s381 = scalar_select %p380, %s25, 1
        %s382 = smul.addr %s381, 2
        %s383 = smul.addr %s382, 8
        %s384 = scalar_lea.vmem %s1, %s383
        %v385 = vld [vmem:[%s2] sm:$0xff]
        %v386 = vld [vmem:[%s2 + $0x8] sm:$0xff]
        %v387 = vld [vmem:[%s2 + $0x10] sm:$0xff]
        %v388 = vld [vmem:[%s2 + $0x18] sm:$0xff]
        %v389 = vld [vmem:[%s2 + $0x20] sm:$0xff]
        %v390 = vld [vmem:[%s2 + $0x28] sm:$0xff]
        %v391 = vld [vmem:[%s4] sm:$0x7]
        %v392 = vld [vmem:[%s5] sm:$0xff]
        %v393 = vld [vmem:[%s5 + $0x8] sm:$0xff]
        %v394 = vld [vmem:[%s5 + $0x10] sm:$0xff]
        %v395 = vld [vmem:[%s5 + $0x18] sm:$0xff]
        %v396 = vld [vmem:[%s5 + $0x38] sm:$0xff]
        %v397 = vld [vmem:[%s8] sm:$0x1]
        %v398 = vld [vmem:[%s8 + $0x1] sm:$0x1]
        %v399 = vld [vmem:[%s8 + $0x2] sm:$0x1]
        %v400 = vld [vmem:[%s8 + $0x6] sm:$0x1]
        %v401 = vld [vmem:[%s8 + $0x7] sm:$0x1]
        %v402 = vld [vmem:[%s8 + $0x8] sm:$0x1]
        %v403 = vld [vmem:[%s379] sm:$0xff]
        %v404 = vld [vmem:[%s379 + $0x8] sm:$0xff]
        %v405 = vrcp.pop 7.0
        %v406 = vmul.f32 7.0, %v405
        %v407 = vsub.f32 1.0, %v406
        %v408 = vmul.f32 %v405, %v407
        %v409 = vadd.f32 %v405, %v408
        %vm410 = vweird.f32 %v405
        %v411 = vsel %vm410, %v405, %v409
        %v412 = vmul.f32 %v403, %v411
        %v413 = vmul.f32 %v404, %v411
        %v414 = vsub.f32 %v412, 0.5
        %v415 = vsub.f32 %v413, 0.5
        %417 = vset.pattern.permute.xlu0 4
        %418 = vperm.xlu0 %417, %v414
        %v419 = vpop.permute.xlu0 %418
        %422 = vset.pattern.permute.xlu0 4
        %423 = vperm.xlu0 %422, %v415
        %v424 = vpop.permute.xlu0 %423
        %v426 = vperm.slane %v397, 0
        %v427 = vmul.f32 %v419, %v426
        %v428 = vmul.f32 %v424, %v426
        %431 = vrot.lane.b32.xlu0 %v403, 127
        %v432 = vpop.permute.xlu0 %431
        %433 = vrot.lane.b32.xlu0 %v404, 127
        %v434 = vpop.permute.xlu0 %433
        %vm435 = vcmask 23552
        %v436 = vsel %vm435, %v432, 0
        %v438 = vsel %vm435, %v434, 0
        %vm440 = vcmask 1042432
        %v442 = vsel %vm440, %v391, 0
        %444 = vmatpush.msra.mxu0 0.0
        %445 = vmatpush.msra.mxu0 0.0
        %446 = vmatpush.msra.mxu0 0.0
        %447 = vmatpush.msra.mxu0 0.0
        %448 = vmatpush.msra.mxu0 0.0
        %449 = vmatpush.msra.mxu0 0.0
        %450 = vmatpush.msra.mxu0 0.0
        %451 = vmatpush.msra.mxu0 0.0
        %452 = vmatpush.msra.mxu0 0.0
        %453 = vmatpush.msra.mxu0 0.0
        %454 = vmatpush.msra.mxu0 0.0
        %455 = vmatpush.msra.mxu0 0.0
        %456 = vmatpush.msra.mxu0 0.0
        %457 = vmatpush.msra.mxu0 0.0
        %458 = vmatpush.msra.mxu0 0.0
        %459 = vmatpush.msra.mxu0 %v442
        %460 = vmatmul.f32.gmra.mxu0 %v436
        %v461 = vpop.f32.mrf.mxu0
        %v462 = vadd.f32 %v427, %v461
        %463 = vmatmul.f32.gmra.mxu0 %v438
        %v464 = vpop.f32.mrf.mxu0
        %v465 = vadd.f32 %v428, %v464
        %466 = vdwg.mxu0
        %v467 = vperm.slane %v398, 0
        %v468 = vadd.f32 %v462, %v467
        %v469 = vadd.f32 %v465, %v467
        %v470 = vld [vmem:[%s384] sm:$0xff]
        %v471 = vld [vmem:[%s384 + $0x8] sm:$0xff]
        %472 = vrot.lane.b32.xlu0 %v391, 96
        %v473 = vpop.permute.xlu0 %472
        %v475 = vsel %vm435, %v470, 0
        %v478 = vsel %vm435, %v471, 0
        %v480 = vsel %vm440, %v473, 0
        %482 = vmatpush.msra.mxu0 0.0
        %483 = vmatpush.msra.mxu0 0.0
        %484 = vmatpush.msra.mxu0 0.0
        %485 = vmatpush.msra.mxu0 0.0
        %486 = vmatpush.msra.mxu0 0.0
        %487 = vmatpush.msra.mxu0 0.0
        %488 = vmatpush.msra.mxu0 0.0
        %489 = vmatpush.msra.mxu0 0.0
        %490 = vmatpush.msra.mxu0 0.0
        %491 = vmatpush.msra.mxu0 0.0
        %492 = vmatpush.msra.mxu0 0.0
        %493 = vmatpush.msra.mxu0 0.0
        %494 = vmatpush.msra.mxu0 0.0
        %495 = vmatpush.msra.mxu0 0.0
        %496 = vmatpush.msra.mxu0 0.0
        %497 = vmatpush.msra.mxu0 %v480
        %498 = vmatmul.f32.gmra.mxu0 %v475
        %v499 = vpop.f32.mrf.mxu0
        %v500 = vadd.f32 0.0, %v499
        %501 = vmatmul.f32.gmra.mxu0 %v478
        %v502 = vpop.f32.mrf.mxu0
        %v503 = vadd.f32 0.0, %v502
        %504 = vdwg.mxu0
        %v505 = vadd.f32 %v468, %v500
        %v506 = vadd.f32 %v469, %v503
        %v507 = vadd.f32 %v505, %v385
        %v508 = vadd.f32 %v506, %v386
        %v509 = vperm.slane %v399, 0
        %vm510 = vcmask 261120
        %v512 = vsel %vm510, %v507, 0
        %v515 = vsel %vm510, %v508, 0
        %517 = vmatpush.msra.mxu0 0.0
        %518 = vmatpush.msra.mxu0 0.0
        %519 = vmatpush.msra.mxu0 0.0
        %520 = vmatpush.msra.mxu0 0.0
        %521 = vmatpush.msra.mxu0 0.0
        %522 = vmatpush.msra.mxu0 0.0
        %523 = vmatpush.msra.mxu0 0.0
        %524 = vmatpush.msra.mxu0 0.0
        %525 = vmatpush.msra.mxu0 0.0
        %526 = vmatpush.msra.mxu0 0.0
        %527 = vmatpush.msra.mxu0 0.0
        %528 = vmatpush.msra.mxu0 0.0
        %529 = vmatpush.msra.mxu0 %v395
        %530 = vmatpush.msra.mxu0 %v394
        %531 = vmatpush.msra.mxu0 %v393
        %532 = vmatpush.msra.mxu0 %v392
        %533 = vmatmul.f32.gmra.mxu0 %v512
        %v534 = vpop.f32.mrf.mxu0
        %v535 = vadd.f32 %v509, %v534
        %536 = vmatmul.f32.gmra.mxu0 %v515
        %v537 = vpop.f32.mrf.mxu0
        %v538 = vadd.f32 %v509, %v537
        %539 = vdwg.mxu0
        %v540 = vld [vmem:[%s5 + $0x20] sm:$0xff]
        %vm541 = vcmask 64512
        %v543 = vsel %vm541, %v535, 0
        %v546 = vsel %vm541, %v538, 0
        %548 = vmatpush.msra.mxu0 0.0
        %549 = vmatpush.msra.mxu0 0.0
        %550 = vmatpush.msra.mxu0 0.0
        %551 = vmatpush.msra.mxu0 0.0
        %552 = vmatpush.msra.mxu0 0.0
        %553 = vmatpush.msra.mxu0 0.0
        %554 = vmatpush.msra.mxu0 0.0
        %555 = vmatpush.msra.mxu0 0.0
        %556 = vmatpush.msra.mxu0 0.0
        %557 = vmatpush.msra.mxu0 0.0
        %558 = vmatpush.msra.mxu0 0.0
        %559 = vmatpush.msra.mxu0 0.0
        %560 = vmatpush.msra.mxu0 0.0
        %561 = vmatpush.msra.mxu0 0.0
        %562 = vmatpush.msra.mxu0 0.0
        %563 = vmatpush.msra.mxu0 %v540
        %564 = vmatmul.f32.gmra.mxu0 %v543
        %v565 = vpop.f32.mrf.mxu0
        %v566 = vadd.f32 0.0, %v565
        %567 = vmatmul.f32.gmra.mxu0 %v546
        %v568 = vpop.f32.mrf.mxu0
        %v569 = vadd.f32 0.0, %v568
        %570 = vdwg.mxu0
        %v571 = vld [vmem:[%s5 + $0x40] sm:$0xff]
        %v572 = vld [vmem:[%s5 + $0x48] sm:$0xff]
        %575 = vrot.lane.b32.xlu0 %v566, 120
        %v576 = vpop.permute.xlu0 %575
        %577 = vrot.lane.b32.xlu0 %v569, 120
        %v578 = vpop.permute.xlu0 %577
        %vm581 = vcmask 130048
        %v583 = vsel %vm581, %v572, 0
        %585 = vmatpush.msra.mxu0 0.0
        %586 = vmatpush.msra.mxu0 0.0
        %587 = vmatpush.msra.mxu0 0.0
        %588 = vmatpush.msra.mxu0 0.0
        %589 = vmatpush.msra.mxu0 0.0
        %590 = vmatpush.msra.mxu0 0.0
        %591 = vmatpush.msra.mxu0 0.0
        %592 = vmatpush.msra.mxu0 0.0
        %593 = vmatpush.msra.mxu0 0.0
        %594 = vmatpush.msra.mxu0 0.0
        %595 = vmatpush.msra.mxu0 0.0
        %596 = vmatpush.msra.mxu0 0.0
        %597 = vmatpush.msra.mxu0 0.0
        %598 = vmatpush.msra.mxu0 0.0
        %599 = vmatpush.msra.mxu0 %v578
        %600 = vmatpush.msra.mxu0 %v576
        %601 = vmatmul.f32.gmra.mxu0 %v583
        %v602 = vpop.f32.mrf.mxu0
        %v603 = vadd.f32 0.0, %v602
        %604 = vdwg.mxu0
        %v606 = vsel %vm581, %v571, 0
        %608 = vmatpush.msra.mxu0 0.0
        %609 = vmatpush.msra.mxu0 0.0
        %610 = vmatpush.msra.mxu0 0.0
        %611 = vmatpush.msra.mxu0 0.0
        %612 = vmatpush.msra.mxu0 0.0
        %613 = vmatpush.msra.mxu0 0.0
        %614 = vmatpush.msra.mxu0 0.0
        %615 = vmatpush.msra.mxu0 0.0
        %616 = vmatpush.msra.mxu0 0.0
        %617 = vmatpush.msra.mxu0 0.0
        %618 = vmatpush.msra.mxu0 0.0
        %619 = vmatpush.msra.mxu0 0.0
        %620 = vmatpush.msra.mxu0 0.0
        %621 = vmatpush.msra.mxu0 0.0
        %622 = vmatpush.msra.mxu0 %v569
        %623 = vmatpush.msra.mxu0 %v566
        %624 = vmatmul.f32.gmra.mxu0 %v606
        %v625 = vpop.f32.mrf.mxu0
        %v626 = vadd.f32 %v603, %v625
        %627 = vdwg.mxu0
        %v628 = vld [vmem:[%s8 + $0x3] sm:$0x1]
        %v629 = vperm.slane %v628, 0
        %v630 = vadd.f32 %v626, %v629
        %vm631 = vcmp.gt.f32.partialorder %v630, 0.0
        %v632 = vmin.f32 %v630, 0.0
        %v633 = vmul.f32 %v632, 1.442695
        %v634 = vpow.pop %v633
        %v635 = vsub.f32 %v634, 1.0
        %v636 = vsel %vm631, %v630, %v635
        %v637 = vperm.slane %v400, 0
        %v639 = vsel %vm541, %v636, 0
        %641 = vmatpush.msra.mxu0 0.0
        %642 = vmatpush.msra.mxu0 0.0
        %643 = vmatpush.msra.mxu0 0.0
        %644 = vmatpush.msra.mxu0 0.0
        %645 = vmatpush.msra.mxu0 0.0
        %646 = vmatpush.msra.mxu0 0.0
        %647 = vmatpush.msra.mxu0 0.0
        %648 = vmatpush.msra.mxu0 0.0
        %649 = vmatpush.msra.mxu0 0.0
        %650 = vmatpush.msra.mxu0 0.0
        %651 = vmatpush.msra.mxu0 0.0
        %652 = vmatpush.msra.mxu0 0.0
        %653 = vmatpush.msra.mxu0 0.0
        %654 = vmatpush.msra.mxu0 0.0
        %655 = vmatpush.msra.mxu0 0.0
        %656 = vmatpush.msra.mxu0 %v396
        %657 = vmatmul.f32.gmra.mxu0 %v639
        %v658 = vpop.f32.mrf.mxu0
        %v659 = vadd.f32 %v637, %v658
        %660 = vdwg.mxu0
        %v661 = vld [vmem:[%s5 + $0x28] sm:$0xff]
        %662 = vmatpush.msra.mxu0 0.0
        %663 = vmatpush.msra.mxu0 0.0
        %664 = vmatpush.msra.mxu0 0.0
        %665 = vmatpush.msra.mxu0 0.0
        %666 = vmatpush.msra.mxu0 0.0
        %667 = vmatpush.msra.mxu0 0.0
        %668 = vmatpush.msra.mxu0 0.0
        %669 = vmatpush.msra.mxu0 0.0
        %670 = vmatpush.msra.mxu0 0.0
        %671 = vmatpush.msra.mxu0 0.0
        %672 = vmatpush.msra.mxu0 0.0
        %673 = vmatpush.msra.mxu0 0.0
        %674 = vmatpush.msra.mxu0 0.0
        %675 = vmatpush.msra.mxu0 0.0
        %676 = vmatpush.msra.mxu0 0.0
        %677 = vmatpush.msra.mxu0 %v661
        %678 = vmatmul.f32.gmra.mxu0 %v639
        %v679 = vpop.f32.mrf.mxu0
        %v680 = vadd.f32 0.0, %v679
        %681 = vdwg.mxu0
        %v682 = vld [vmem:[%s5 + $0x50] sm:$0xf]
        %v683 = vld [vmem:[%s5 + $0x54] sm:$0xf]
        %685 = vrot.lane.b32.xlu0 %v680, 120
        %v686 = vpop.permute.xlu0 %685
        %v689 = vsel %vm541, %v683, 0
        %691 = vmatpush.msra.mxu0 0.0
        %692 = vmatpush.msra.mxu0 0.0
        %693 = vmatpush.msra.mxu0 0.0
        %694 = vmatpush.msra.mxu0 0.0
        %695 = vmatpush.msra.mxu0 0.0
        %696 = vmatpush.msra.mxu0 0.0
        %697 = vmatpush.msra.mxu0 0.0
        %698 = vmatpush.msra.mxu0 0.0
        %699 = vmatpush.msra.mxu0 0.0
        %700 = vmatpush.msra.mxu0 0.0
        %701 = vmatpush.msra.mxu0 0.0
        %702 = vmatpush.msra.mxu0 0.0
        %703 = vmatpush.msra.mxu0 0.0
        %704 = vmatpush.msra.mxu0 0.0
        %705 = vmatpush.msra.mxu0 0.0
        %706 = vmatpush.msra.mxu0 %v686
        %707 = vmatmul.f32.gmra.mxu0 %v689
        %v708 = vpop.f32.mrf.mxu0
        %v709 = vadd.f32 0.0, %v708
        %710 = vdwg.mxu0
        %v712 = vsel %vm541, %v682, 0
        %714 = vmatpush.msra.mxu0 0.0
        %715 = vmatpush.msra.mxu0 0.0
        %716 = vmatpush.msra.mxu0 0.0
        %717 = vmatpush.msra.mxu0 0.0
        %718 = vmatpush.msra.mxu0 0.0
        %719 = vmatpush.msra.mxu0 0.0
        %720 = vmatpush.msra.mxu0 0.0
        %721 = vmatpush.msra.mxu0 0.0
        %722 = vmatpush.msra.mxu0 0.0
        %723 = vmatpush.msra.mxu0 0.0
        %724 = vmatpush.msra.mxu0 0.0
        %725 = vmatpush.msra.mxu0 0.0
        %726 = vmatpush.msra.mxu0 0.0
        %727 = vmatpush.msra.mxu0 0.0
        %728 = vmatpush.msra.mxu0 0.0
        %729 = vmatpush.msra.mxu0 %v680
        %730 = vmatmul.f32.gmra.mxu0 %v712
        %v731 = vpop.f32.mrf.mxu0
        %v732 = vadd.f32 %v709, %v731
        %733 = vdwg.mxu0
        %v734 = vld [vmem:[%s8 + $0x4] sm:$0x1]
        %v735 = vperm.slane %v734, 0
        %v736 = vadd.f32 %v732, %v735
        %vm737 = vcmp.gt.f32.partialorder %v736, 0.0
        %v738 = vmin.f32 %v736, 0.0
        %v739 = vmul.f32 %v738, 1.442695
        %v740 = vpow.pop %v739
        %v741 = vsub.f32 %v740, 1.0
        %v742 = vsel %vm737, %v736, %v741
        %v744 = vsel %vm541, %v742, 0
        %746 = vmatpush.msra.mxu0 0.0
        %747 = vmatpush.msra.mxu0 0.0
        %748 = vmatpush.msra.mxu0 0.0
        %749 = vmatpush.msra.mxu0 0.0
        %750 = vmatpush.msra.mxu0 0.0
        %751 = vmatpush.msra.mxu0 0.0
        %752 = vmatpush.msra.mxu0 0.0
        %753 = vmatpush.msra.mxu0 0.0
        %754 = vmatpush.msra.mxu0 0.0
        %755 = vmatpush.msra.mxu0 0.0
        %756 = vmatpush.msra.mxu0 0.0
        %757 = vmatpush.msra.mxu0 0.0
        %758 = vmatpush.msra.mxu0 0.0
        %759 = vmatpush.msra.mxu0 0.0
        %760 = vmatpush.msra.mxu0 0.0
        %761 = vmatpush.msra.mxu0 %v396
        %762 = vmatmul.f32.gmra.mxu0 %v744
        %v763 = vpop.f32.mrf.mxu0
        %v764 = vadd.f32 %v637, %v763
        %765 = vdwg.mxu0
        %v766 = vld [vmem:[%s5 + $0x30] sm:$0xff]
        %767 = vmatpush.msra.mxu0 0.0
        %768 = vmatpush.msra.mxu0 0.0
        %769 = vmatpush.msra.mxu0 0.0
        %770 = vmatpush.msra.mxu0 0.0
        %771 = vmatpush.msra.mxu0 0.0
        %772 = vmatpush.msra.mxu0 0.0
        %773 = vmatpush.msra.mxu0 0.0
        %774 = vmatpush.msra.mxu0 0.0
        %775 = vmatpush.msra.mxu0 0.0
        %776 = vmatpush.msra.mxu0 0.0
        %777 = vmatpush.msra.mxu0 0.0
        %778 = vmatpush.msra.mxu0 0.0
        %779 = vmatpush.msra.mxu0 0.0
        %780 = vmatpush.msra.mxu0 0.0
        %781 = vmatpush.msra.mxu0 0.0
        %782 = vmatpush.msra.mxu0 %v766
        %783 = vmatmul.f32.gmra.mxu0 %v744
        %v784 = vpop.f32.mrf.mxu0
        %v785 = vadd.f32 0.0, %v784
        %786 = vdwg.mxu0
        %v787 = vld [vmem:[%s5 + $0x58] sm:$0x3]
        %v788 = vld [vmem:[%s5 + $0x5a] sm:$0x3]
        %790 = vrot.lane.b32.xlu0 %v785, 120
        %v791 = vpop.permute.xlu0 %790
        %vm792 = vcmask 31744
        %v794 = vsel %vm792, %v788, 0
        %vm796 = vcmask 1043456
        %v797 = vsel %vm796, %v791, 0
        %799 = vmatpush.msra.mxu0 0.0
        %800 = vmatpush.msra.mxu0 0.0
        %801 = vmatpush.msra.mxu0 0.0
        %802 = vmatpush.msra.mxu0 0.0
        %803 = vmatpush.msra.mxu0 0.0
        %804 = vmatpush.msra.mxu0 0.0
        %805 = vmatpush.msra.mxu0 0.0
        %806 = vmatpush.msra.mxu0 0.0
        %807 = vmatpush.msra.mxu0 0.0
        %808 = vmatpush.msra.mxu0 0.0
        %809 = vmatpush.msra.mxu0 0.0
        %810 = vmatpush.msra.mxu0 0.0
        %811 = vmatpush.msra.mxu0 0.0
        %812 = vmatpush.msra.mxu0 0.0
        %813 = vmatpush.msra.mxu0 0.0
        %814 = vmatpush.msra.mxu0 %v797
        %815 = vmatmul.f32.gmra.mxu0 %v794
        %v816 = vpop.f32.mrf.mxu0
        %v817 = vadd.f32 0.0, %v816
        %818 = vdwg.mxu0
        %v820 = vsel %vm792, %v787, 0
        %v822 = vsel %vm796, %v785, 0
        %824 = vmatpush.msra.mxu0 0.0
        %825 = vmatpush.msra.mxu0 0.0
        %826 = vmatpush.msra.mxu0 0.0
        %827 = vmatpush.msra.mxu0 0.0
        %828 = vmatpush.msra.mxu0 0.0
        %829 = vmatpush.msra.mxu0 0.0
        %830 = vmatpush.msra.mxu0 0.0
        %831 = vmatpush.msra.mxu0 0.0
        %832 = vmatpush.msra.mxu0 0.0
        %833 = vmatpush.msra.mxu0 0.0
        %834 = vmatpush.msra.mxu0 0.0
        %835 = vmatpush.msra.mxu0 0.0
        %836 = vmatpush.msra.mxu0 0.0
        %837 = vmatpush.msra.mxu0 0.0
        %838 = vmatpush.msra.mxu0 0.0
        %839 = vmatpush.msra.mxu0 %v822
        %840 = vmatmul.f32.gmra.mxu0 %v820
        %v841 = vpop.f32.mrf.mxu0
        %v842 = vadd.f32 %v817, %v841
        %843 = vdwg.mxu0
        %v844 = vld [vmem:[%s8 + $0x5] sm:$0x1]
        %v845 = vperm.slane %v844, 0
        %v846 = vadd.f32 %v842, %v845
        %vm847 = vcmp.gt.f32.partialorder %v846, 0.0
        %v848 = vmin.f32 %v846, 0.0
        %v849 = vmul.f32 %v848, 1.442695
        %v850 = vpow.pop %v849
        %v851 = vsub.f32 %v850, 1.0
        %v852 = vsel %vm847, %v846, %v851
        %v854 = vsel %vm541, %v852, 0
        %856 = vmatpush.msra.mxu0 0.0
        %857 = vmatpush.msra.mxu0 0.0
        %858 = vmatpush.msra.mxu0 0.0
        %859 = vmatpush.msra.mxu0 0.0
        %860 = vmatpush.msra.mxu0 0.0
        %861 = vmatpush.msra.mxu0 0.0
        %862 = vmatpush.msra.mxu0 0.0
        %863 = vmatpush.msra.mxu0 0.0
        %864 = vmatpush.msra.mxu0 0.0
        %865 = vmatpush.msra.mxu0 0.0
        %866 = vmatpush.msra.mxu0 0.0
        %867 = vmatpush.msra.mxu0 0.0
        %868 = vmatpush.msra.mxu0 0.0
        %869 = vmatpush.msra.mxu0 0.0
        %870 = vmatpush.msra.mxu0 0.0
        %871 = vmatpush.msra.mxu0 %v396
        %872 = vmatmul.f32.gmra.mxu0 %v854
        %v873 = vpop.f32.mrf.mxu0
        %v874 = vadd.f32 %v637, %v873
        %875 = vdwg.mxu0
        %v876 = vld [vmem:[%s2 + $0x70] sm:$0xff]
        %v877 = vld [vmem:[%s2 + $0x78] sm:$0xff]
        %v878 = vld [vmem:[%s2 + $0x80] sm:$0xff]
        %v879 = vld [vmem:[%s2 + $0x88] sm:$0xff]
        %v880 = vld [vmem:[%s2 + $0x90] sm:$0xff]
        %v881 = vld [vmem:[%s2 + $0x98] sm:$0xff]
        %v882 = vld [vmem:[%s2 + $0xa0] sm:$0xff]
        %v883 = vld [vmem:[%s2 + $0xa8] sm:$0xff]
        %v885 = vsel %vm541, %v880, 0
        %v888 = vsel %vm541, %v881, 0
        %v891 = vsel %vm541, %v882, 0
        %v894 = vsel %vm541, %v883, 0
        %896 = vmatpush.msra.mxu0 0.0
        %897 = vmatpush.msra.mxu0 0.0
        %898 = vmatpush.msra.mxu0 0.0
        %899 = vmatpush.msra.mxu0 0.0
        %900 = vmatpush.msra.mxu0 0.0
        %901 = vmatpush.msra.mxu0 0.0
        %902 = vmatpush.msra.mxu0 0.0
        %903 = vmatpush.msra.mxu0 0.0
        %904 = vmatpush.msra.mxu0 0.0
        %905 = vmatpush.msra.mxu0 0.0
        %906 = vmatpush.msra.mxu0 0.0
        %907 = vmatpush.msra.mxu0 0.0
        %908 = vmatpush.msra.mxu0 0.0
        %909 = vmatpush.msra.mxu0 0.0
        %910 = vmatpush.msra.mxu0 0.0
        %911 = vmatpush.msra.mxu0 %v659
        %912 = vmatmul.f32.gmra.mxu0 %v885
        %v913 = vpop.f32.mrf.mxu0
        %v914 = vadd.f32 0.0, %v913
        %915 = vmatmul.f32.gmra.mxu0 %v888
        %v916 = vpop.f32.mrf.mxu0
        %v917 = vadd.f32 0.0, %v916
        %918 = vmatmul.f32.gmra.mxu0 %v891
        %v919 = vpop.f32.mrf.mxu0
        %v920 = vadd.f32 0.0, %v919
        %921 = vmatmul.f32.gmra.mxu0 %v894
        %v922 = vpop.f32.mrf.mxu0
        %v923 = vadd.f32 0.0, %v922
        %924 = vdwg.mxu0
        %v926 = vsel %vm581, %v876, 0
        %v929 = vsel %vm581, %v877, 0
        %v932 = vsel %vm581, %v878, 0
        %v935 = vsel %vm581, %v879, 0
        %937 = vmatpush.msra.mxu0 0.0
        %938 = vmatpush.msra.mxu0 0.0
        %939 = vmatpush.msra.mxu0 0.0
        %940 = vmatpush.msra.mxu0 0.0
        %941 = vmatpush.msra.mxu0 0.0
        %942 = vmatpush.msra.mxu0 0.0
        %943 = vmatpush.msra.mxu0 0.0
        %944 = vmatpush.msra.mxu0 0.0
        %945 = vmatpush.msra.mxu0 0.0
        %946 = vmatpush.msra.mxu0 0.0
        %947 = vmatpush.msra.mxu0 0.0
        %948 = vmatpush.msra.mxu0 0.0
        %949 = vmatpush.msra.mxu0 0.0
        %950 = vmatpush.msra.mxu0 0.0
        %951 = vmatpush.msra.mxu0 %v508
        %952 = vmatpush.msra.mxu0 %v507
        %953 = vmatmul.f32.gmra.mxu0 %v926
        %v954 = vpop.f32.mrf.mxu0
        %v955 = vadd.f32 %v914, %v954
        %956 = vmatmul.f32.gmra.mxu0 %v929
        %v957 = vpop.f32.mrf.mxu0
        %v958 = vadd.f32 %v917, %v957
        %959 = vmatmul.f32.gmra.mxu0 %v932
        %v960 = vpop.f32.mrf.mxu0
        %v961 = vadd.f32 %v920, %v960
        %962 = vmatmul.f32.gmra.mxu0 %v935
        %v963 = vpop.f32.mrf.mxu0
        %v964 = vadd.f32 %v923, %v963
        %965 = vdwg.mxu0
        %v966 = vld [vmem:[%s2 + $0xb0] sm:$0xff]
        %v967 = vld [vmem:[%s2 + $0xb8] sm:$0xff]
        %v968 = vld [vmem:[%s2 + $0xc0] sm:$0xff]
        %v969 = vld [vmem:[%s2 + $0xc8] sm:$0xff]
        %v971 = vsel %vm792, %v966, 0
        %v974 = vsel %vm792, %v967, 0
        %v977 = vsel %vm792, %v968, 0
        %v980 = vsel %vm792, %v969, 0
        %v983 = vsel %vm796, %v764, 0
        %985 = vmatpush.msra.mxu0 0.0
        %986 = vmatpush.msra.mxu0 0.0
        %987 = vmatpush.msra.mxu0 0.0
        %988 = vmatpush.msra.mxu0 0.0
        %989 = vmatpush.msra.mxu0 0.0
        %990 = vmatpush.msra.mxu0 0.0
        %991 = vmatpush.msra.mxu0 0.0
        %992 = vmatpush.msra.mxu0 0.0
        %993 = vmatpush.msra.mxu0 0.0
        %994 = vmatpush.msra.mxu0 0.0
        %995 = vmatpush.msra.mxu0 0.0
        %996 = vmatpush.msra.mxu0 0.0
        %997 = vmatpush.msra.mxu0 0.0
        %998 = vmatpush.msra.mxu0 0.0
        %999 = vmatpush.msra.mxu0 0.0
        %1000 = vmatpush.msra.mxu0 %v983
        %1001 = vmatmul.f32.gmra.mxu0 %v971
        %v1002 = vpop.f32.mrf.mxu0
        %v1003 = vadd.f32 0.0, %v1002
        %1004 = vmatmul.f32.gmra.mxu0 %v974
        %v1005 = vpop.f32.mrf.mxu0
        %v1006 = vadd.f32 0.0, %v1005
        %1007 = vmatmul.f32.gmra.mxu0 %v977
        %v1008 = vpop.f32.mrf.mxu0
        %v1009 = vadd.f32 0.0, %v1008
        %1010 = vmatmul.f32.gmra.mxu0 %v980
        %v1011 = vpop.f32.mrf.mxu0
        %v1012 = vadd.f32 0.0, %v1011
        %1013 = vdwg.mxu0
        %v1014 = vadd.f32 %v955, %v1003
        %v1015 = vadd.f32 %v958, %v1006
        %v1016 = vadd.f32 %v961, %v1009
        %v1017 = vadd.f32 %v964, %v1012
        %v1018 = vld [vmem:[%s2 + $0xd0] sm:$0xff]
        %v1019 = vld [vmem:[%s2 + $0xd8] sm:$0xff]
        %v1020 = vld [vmem:[%s2 + $0xe0] sm:$0xff]
        %v1021 = vld [vmem:[%s2 + $0xe8] sm:$0xff]
        %vm1022 = vcmask 15360
        %v1024 = vsel %vm1022, %v1018, 0
        %v1027 = vsel %vm1022, %v1019, 0
        %v1030 = vsel %vm1022, %v1020, 0
        %v1033 = vsel %vm1022, %v1021, 0
        %vm1035 = vcmask 1041408
        %v1037 = vsel %vm1035, %v874, 0
        %1039 = vmatpush.msra.mxu0 0.0
        %1040 = vmatpush.msra.mxu0 0.0
        %1041 = vmatpush.msra.mxu0 0.0
        %1042 = vmatpush.msra.mxu0 0.0
        %1043 = vmatpush.msra.mxu0 0.0
        %1044 = vmatpush.msra.mxu0 0.0
        %1045 = vmatpush.msra.mxu0 0.0
        %1046 = vmatpush.msra.mxu0 0.0
        %1047 = vmatpush.msra.mxu0 0.0
        %1048 = vmatpush.msra.mxu0 0.0
        %1049 = vmatpush.msra.mxu0 0.0
        %1050 = vmatpush.msra.mxu0 0.0
        %1051 = vmatpush.msra.mxu0 0.0
        %1052 = vmatpush.msra.mxu0 0.0
        %1053 = vmatpush.msra.mxu0 0.0
        %1054 = vmatpush.msra.mxu0 %v1037
        %1055 = vmatmul.f32.gmra.mxu0 %v1024
        %v1056 = vpop.f32.mrf.mxu0
        %v1057 = vadd.f32 0.0, %v1056
        %1058 = vmatmul.f32.gmra.mxu0 %v1027
        %v1059 = vpop.f32.mrf.mxu0
        %v1060 = vadd.f32 0.0, %v1059
        %1061 = vmatmul.f32.gmra.mxu0 %v1030
        %v1062 = vpop.f32.mrf.mxu0
        %v1063 = vadd.f32 0.0, %v1062
        %1064 = vmatmul.f32.gmra.mxu0 %v1033
        %v1065 = vpop.f32.mrf.mxu0
        %v1066 = vadd.f32 0.0, %v1065
        %1067 = vdwg.mxu0
        %v1068 = vadd.f32 %v1014, %v1057
        %v1069 = vadd.f32 %v1015, %v1060
        %v1070 = vadd.f32 %v1016, %v1063
        %v1071 = vadd.f32 %v1017, %v1066
        %v1072 = vsel %vm510, %v1068, 0.0
        %1073 = vadd.xlane.f32.xlu0 %v1072
        %v1074 = vpop.xlane.xlu0 %1073
        %v1075 = vsel %vm510, %v1069, 0.0
        %1076 = vadd.xlane.f32.xlu0 %v1075
        %v1077 = vpop.xlane.xlu0 %1076
        %v1078 = vsel %vm510, %v1070, 0.0
        %1079 = vadd.xlane.f32.xlu0 %v1078
        %v1080 = vpop.xlane.xlu0 %1079
        %v1081 = vsel %vm510, %v1071, 0.0
        %1082 = vadd.xlane.f32.xlu0 %v1081
        %v1083 = vpop.xlane.xlu0 %1082
        %v1084 = vrcp.pop 32.0
        %v1085 = vmul.f32 32.0, %v1084
        %v1086 = vsub.f32 1.0, %v1085
        %v1087 = vmul.f32 %v1084, %v1086
        %v1088 = vadd.f32 %v1084, %v1087
        %vm1089 = vweird.f32 %v1084
        %v1090 = vsel %vm1089, %v1084, %v1088
        %v1091 = vmul.f32 %v1074, %v1090
        %v1092 = vmul.f32 %v1077, %v1090
        %v1093 = vmul.f32 %v1080, %v1090
        %v1094 = vmul.f32 %v1083, %v1090
        %v1095 = vsub.f32 %v1068, %v1091
        %v1096 = vsub.f32 %v1069, %v1092
        %v1097 = vsub.f32 %v1070, %v1093
        %v1098 = vsub.f32 %v1071, %v1094
        %v1099 = vmul.f32 %v1095, %v1095
        %v1100 = vmul.f32 %v1096, %v1096
        %v1101 = vmul.f32 %v1097, %v1097
        %v1102 = vmul.f32 %v1098, %v1098
        %v1103 = vsel %vm510, %v1099, 0.0
        %1104 = vadd.xlane.f32.xlu0 %v1103
        %v1105 = vpop.xlane.xlu0 %1104
        %v1106 = vsel %vm510, %v1100, 0.0
        %1107 = vadd.xlane.f32.xlu0 %v1106
        %v1108 = vpop.xlane.xlu0 %1107
        %v1109 = vsel %vm510, %v1101, 0.0
        %1110 = vadd.xlane.f32.xlu0 %v1109
        %v1111 = vpop.xlane.xlu0 %1110
        %v1112 = vsel %vm510, %v1102, 0.0
        %1113 = vadd.xlane.f32.xlu0 %v1112
        %v1114 = vpop.xlane.xlu0 %1113
        %v1115 = vmul.f32 %v1105, %v1090
        %v1116 = vmul.f32 %v1108, %v1090
        %v1117 = vmul.f32 %v1111, %v1090
        %v1118 = vmul.f32 %v1114, %v1090
        %v1119 = vadd.f32 %v1115, 1e-05
        %v1120 = vadd.f32 %v1116, 1e-05
        %v1121 = vadd.f32 %v1117, 1e-05
        %v1122 = vadd.f32 %v1118, 1e-05
        %v1123 = vrsqrt.pop %v1119
        %v1124 = vmul.f32 %v1123, %v1119
        %v1125 = vmul.f32 %v1124, %v1123
        %v1126 = vmul.f32 0.5, %v1125
        %v1127 = vsub.f32 1.5, %v1126
        %v1128 = vmul.f32 %v1123, %v1127
        %vm1129 = vweird.f32 %v1119
        %vm1130 = vweird.f32 %v1123
        %vm1131 = vmor %vm1129, %vm1130
        %v1132 = vsel %vm1131, %v1123, %v1128
        %v1133 = vrsqrt.pop %v1120
        %v1134 = vmul.f32 %v1133, %v1120
        %v1135 = vmul.f32 %v1134, %v1133
        %v1136 = vmul.f32 0.5, %v1135
        %v1137 = vsub.f32 1.5, %v1136
        %v1138 = vmul.f32 %v1133, %v1137
        %vm1139 = vweird.f32 %v1120
        %vm1140 = vweird.f32 %v1133
        %vm1141 = vmor %vm1139, %vm1140
        %v1142 = vsel %vm1141, %v1133, %v1138
        %v1143 = vrsqrt.pop %v1121
        %v1144 = vmul.f32 %v1143, %v1121
        %v1145 = vmul.f32 %v1144, %v1143
        %v1146 = vmul.f32 0.5, %v1145
        %v1147 = vsub.f32 1.5, %v1146
        %v1148 = vmul.f32 %v1143, %v1147
        %vm1149 = vweird.f32 %v1121
        %vm1150 = vweird.f32 %v1143
        %vm1151 = vmor %vm1149, %vm1150
        %v1152 = vsel %vm1151, %v1143, %v1148
        %v1153 = vrsqrt.pop %v1122
        %v1154 = vmul.f32 %v1153, %v1122
        %v1155 = vmul.f32 %v1154, %v1153
        %v1156 = vmul.f32 0.5, %v1155
        %v1157 = vsub.f32 1.5, %v1156
        %v1158 = vmul.f32 %v1153, %v1157
        %vm1159 = vweird.f32 %v1122
        %vm1160 = vweird.f32 %v1153
        %vm1161 = vmor %vm1159, %vm1160
        %v1162 = vsel %vm1161, %v1153, %v1158
        %v1163 = vmul.f32 %v1095, %v1132
        %v1164 = vmul.f32 %v1096, %v1142
        %v1165 = vmul.f32 %v1097, %v1152
        %v1166 = vmul.f32 %v1098, %v1162
        %v1167 = vperm.slane %v401, 0
        %v1168 = vmul.f32 %v1163, %v1167
        %v1169 = vmul.f32 %v1164, %v1167
        %v1170 = vmul.f32 %v1165, %v1167
        %v1171 = vmul.f32 %v1166, %v1167
        %v1172 = vperm.slane %v402, 0
        %v1173 = vadd.f32 %v1168, %v1172
        %v1174 = vadd.f32 %v1169, %v1172
        %v1175 = vadd.f32 %v1170, %v1172
        %v1176 = vadd.f32 %v1171, %v1172
        %v1177 = vld [vmem:[#allocation5] sm:$0xff]
        %v1178 = vld [vmem:[#allocation5 + $0x8] sm:$0xff]
        %v1179 = vld [vmem:[#allocation5 + $0x10] sm:$0xff]
        %v1180 = vld [vmem:[#allocation5 + $0x18] sm:$0xff]
        %v1181 = vld [vmem:[#allocation5 + $0x20] sm:$0xff]
        %v1182 = vld [vmem:[#allocation5 + $0x28] sm:$0xff]
        %v1183 = vld [vmem:[#allocation5 + $0x30] sm:$0xff]
        %v1184 = vld [vmem:[#allocation5 + $0x38] sm:$0xff]
        %v1185 = vld [vmem:[%s8 + $0x9] sm:$0x1]
        %v1186 = vld [vmem:[%s8 + $0xa] sm:$0x1]
        %v1187 = vld [vmem:[%s8 + $0xb] sm:$0x1]
        %v1188 = vld [vmem:[%s8 + $0xc] sm:$0x1]
        %v1189 = vld [vmem:[%s8 + $0xd] sm:$0x1]
        %v1190 = vld [vmem:[%s8 + $0xe] sm:$0x1]
        %v1191 = vld [vmem:[%s8 + $0xf] sm:$0x1]
        %1196 = vrot.lane.b32.xlu0 %v1178, 64
        %v1197 = vpop.permute.xlu0 %1196
        %1198 = vrot.lane.b32.xlu0 %v1180, 64
        %v1199 = vpop.permute.xlu0 %1198
        %1200 = vrot.lane.b32.xlu0 %v1182, 64
        %v1201 = vpop.permute.xlu0 %1200
        %1202 = vrot.lane.b32.xlu0 %v1184, 64
        %v1203 = vpop.permute.xlu0 %1202
        %v1209 = vsel %vm510, %v1173, 0
        %v1212 = vsel %vm510, %v1174, 0
        %v1215 = vsel %vm510, %v1175, 0
        %v1218 = vsel %vm510, %v1176, 0
        %1220 = vmatpush.msra.mxu0 0.0
        %1221 = vmatpush.msra.mxu0 0.0
        %1222 = vmatpush.msra.mxu0 0.0
        %1223 = vmatpush.msra.mxu0 0.0
        %1224 = vmatpush.msra.mxu0 0.0
        %1225 = vmatpush.msra.mxu0 0.0
        %1226 = vmatpush.msra.mxu0 0.0
        %1227 = vmatpush.msra.mxu0 0.0
        %1228 = vmatpush.msra.mxu0 0.0
        %1229 = vmatpush.msra.mxu0 0.0
        %1230 = vmatpush.msra.mxu0 0.0
        %1231 = vmatpush.msra.mxu0 0.0
        %1232 = vmatpush.msra.mxu0 %v1203
        %1233 = vmatpush.msra.mxu0 %v1201
        %1234 = vmatpush.msra.mxu0 %v1199
        %1235 = vmatpush.msra.mxu0 %v1197
        %1236 = vmatmul.f32.gmra.mxu0 %v1209
        %v1237 = vpop.f32.mrf.mxu0
        %v1238 = vadd.f32 0.0, %v1237
        %1239 = vmatmul.f32.gmra.mxu0 %v1212
        %v1240 = vpop.f32.mrf.mxu0
        %v1241 = vadd.f32 0.0, %v1240
        %1242 = vmatmul.f32.gmra.mxu0 %v1215
        %v1243 = vpop.f32.mrf.mxu0
        %v1244 = vadd.f32 0.0, %v1243
        %1245 = vmatmul.f32.gmra.mxu0 %v1218
        %v1246 = vpop.f32.mrf.mxu0
        %v1247 = vadd.f32 0.0, %v1246
        %1248 = vdwg.mxu0
        %1249 = vrot.lane.b32.xlu0 %v1178, 32
        %v1250 = vpop.permute.xlu0 %1249
        %1251 = vrot.lane.b32.xlu0 %v1180, 32
        %v1252 = vpop.permute.xlu0 %1251
        %1253 = vrot.lane.b32.xlu0 %v1182, 32
        %v1254 = vpop.permute.xlu0 %1253
        %1255 = vrot.lane.b32.xlu0 %v1184, 32
        %v1256 = vpop.permute.xlu0 %1255
        %1261 = vmatpush.msra.mxu0 0.0
        %1262 = vmatpush.msra.mxu0 0.0
        %1263 = vmatpush.msra.mxu0 0.0
        %1264 = vmatpush.msra.mxu0 0.0
        %1265 = vmatpush.msra.mxu0 0.0
        %1266 = vmatpush.msra.mxu0 0.0
        %1267 = vmatpush.msra.mxu0 0.0
        %1268 = vmatpush.msra.mxu0 0.0
        %1269 = vmatpush.msra.mxu0 0.0
        %1270 = vmatpush.msra.mxu0 0.0
        %1271 = vmatpush.msra.mxu0 0.0
        %1272 = vmatpush.msra.mxu0 0.0
        %1273 = vmatpush.msra.mxu0 %v1256
        %1274 = vmatpush.msra.mxu0 %v1254
        %1275 = vmatpush.msra.mxu0 %v1252
        %1276 = vmatpush.msra.mxu0 %v1250
        %1277 = vmatmul.f32.gmra.mxu0 %v1209
        %v1278 = vpop.f32.mrf.mxu0
        %v1279 = vadd.f32 0.0, %v1278
        %1280 = vmatmul.f32.gmra.mxu0 %v1212
        %v1281 = vpop.f32.mrf.mxu0
        %v1282 = vadd.f32 0.0, %v1281
        %1283 = vmatmul.f32.gmra.mxu0 %v1215
        %v1284 = vpop.f32.mrf.mxu0
        %v1285 = vadd.f32 0.0, %v1284
        %1286 = vmatmul.f32.gmra.mxu0 %v1218
        %v1287 = vpop.f32.mrf.mxu0
        %v1288 = vadd.f32 0.0, %v1287
        %1289 = vdwg.mxu0
        %1290 = vmatpush.msra.mxu0 0.0
        %1291 = vmatpush.msra.mxu0 0.0
        %1292 = vmatpush.msra.mxu0 0.0
        %1293 = vmatpush.msra.mxu0 0.0
        %1294 = vmatpush.msra.mxu0 0.0
        %1295 = vmatpush.msra.mxu0 0.0
        %1296 = vmatpush.msra.mxu0 0.0
        %1297 = vmatpush.msra.mxu0 0.0
        %1298 = vmatpush.msra.mxu0 0.0
        %1299 = vmatpush.msra.mxu0 0.0
        %1300 = vmatpush.msra.mxu0 0.0
        %1301 = vmatpush.msra.mxu0 0.0
        %1302 = vmatpush.msra.mxu0 %v1183
        %1303 = vmatpush.msra.mxu0 %v1181
        %1304 = vmatpush.msra.mxu0 %v1179
        %1305 = vmatpush.msra.mxu0 %v1177
        %1306 = vmatmul.f32.gmra.mxu0 %v1209
        %v1307 = vpop.f32.mrf.mxu0
        %v1308 = vadd.f32 0.0, %v1307
        %1309 = vmatmul.f32.gmra.mxu0 %v1212
        %v1310 = vpop.f32.mrf.mxu0
        %v1311 = vadd.f32 0.0, %v1310
        %1312 = vmatmul.f32.gmra.mxu0 %v1215
        %v1313 = vpop.f32.mrf.mxu0
        %v1314 = vadd.f32 0.0, %v1313
        %1315 = vmatmul.f32.gmra.mxu0 %v1218
        %v1316 = vpop.f32.mrf.mxu0
        %v1317 = vadd.f32 0.0, %v1316
        %1318 = vdwg.mxu0
        %v1319 = vperm.slane %v1185, 0
        %v1320 = vadd.f32 %v1173, %v1319
        %v1321 = vadd.f32 %v1174, %v1319
        %v1322 = vadd.f32 %v1175, %v1319
        %v1323 = vadd.f32 %v1176, %v1319
        %v1325 = vsel %vm541, %v1238, 0
        %v1328 = vsel %vm541, %v1241, 0
        %v1331 = vsel %vm541, %v1244, 0
        %v1334 = vsel %vm541, %v1247, 0
        %v1337 = vsel %vm541, %v1279, 0
        %v1340 = vsel %vm541, %v1282, 0
        %v1343 = vsel %vm541, %v1285, 0
        %v1346 = vsel %vm541, %v1288, 0
        %1348 = vmatpush.xpose.msra.mxu0 0.0
        %1349 = vmatpush.xpose.msra.mxu0 0.0
        %1350 = vmatpush.xpose.msra.mxu0 0.0
        %1351 = vmatpush.xpose.msra.mxu0 0.0
        %1352 = vmatpush.xpose.msra.mxu0 0.0
        %1353 = vmatpush.xpose.msra.mxu0 0.0
        %1354 = vmatpush.xpose.msra.mxu0 0.0
        %1355 = vmatpush.xpose.msra.mxu0 0.0
        %1356 = vmatpush.xpose.msra.mxu0 0.0
        %1357 = vmatpush.xpose.msra.mxu0 0.0
        %1358 = vmatpush.xpose.msra.mxu0 0.0
        %1359 = vmatpush.xpose.msra.mxu0 0.0
        %1360 = vmatpush.xpose.msra.mxu0 %v1346
        %1361 = vmatpush.xpose.msra.mxu0 %v1343
        %1362 = vmatpush.xpose.msra.mxu0 %v1340
        %1363 = vmatpush.xpose.msra.mxu0 %v1337
        %1364 = vmatmul.f32.gmra.mxu0 %v1325
        %v1365 = vpop.f32.mrf.mxu0
        %v1366 = vadd.f32 0.0, %v1365
        %1367 = vmatmul.f32.gmra.mxu0 %v1328
        %v1368 = vpop.f32.mrf.mxu0
        %v1369 = vadd.f32 0.0, %v1368
        %1370 = vmatmul.f32.gmra.mxu0 %v1331
        %v1371 = vpop.f32.mrf.mxu0
        %v1372 = vadd.f32 0.0, %v1371
        %1373 = vmatmul.f32.gmra.mxu0 %v1334
        %v1374 = vpop.f32.mrf.mxu0
        %v1375 = vadd.f32 0.0, %v1374
        %1376 = vdwg.mxu0
        %v1377 = vmul.f32 %v1366, 0.35355338
        %v1378 = vmul.f32 %v1369, 0.35355338
        %v1379 = vmul.f32 %v1372, 0.35355338
        %v1380 = vmul.f32 %v1375, 0.35355338
        %v1381 = vadd.f32 %v1377, %v387
        %v1382 = vadd.f32 %v1378, %v388
        %v1383 = vadd.f32 %v1379, %v389
        %v1384 = vadd.f32 %v1380, %v390
        %v1385 = vsel %vm510, %v1381, -inf
        %1386 = vmax.xlane.f32.xlu0 %v1385
        %v1387 = vpop.xlane.xlu0 %1386
        %v1388 = vsel %vm510, %v1382, -inf
        %1389 = vmax.xlane.f32.xlu0 %v1388
        %v1390 = vpop.xlane.xlu0 %1389
        %v1391 = vsel %vm510, %v1383, -inf
        %1392 = vmax.xlane.f32.xlu0 %v1391
        %v1393 = vpop.xlane.xlu0 %1392
        %v1394 = vsel %vm510, %v1384, -inf
        %1395 = vmax.xlane.f32.xlu0 %v1394
        %v1396 = vpop.xlane.xlu0 %1395
        %v1397 = vsub.f32 %v1381, %v1387
        %v1398 = vsub.f32 %v1382, %v1390
        %v1399 = vsub.f32 %v1383, %v1393
        %v1400 = vsub.f32 %v1384, %v1396
        %v1401 = vmul.f32 %v1397, 1.442695
        %v1402 = vpow.pop %v1401
        %v1403 = vmul.f32 %v1398, 1.442695
        %v1404 = vpow.pop %v1403
        %v1405 = vmul.f32 %v1399, 1.442695
        %v1406 = vpow.pop %v1405
        %v1407 = vmul.f32 %v1400, 1.442695
        %v1408 = vpow.pop %v1407
        %v1409 = vsel %vm510, %v1402, 0.0
        %1410 = vadd.xlane.f32.xlu0 %v1409
        %v1411 = vpop.xlane.xlu0 %1410
        %v1412 = vsel %vm510, %v1404, 0.0
        %1413 = vadd.xlane.f32.xlu0 %v1412
        %v1414 = vpop.xlane.xlu0 %1413
        %v1415 = vsel %vm510, %v1406, 0.0
        %1416 = vadd.xlane.f32.xlu0 %v1415
        %v1417 = vpop.xlane.xlu0 %1416
        %v1418 = vsel %vm510, %v1408, 0.0
        %1419 = vadd.xlane.f32.xlu0 %v1418
        %v1420 = vpop.xlane.xlu0 %1419
        %v1421 = vrcp.pop %v1411
        %v1422 = vrcp.pop %v1414
        %v1423 = vrcp.pop %v1417
        %v1424 = vrcp.pop %v1420
        %v1425 = vmul.f32 %v1402, %v1421
        %v1426 = vmul.f32 %v1404, %v1422
        %v1427 = vmul.f32 %v1406, %v1423
        %v1428 = vmul.f32 %v1408, %v1424
        %v1430 = vsel %vm510, %v1425, 0
        %v1433 = vsel %vm510, %v1426, 0
        %v1436 = vsel %vm510, %v1427, 0
        %v1439 = vsel %vm510, %v1428, 0
        %1441 = vmatpush.msra.mxu0 0.0
        %1442 = vmatpush.msra.mxu0 0.0
        %1443 = vmatpush.msra.mxu0 0.0
        %1444 = vmatpush.msra.mxu0 0.0
        %1445 = vmatpush.msra.mxu0 0.0
        %1446 = vmatpush.msra.mxu0 0.0
        %1447 = vmatpush.msra.mxu0 0.0
        %1448 = vmatpush.msra.mxu0 0.0
        %1449 = vmatpush.msra.mxu0 0.0
        %1450 = vmatpush.msra.mxu0 0.0
        %1451 = vmatpush.msra.mxu0 0.0
        %1452 = vmatpush.msra.mxu0 0.0
        %1453 = vmatpush.msra.mxu0 %v1317
        %1454 = vmatpush.msra.mxu0 %v1314
        %1455 = vmatpush.msra.mxu0 %v1311
        %1456 = vmatpush.msra.mxu0 %v1308
        %1457 = vmatmul.f32.gmra.mxu0 %v1430
        %v1458 = vpop.f32.mrf.mxu0
        %v1459 = vadd.f32 0.0, %v1458
        %1460 = vmatmul.f32.gmra.mxu0 %v1433
        %v1461 = vpop.f32.mrf.mxu0
        %v1462 = vadd.f32 0.0, %v1461
        %1463 = vmatmul.f32.gmra.mxu0 %v1436
        %v1464 = vpop.f32.mrf.mxu0
        %v1465 = vadd.f32 0.0, %v1464
        %1466 = vmatmul.f32.gmra.mxu0 %v1439
        %v1467 = vpop.f32.mrf.mxu0
        %v1468 = vadd.f32 0.0, %v1467
        %1469 = vdwg.mxu0
        %v1470 = vadd.f32 %v1320, %v1459
        %v1471 = vadd.f32 %v1321, %v1462
        %v1472 = vadd.f32 %v1322, %v1465
        %v1473 = vadd.f32 %v1323, %v1468
        %1474 = vrot.lane.b32.xlu0 %v1238, 120
        %v1475 = vpop.permute.xlu0 %1474
        %1476 = vrot.lane.b32.xlu0 %v1241, 120
        %v1477 = vpop.permute.xlu0 %1476
        %1478 = vrot.lane.b32.xlu0 %v1244, 120
        %v1479 = vpop.permute.xlu0 %1478
        %1480 = vrot.lane.b32.xlu0 %v1247, 120
        %v1481 = vpop.permute.xlu0 %1480
        %1482 = vrot.lane.b32.xlu0 %v1279, 120
        %v1483 = vpop.permute.xlu0 %1482
        %1484 = vrot.lane.b32.xlu0 %v1282, 120
        %v1485 = vpop.permute.xlu0 %1484
        %1486 = vrot.lane.b32.xlu0 %v1285, 120
        %v1487 = vpop.permute.xlu0 %1486
        %1488 = vrot.lane.b32.xlu0 %v1288, 120
        %v1489 = vpop.permute.xlu0 %1488
        %v1490 = vsel %vm541, %v1475, 0
        %v1492 = vsel %vm541, %v1477, 0
        %v1494 = vsel %vm541, %v1479, 0
        %v1496 = vsel %vm541, %v1481, 0
        %v1498 = vsel %vm541, %v1483, 0
        %v1500 = vsel %vm541, %v1485, 0
        %v1502 = vsel %vm541, %v1487, 0
        %v1504 = vsel %vm541, %v1489, 0
        %1506 = vmatpush.xpose.msra.mxu0 0.0
        %1507 = vmatpush.xpose.msra.mxu0 0.0
        %1508 = vmatpush.xpose.msra.mxu0 0.0
        %1509 = vmatpush.xpose.msra.mxu0 0.0
        %1510 = vmatpush.xpose.msra.mxu0 0.0
        %1511 = vmatpush.xpose.msra.mxu0 0.0
        %1512 = vmatpush.xpose.msra.mxu0 0.0
        %1513 = vmatpush.xpose.msra.mxu0 0.0
        %1514 = vmatpush.xpose.msra.mxu0 0.0
        %1515 = vmatpush.xpose.msra.mxu0 0.0
        %1516 = vmatpush.xpose.msra.mxu0 0.0
        %1517 = vmatpush.xpose.msra.mxu0 0.0
        %1518 = vmatpush.xpose.msra.mxu0 %v1504
        %1519 = vmatpush.xpose.msra.mxu0 %v1502
        %1520 = vmatpush.xpose.msra.mxu0 %v1500
        %1521 = vmatpush.xpose.msra.mxu0 %v1498
        %1522 = vmatmul.f32.gmra.mxu0 %v1490
        %v1523 = vpop.f32.mrf.mxu0
        %v1524 = vadd.f32 0.0, %v1523
        %1525 = vmatmul.f32.gmra.mxu0 %v1492
        %v1526 = vpop.f32.mrf.mxu0
        %v1527 = vadd.f32 0.0, %v1526
        %1528 = vmatmul.f32.gmra.mxu0 %v1494
        %v1529 = vpop.f32.mrf.mxu0
        %v1530 = vadd.f32 0.0, %v1529
        %1531 = vmatmul.f32.gmra.mxu0 %v1496
        %v1532 = vpop.f32.mrf.mxu0
        %v1533 = vadd.f32 0.0, %v1532
        %1534 = vdwg.mxu0
        %v1535 = vmul.f32 %v1524, 0.35355338
        %v1536 = vmul.f32 %v1527, 0.35355338
        %v1537 = vmul.f32 %v1530, 0.35355338
        %v1538 = vmul.f32 %v1533, 0.35355338
        %v1539 = vadd.f32 %v1535, %v387
        %v1540 = vadd.f32 %v1536, %v388
        %v1541 = vadd.f32 %v1537, %v389
        %v1542 = vadd.f32 %v1538, %v390
        %v1543 = vsel %vm510, %v1539, -inf
        %1544 = vmax.xlane.f32.xlu0 %v1543
        %v1545 = vpop.xlane.xlu0 %1544
        %v1546 = vsel %vm510, %v1540, -inf
        %1547 = vmax.xlane.f32.xlu0 %v1546
        %v1548 = vpop.xlane.xlu0 %1547
        %v1549 = vsel %vm510, %v1541, -inf
        %1550 = vmax.xlane.f32.xlu0 %v1549
        %v1551 = vpop.xlane.xlu0 %1550
        %v1552 = vsel %vm510, %v1542, -inf
        %1553 = vmax.xlane.f32.xlu0 %v1552
        %v1554 = vpop.xlane.xlu0 %1553
        %v1555 = vsub.f32 %v1539, %v1545
        %v1556 = vsub.f32 %v1540, %v1548
        %v1557 = vsub.f32 %v1541, %v1551
        %v1558 = vsub.f32 %v1542, %v1554
        %v1559 = vmul.f32 %v1555, 1.442695
        %v1560 = vpow.pop %v1559
        %v1561 = vmul.f32 %v1556, 1.442695
        %v1562 = vpow.pop %v1561
        %v1563 = vmul.f32 %v1557, 1.442695
        %v1564 = vpow.pop %v1563
        %v1565 = vmul.f32 %v1558, 1.442695
        %v1566 = vpow.pop %v1565
        %v1567 = vsel %vm510, %v1560, 0.0
        %1568 = vadd.xlane.f32.xlu0 %v1567
        %v1569 = vpop.xlane.xlu0 %1568
        %v1570 = vsel %vm510, %v1562, 0.0
        %1571 = vadd.xlane.f32.xlu0 %v1570
        %v1572 = vpop.xlane.xlu0 %1571
        %v1573 = vsel %vm510, %v1564, 0.0
        %1574 = vadd.xlane.f32.xlu0 %v1573
        %v1575 = vpop.xlane.xlu0 %1574
        %v1576 = vsel %vm510, %v1566, 0.0
        %1577 = vadd.xlane.f32.xlu0 %v1576
        %v1578 = vpop.xlane.xlu0 %1577
        %v1579 = vrcp.pop %v1569
        %v1580 = vrcp.pop %v1572
        %v1581 = vrcp.pop %v1575
        %v1582 = vrcp.pop %v1578
        %v1583 = vmul.f32 %v1560, %v1579
        %v1584 = vmul.f32 %v1562, %v1580
        %v1585 = vmul.f32 %v1564, %v1581
        %v1586 = vmul.f32 %v1566, %v1582
        %1591 = vrot.lane.b32.xlu0 %v1308, 96
        %v1592 = vpop.permute.xlu0 %1591
        %1593 = vrot.lane.b32.xlu0 %v1311, 96
        %v1594 = vpop.permute.xlu0 %1593
        %1595 = vrot.lane.b32.xlu0 %v1314, 96
        %v1596 = vpop.permute.xlu0 %1595
        %1597 = vrot.lane.b32.xlu0 %v1317, 96
        %v1598 = vpop.permute.xlu0 %1597
        %v1604 = vsel %vm510, %v1583, 0
        %v1607 = vsel %vm510, %v1584, 0
        %v1610 = vsel %vm510, %v1585, 0
        %v1613 = vsel %vm510, %v1586, 0
        %1615 = vmatpush.msra.mxu0 0.0
        %1616 = vmatpush.msra.mxu0 0.0
        %1617 = vmatpush.msra.mxu0 0.0
        %1618 = vmatpush.msra.mxu0 0.0
        %1619 = vmatpush.msra.mxu0 0.0
        %1620 = vmatpush.msra.mxu0 0.0
        %1621 = vmatpush.msra.mxu0 0.0
        %1622 = vmatpush.msra.mxu0 0.0
        %1623 = vmatpush.msra.mxu0 0.0
        %1624 = vmatpush.msra.mxu0 0.0
        %1625 = vmatpush.msra.mxu0 0.0
        %1626 = vmatpush.msra.mxu0 0.0
        %1627 = vmatpush.msra.mxu0 %v1598
        %1628 = vmatpush.msra.mxu0 %v1596
        %1629 = vmatpush.msra.mxu0 %v1594
        %1630 = vmatpush.msra.mxu0 %v1592
        %1631 = vmatmul.f32.gmra.mxu0 %v1604
        %v1632 = vpop.f32.mrf.mxu0
        %v1633 = vadd.f32 0.0, %v1632
        %1634 = vmatmul.f32.gmra.mxu0 %v1607
        %v1635 = vpop.f32.mrf.mxu0
        %v1636 = vadd.f32 0.0, %v1635
        %1637 = vmatmul.f32.gmra.mxu0 %v1610
        %v1638 = vpop.f32.mrf.mxu0
        %v1639 = vadd.f32 0.0, %v1638
        %1640 = vmatmul.f32.gmra.mxu0 %v1613
        %v1641 = vpop.f32.mrf.mxu0
        %v1642 = vadd.f32 0.0, %v1641
        %1643 = vdwg.mxu0
        %v1644 = vadd.f32 %v1470, %v1633
        %v1645 = vadd.f32 %v1471, %v1636
        %v1646 = vadd.f32 %v1472, %v1639
        %v1647 = vadd.f32 %v1473, %v1642
        %1648 = vrot.lane.b32.xlu0 %v1238, 112
        %v1649 = vpop.permute.xlu0 %1648
        %1650 = vrot.lane.b32.xlu0 %v1241, 112
        %v1651 = vpop.permute.xlu0 %1650
        %1652 = vrot.lane.b32.xlu0 %v1244, 112
        %v1653 = vpop.permute.xlu0 %1652
        %1654 = vrot.lane.b32.xlu0 %v1247, 112
        %v1655 = vpop.permute.xlu0 %1654
        %1656 = vrot.lane.b32.xlu0 %v1279, 112
        %v1657 = vpop.permute.xlu0 %1656
        %1658 = vrot.lane.b32.xlu0 %v1282, 112
        %v1659 = vpop.permute.xlu0 %1658
        %1660 = vrot.lane.b32.xlu0 %v1285, 112
        %v1661 = vpop.permute.xlu0 %1660
        %1662 = vrot.lane.b32.xlu0 %v1288, 112
        %v1663 = vpop.permute.xlu0 %1662
        %v1664 = vsel %vm541, %v1649, 0
        %v1666 = vsel %vm541, %v1651, 0
        %v1668 = vsel %vm541, %v1653, 0
        %v1670 = vsel %vm541, %v1655, 0
        %v1672 = vsel %vm541, %v1657, 0
        %v1674 = vsel %vm541, %v1659, 0
        %v1676 = vsel %vm541, %v1661, 0
        %v1678 = vsel %vm541, %v1663, 0
        %1680 = vmatpush.xpose.msra.mxu0 0.0
        %1681 = vmatpush.xpose.msra.mxu0 0.0
        %1682 = vmatpush.xpose.msra.mxu0 0.0
        %1683 = vmatpush.xpose.msra.mxu0 0.0
        %1684 = vmatpush.xpose.msra.mxu0 0.0
        %1685 = vmatpush.xpose.msra.mxu0 0.0
        %1686 = vmatpush.xpose.msra.mxu0 0.0
        %1687 = vmatpush.xpose.msra.mxu0 0.0
        %1688 = vmatpush.xpose.msra.mxu0 0.0
        %1689 = vmatpush.xpose.msra.mxu0 0.0
        %1690 = vmatpush.xpose.msra.mxu0 0.0
        %1691 = vmatpush.xpose.msra.mxu0 0.0
        %1692 = vmatpush.xpose.msra.mxu0 %v1678
        %1693 = vmatpush.xpose.msra.mxu0 %v1676
        %1694 = vmatpush.xpose.msra.mxu0 %v1674
        %1695 = vmatpush.xpose.msra.mxu0 %v1672
        %1696 = vmatmul.f32.gmra.mxu0 %v1664
        %v1697 = vpop.f32.mrf.mxu0
        %v1698 = vadd.f32 0.0, %v1697
        %1699 = vmatmul.f32.gmra.mxu0 %v1666
        %v1700 = vpop.f32.mrf.mxu0
        %v1701 = vadd.f32 0.0, %v1700
        %1702 = vmatmul.f32.gmra.mxu0 %v1668
        %v1703 = vpop.f32.mrf.mxu0
        %v1704 = vadd.f32 0.0, %v1703
        %1705 = vmatmul.f32.gmra.mxu0 %v1670
        %v1706 = vpop.f32.mrf.mxu0
        %v1707 = vadd.f32 0.0, %v1706
        %1708 = vdwg.mxu0
        %v1709 = vmul.f32 %v1698, 0.35355338
        %v1710 = vmul.f32 %v1701, 0.35355338
        %v1711 = vmul.f32 %v1704, 0.35355338
        %v1712 = vmul.f32 %v1707, 0.35355338
        %v1713 = vadd.f32 %v1709, %v387
        %v1714 = vadd.f32 %v1710, %v388
        %v1715 = vadd.f32 %v1711, %v389
        %v1716 = vadd.f32 %v1712, %v390
        %v1717 = vsel %vm510, %v1713, -inf
        %1718 = vmax.xlane.f32.xlu0 %v1717
        %v1719 = vpop.xlane.xlu0 %1718
        %v1720 = vsel %vm510, %v1714, -inf
        %1721 = vmax.xlane.f32.xlu0 %v1720
        %v1722 = vpop.xlane.xlu0 %1721
        %v1723 = vsel %vm510, %v1715, -inf
        %1724 = vmax.xlane.f32.xlu0 %v1723
        %v1725 = vpop.xlane.xlu0 %1724
        %v1726 = vsel %vm510, %v1716, -inf
        %1727 = vmax.xlane.f32.xlu0 %v1726
        %v1728 = vpop.xlane.xlu0 %1727
        %v1729 = vsub.f32 %v1713, %v1719
        %v1730 = vsub.f32 %v1714, %v1722
        %v1731 = vsub.f32 %v1715, %v1725
        %v1732 = vsub.f32 %v1716, %v1728
        %v1733 = vmul.f32 %v1729, 1.442695
        %v1734 = vpow.pop %v1733
        %v1735 = vmul.f32 %v1730, 1.442695
        %v1736 = vpow.pop %v1735
        %v1737 = vmul.f32 %v1731, 1.442695
        %v1738 = vpow.pop %v1737
        %v1739 = vmul.f32 %v1732, 1.442695
        %v1740 = vpow.pop %v1739
        %v1741 = vsel %vm510, %v1734, 0.0
        %1742 = vadd.xlane.f32.xlu0 %v1741
        %v1743 = vpop.xlane.xlu0 %1742
        %v1744 = vsel %vm510, %v1736, 0.0
        %1745 = vadd.xlane.f32.xlu0 %v1744
        %v1746 = vpop.xlane.xlu0 %1745
        %v1747 = vsel %vm510, %v1738, 0.0
        %1748 = vadd.xlane.f32.xlu0 %v1747
        %v1749 = vpop.xlane.xlu0 %1748
        %v1750 = vsel %vm510, %v1740, 0.0
        %1751 = vadd.xlane.f32.xlu0 %v1750
        %v1752 = vpop.xlane.xlu0 %1751
        %v1753 = vrcp.pop %v1743
        %v1754 = vrcp.pop %v1746
        %v1755 = vrcp.pop %v1749
        %v1756 = vrcp.pop %v1752
        %v1757 = vmul.f32 %v1734, %v1753
        %v1758 = vmul.f32 %v1736, %v1754
        %v1759 = vmul.f32 %v1738, %v1755
        %v1760 = vmul.f32 %v1740, %v1756
        %1761 = vrot.lane.b32.xlu0 %v1308, 64
        %v1762 = vpop.permute.xlu0 %1761
        %1763 = vrot.lane.b32.xlu0 %v1311, 64
        %v1764 = vpop.permute.xlu0 %1763
        %1765 = vrot.lane.b32.xlu0 %v1314, 64
        %v1766 = vpop.permute.xlu0 %1765
        %1767 = vrot.lane.b32.xlu0 %v1317, 64
        %v1768 = vpop.permute.xlu0 %1767
        %v1774 = vsel %vm510, %v1757, 0
        %v1777 = vsel %vm510, %v1758, 0
        %v1780 = vsel %vm510, %v1759, 0
        %v1783 = vsel %vm510, %v1760, 0
        %1785 = vmatpush.msra.mxu0 0.0
        %1786 = vmatpush.msra.mxu0 0.0
        %1787 = vmatpush.msra.mxu0 0.0
        %1788 = vmatpush.msra.mxu0 0.0
        %1789 = vmatpush.msra.mxu0 0.0
        %1790 = vmatpush.msra.mxu0 0.0
        %1791 = vmatpush.msra.mxu0 0.0
        %1792 = vmatpush.msra.mxu0 0.0
        %1793 = vmatpush.msra.mxu0 0.0
        %1794 = vmatpush.msra.mxu0 0.0
        %1795 = vmatpush.msra.mxu0 0.0
        %1796 = vmatpush.msra.mxu0 0.0
        %1797 = vmatpush.msra.mxu0 %v1768
        %1798 = vmatpush.msra.mxu0 %v1766
        %1799 = vmatpush.msra.mxu0 %v1764
        %1800 = vmatpush.msra.mxu0 %v1762
        %1801 = vmatmul.f32.gmra.mxu0 %v1774
        %v1802 = vpop.f32.mrf.mxu0
        %v1803 = vadd.f32 0.0, %v1802
        %1804 = vmatmul.f32.gmra.mxu0 %v1777
        %v1805 = vpop.f32.mrf.mxu0
        %v1806 = vadd.f32 0.0, %v1805
        %1807 = vmatmul.f32.gmra.mxu0 %v1780
        %v1808 = vpop.f32.mrf.mxu0
        %v1809 = vadd.f32 0.0, %v1808
        %1810 = vmatmul.f32.gmra.mxu0 %v1783
        %v1811 = vpop.f32.mrf.mxu0
        %v1812 = vadd.f32 0.0, %v1811
        %1813 = vdwg.mxu0
        %v1814 = vadd.f32 %v1644, %v1803
        %v1815 = vadd.f32 %v1645, %v1806
        %v1816 = vadd.f32 %v1646, %v1809
        %v1817 = vadd.f32 %v1647, %v1812
        %1818 = vrot.lane.b32.xlu0 %v1238, 104
        %v1819 = vpop.permute.xlu0 %1818
        %1820 = vrot.lane.b32.xlu0 %v1241, 104
        %v1821 = vpop.permute.xlu0 %1820
        %1822 = vrot.lane.b32.xlu0 %v1244, 104
        %v1823 = vpop.permute.xlu0 %1822
        %1824 = vrot.lane.b32.xlu0 %v1247, 104
        %v1825 = vpop.permute.xlu0 %1824
        %1826 = vrot.lane.b32.xlu0 %v1279, 104
        %v1827 = vpop.permute.xlu0 %1826
        %1828 = vrot.lane.b32.xlu0 %v1282, 104
        %v1829 = vpop.permute.xlu0 %1828
        %1830 = vrot.lane.b32.xlu0 %v1285, 104
        %v1831 = vpop.permute.xlu0 %1830
        %1832 = vrot.lane.b32.xlu0 %v1288, 104
        %v1833 = vpop.permute.xlu0 %1832
        %v1834 = vsel %vm541, %v1819, 0
        %v1836 = vsel %vm541, %v1821, 0
        %v1838 = vsel %vm541, %v1823, 0
        %v1840 = vsel %vm541, %v1825, 0
        %v1842 = vsel %vm541, %v1827, 0
        %v1844 = vsel %vm541, %v1829, 0
        %v1846 = vsel %vm541, %v1831, 0
        %v1848 = vsel %vm541, %v1833, 0
        %1850 = vmatpush.xpose.msra.mxu0 0.0
        %1851 = vmatpush.xpose.msra.mxu0 0.0
        %1852 = vmatpush.xpose.msra.mxu0 0.0
        %1853 = vmatpush.xpose.msra.mxu0 0.0
        %1854 = vmatpush.xpose.msra.mxu0 0.0
        %1855 = vmatpush.xpose.msra.mxu0 0.0
        %1856 = vmatpush.xpose.msra.mxu0 0.0
        %1857 = vmatpush.xpose.msra.mxu0 0.0
        %1858 = vmatpush.xpose.msra.mxu0 0.0
        %1859 = vmatpush.xpose.msra.mxu0 0.0
        %1860 = vmatpush.xpose.msra.mxu0 0.0
        %1861 = vmatpush.xpose.msra.mxu0 0.0
        %1862 = vmatpush.xpose.msra.mxu0 %v1848
        %1863 = vmatpush.xpose.msra.mxu0 %v1846
        %1864 = vmatpush.xpose.msra.mxu0 %v1844
        %1865 = vmatpush.xpose.msra.mxu0 %v1842
        %1866 = vmatmul.f32.gmra.mxu0 %v1834
        %v1867 = vpop.f32.mrf.mxu0
        %v1868 = vadd.f32 0.0, %v1867
        %1869 = vmatmul.f32.gmra.mxu0 %v1836
        %v1870 = vpop.f32.mrf.mxu0
        %v1871 = vadd.f32 0.0, %v1870
        %1872 = vmatmul.f32.gmra.mxu0 %v1838
        %v1873 = vpop.f32.mrf.mxu0
        %v1874 = vadd.f32 0.0, %v1873
        %1875 = vmatmul.f32.gmra.mxu0 %v1840
        %v1876 = vpop.f32.mrf.mxu0
        %v1877 = vadd.f32 0.0, %v1876
        %1878 = vdwg.mxu0
        %v1879 = vmul.f32 %v1868, 0.35355338
        %v1880 = vmul.f32 %v1871, 0.35355338
        %v1881 = vmul.f32 %v1874, 0.35355338
        %v1882 = vmul.f32 %v1877, 0.35355338
        %v1883 = vadd.f32 %v1879, %v387
        %v1884 = vadd.f32 %v1880, %v388
        %v1885 = vadd.f32 %v1881, %v389
        %v1886 = vadd.f32 %v1882, %v390
        %v1887 = vsel %vm510, %v1883, -inf
        %1888 = vmax.xlane.f32.xlu0 %v1887
        %v1889 = vpop.xlane.xlu0 %1888
        %v1890 = vsel %vm510, %v1884, -inf
        %1891 = vmax.xlane.f32.xlu0 %v1890
        %v1892 = vpop.xlane.xlu0 %1891
        %v1893 = vsel %vm510, %v1885, -inf
        %1894 = vmax.xlane.f32.xlu0 %v1893
        %v1895 = vpop.xlane.xlu0 %1894
        %v1896 = vsel %vm510, %v1886, -inf
        %1897 = vmax.xlane.f32.xlu0 %v1896
        %v1898 = vpop.xlane.xlu0 %1897
        %v1899 = vsub.f32 %v1883, %v1889
        %v1900 = vsub.f32 %v1884, %v1892
        %v1901 = vsub.f32 %v1885, %v1895
        %v1902 = vsub.f32 %v1886, %v1898
        %v1903 = vmul.f32 %v1899, 1.442695
        %v1904 = vpow.pop %v1903
        %v1905 = vmul.f32 %v1900, 1.442695
        %v1906 = vpow.pop %v1905
        %v1907 = vmul.f32 %v1901, 1.442695
        %v1908 = vpow.pop %v1907
        %v1909 = vmul.f32 %v1902, 1.442695
        %v1910 = vpow.pop %v1909
        %v1911 = vsel %vm510, %v1904, 0.0
        %1912 = vadd.xlane.f32.xlu0 %v1911
        %v1913 = vpop.xlane.xlu0 %1912
        %v1914 = vsel %vm510, %v1906, 0.0
        %1915 = vadd.xlane.f32.xlu0 %v1914
        %v1916 = vpop.xlane.xlu0 %1915
        %v1917 = vsel %vm510, %v1908, 0.0
        %1918 = vadd.xlane.f32.xlu0 %v1917
        %v1919 = vpop.xlane.xlu0 %1918
        %v1920 = vsel %vm510, %v1910, 0.0
        %1921 = vadd.xlane.f32.xlu0 %v1920
        %v1922 = vpop.xlane.xlu0 %1921
        %v1923 = vrcp.pop %v1913
        %v1924 = vrcp.pop %v1916
        %v1925 = vrcp.pop %v1919
        %v1926 = vrcp.pop %v1922
        %v1927 = vmul.f32 %v1904, %v1923
        %v1928 = vmul.f32 %v1906, %v1924
        %v1929 = vmul.f32 %v1908, %v1925
        %v1930 = vmul.f32 %v1910, %v1926
        %1931 = vrot.lane.b32.xlu0 %v1308, 32
        %v1932 = vpop.permute.xlu0 %1931
        %1933 = vrot.lane.b32.xlu0 %v1311, 32
        %v1934 = vpop.permute.xlu0 %1933
        %1935 = vrot.lane.b32.xlu0 %v1314, 32
        %v1936 = vpop.permute.xlu0 %1935
        %1937 = vrot.lane.b32.xlu0 %v1317, 32
        %v1938 = vpop.permute.xlu0 %1937
        %v1944 = vsel %vm510, %v1927, 0
        %v1947 = vsel %vm510, %v1928, 0
        %v1950 = vsel %vm510, %v1929, 0
        %v1953 = vsel %vm510, %v1930, 0
        %1955 = vmatpush.msra.mxu0 0.0
        %1956 = vmatpush.msra.mxu0 0.0
        %1957 = vmatpush.msra.mxu0 0.0
        %1958 = vmatpush.msra.mxu0 0.0
        %1959 = vmatpush.msra.mxu0 0.0
        %1960 = vmatpush.msra.mxu0 0.0
        %1961 = vmatpush.msra.mxu0 0.0
        %1962 = vmatpush.msra.mxu0 0.0
        %1963 = vmatpush.msra.mxu0 0.0
        %1964 = vmatpush.msra.mxu0 0.0
        %1965 = vmatpush.msra.mxu0 0.0
        %1966 = vmatpush.msra.mxu0 0.0
        %1967 = vmatpush.msra.mxu0 %v1938
        %1968 = vmatpush.msra.mxu0 %v1936
        %1969 = vmatpush.msra.mxu0 %v1934
        %1970 = vmatpush.msra.mxu0 %v1932
        %1971 = vmatmul.f32.gmra.mxu0 %v1944
        %v1972 = vpop.f32.mrf.mxu0
        %v1973 = vadd.f32 0.0, %v1972
        %1974 = vmatmul.f32.gmra.mxu0 %v1947
        %v1975 = vpop.f32.mrf.mxu0
        %v1976 = vadd.f32 0.0, %v1975
        %1977 = vmatmul.f32.gmra.mxu0 %v1950
        %v1978 = vpop.f32.mrf.mxu0
        %v1979 = vadd.f32 0.0, %v1978
        %1980 = vmatmul.f32.gmra.mxu0 %v1953
        %v1981 = vpop.f32.mrf.mxu0
        %v1982 = vadd.f32 0.0, %v1981
        %1983 = vdwg.mxu0
        %v1984 = vadd.f32 %v1814, %v1973
        %v1985 = vadd.f32 %v1815, %v1976
        %v1986 = vadd.f32 %v1816, %v1979
        %v1987 = vadd.f32 %v1817, %v1982
        %v1988 = vsel %vm510, %v1984, 0.0
        %1989 = vadd.xlane.f32.xlu0 %v1988
        %v1990 = vpop.xlane.xlu0 %1989
        %v1991 = vsel %vm510, %v1985, 0.0
        %1992 = vadd.xlane.f32.xlu0 %v1991
        %v1993 = vpop.xlane.xlu0 %1992
        %v1994 = vsel %vm510, %v1986, 0.0
        %1995 = vadd.xlane.f32.xlu0 %v1994
        %v1996 = vpop.xlane.xlu0 %1995
        %v1997 = vsel %vm510, %v1987, 0.0
        %1998 = vadd.xlane.f32.xlu0 %v1997
        %v1999 = vpop.xlane.xlu0 %1998
        %v2000 = vmul.f32 %v1990, %v1090
        %v2001 = vmul.f32 %v1993, %v1090
        %v2002 = vmul.f32 %v1996, %v1090
        %v2003 = vmul.f32 %v1999, %v1090
        %v2004 = vsub.f32 %v1984, %v2000
        %v2005 = vsub.f32 %v1985, %v2001
        %v2006 = vsub.f32 %v1986, %v2002
        %v2007 = vsub.f32 %v1987, %v2003
        %v2008 = vmul.f32 %v2004, %v2004
        %v2009 = vmul.f32 %v2005, %v2005
        %v2010 = vmul.f32 %v2006, %v2006
        %v2011 = vmul.f32 %v2007, %v2007
        %v2012 = vsel %vm510, %v2008, 0.0
        %2013 = vadd.xlane.f32.xlu0 %v2012
        %v2014 = vpop.xlane.xlu0 %2013
        %v2015 = vsel %vm510, %v2009, 0.0
        %2016 = vadd.xlane.f32.xlu0 %v2015
        %v2017 = vpop.xlane.xlu0 %2016
        %v2018 = vsel %vm510, %v2010, 0.0
        %2019 = vadd.xlane.f32.xlu0 %v2018
        %v2020 = vpop.xlane.xlu0 %2019
        %v2021 = vsel %vm510, %v2011, 0.0
        %2022 = vadd.xlane.f32.xlu0 %v2021
        %v2023 = vpop.xlane.xlu0 %2022
        %v2024 = vmul.f32 %v2014, %v1090
        %v2025 = vmul.f32 %v2017, %v1090
        %v2026 = vmul.f32 %v2020, %v1090
        %v2027 = vmul.f32 %v2023, %v1090
        %v2028 = vadd.f32 %v2024, 1e-06
        %v2029 = vadd.f32 %v2025, 1e-06
        %v2030 = vadd.f32 %v2026, 1e-06
        %v2031 = vadd.f32 %v2027, 1e-06
        %v2032 = vrsqrt.pop %v2028
        %v2033 = vmul.f32 %v2032, %v2028
        %v2034 = vmul.f32 %v2033, %v2032
        %v2035 = vmul.f32 0.5, %v2034
        %v2036 = vsub.f32 1.5, %v2035
        %v2037 = vmul.f32 %v2032, %v2036
        %vm2038 = vweird.f32 %v2028
        %vm2039 = vweird.f32 %v2032
        %vm2040 = vmor %vm2038, %vm2039
        %v2041 = vsel %vm2040, %v2032, %v2037
        %v2042 = vrsqrt.pop %v2029
        %v2043 = vmul.f32 %v2042, %v2029
        %v2044 = vmul.f32 %v2043, %v2042
        %v2045 = vmul.f32 0.5, %v2044
        %v2046 = vsub.f32 1.5, %v2045
        %v2047 = vmul.f32 %v2042, %v2046
        %vm2048 = vweird.f32 %v2029
        %vm2049 = vweird.f32 %v2042
        %vm2050 = vmor %vm2048, %vm2049
        %v2051 = vsel %vm2050, %v2042, %v2047
        %v2052 = vrsqrt.pop %v2030
        %v2053 = vmul.f32 %v2052, %v2030
        %v2054 = vmul.f32 %v2053, %v2052
        %v2055 = vmul.f32 0.5, %v2054
        %v2056 = vsub.f32 1.5, %v2055
        %v2057 = vmul.f32 %v2052, %v2056
        %vm2058 = vweird.f32 %v2030
        %vm2059 = vweird.f32 %v2052
        %vm2060 = vmor %vm2058, %vm2059
        %v2061 = vsel %vm2060, %v2052, %v2057
        %v2062 = vrsqrt.pop %v2031
        %v2063 = vmul.f32 %v2062, %v2031
        %v2064 = vmul.f32 %v2063, %v2062
        %v2065 = vmul.f32 0.5, %v2064
        %v2066 = vsub.f32 1.5, %v2065
        %v2067 = vmul.f32 %v2062, %v2066
        %vm2068 = vweird.f32 %v2031
        %vm2069 = vweird.f32 %v2062
        %vm2070 = vmor %vm2068, %vm2069
        %v2071 = vsel %vm2070, %v2062, %v2067
        %v2072 = vmul.f32 %v2004, %v2041
        %v2073 = vmul.f32 %v2005, %v2051
        %v2074 = vmul.f32 %v2006, %v2061
        %v2075 = vmul.f32 %v2007, %v2071
        %v2076 = vperm.slane %v1186, 0
        %v2077 = vmul.f32 %v2072, %v2076
        %v2078 = vmul.f32 %v2073, %v2076
        %v2079 = vmul.f32 %v2074, %v2076
        %v2080 = vmul.f32 %v2075, %v2076
        %v2081 = vperm.slane %v1187, 0
        %v2082 = vadd.f32 %v2077, %v2081
        %v2083 = vadd.f32 %v2078, %v2081
        %v2084 = vadd.f32 %v2079, %v2081
        %v2085 = vadd.f32 %v2080, %v2081
        %v2086 = vperm.slane %v1188, 0
        %v2088 = vsel %vm510, %v2082, 0
        %v2091 = vsel %vm510, %v2083, 0
        %v2094 = vsel %vm510, %v2084, 0
        %v2097 = vsel %vm510, %v2085, 0
        %2099 = vmatpush.msra.mxu0 0.0
        %2100 = vmatpush.msra.mxu0 0.0
        %2101 = vmatpush.msra.mxu0 0.0
        %2102 = vmatpush.msra.mxu0 0.0
        %2103 = vmatpush.msra.mxu0 0.0
        %2104 = vmatpush.msra.mxu0 0.0
        %2105 = vmatpush.msra.mxu0 0.0
        %2106 = vmatpush.msra.mxu0 0.0
        %2107 = vmatpush.msra.mxu0 0.0
        %2108 = vmatpush.msra.mxu0 0.0
        %2109 = vmatpush.msra.mxu0 0.0
        %2110 = vmatpush.msra.mxu0 0.0
        %2111 = vmatpush.msra.mxu0 %v1184
        %2112 = vmatpush.msra.mxu0 %v1182
        %2113 = vmatpush.msra.mxu0 %v1180
        %2114 = vmatpush.msra.mxu0 %v1178
        %2115 = vmatmul.f32.gmra.mxu0 %v2088
        %v2116 = vpop.f32.mrf.mxu0
        %v2117 = vadd.f32 %v2086, %v2116
        %2118 = vmatmul.f32.gmra.mxu0 %v2091
        %v2119 = vpop.f32.mrf.mxu0
        %v2120 = vadd.f32 %v2086, %v2119
        %2121 = vmatmul.f32.gmra.mxu0 %v2094
        %v2122 = vpop.f32.mrf.mxu0
        %v2123 = vadd.f32 %v2086, %v2122
        %2124 = vmatmul.f32.gmra.mxu0 %v2097
        %v2125 = vpop.f32.mrf.mxu0
        %v2126 = vadd.f32 %v2086, %v2125
        %2127 = vdwg.mxu0
        %v2128 = vmul.f32 %v2117, 0.5
        %v2129 = vmul.f32 %v2120, 0.5
        %v2130 = vmul.f32 %v2123, 0.5
        %v2131 = vmul.f32 %v2126, 0.5
        %v2132 = vmul.f32 %v2117, 0.044715
        %v2133 = vmul.f32 %v2120, 0.044715
        %v2134 = vmul.f32 %v2123, 0.044715
        %v2135 = vmul.f32 %v2126, 0.044715
        %v2136 = vmul.f32 %v2132, %v2117
        %v2137 = vmul.f32 %v2133, %v2120
        %v2138 = vmul.f32 %v2134, %v2123
        %v2139 = vmul.f32 %v2135, %v2126
        %v2140 = vmul.f32 %v2136, %v2117
        %v2141 = vmul.f32 %v2137, %v2120
        %v2142 = vmul.f32 %v2138, %v2123
        %v2143 = vmul.f32 %v2139, %v2126
        %v2144 = vadd.f32 %v2117, %v2140
        %v2145 = vadd.f32 %v2120, %v2141
        %v2146 = vadd.f32 %v2123, %v2142
        %v2147 = vadd.f32 %v2126, %v2143
        %v2148 = vmul.f32 %v2144, 0.7978846
        %v2149 = vmul.f32 %v2145, 0.7978846
        %v2150 = vmul.f32 %v2146, 0.7978846
        %v2151 = vmul.f32 %v2147, 0.7978846
        %v2152 = vtanh.pop %v2148
        %v2153 = vtanh.pop %v2149
        %v2154 = vtanh.pop %v2150
        %v2155 = vtanh.pop %v2151
        %v2156 = vadd.f32 %v2152, 1.0
        %v2157 = vadd.f32 %v2153, 1.0
        %v2158 = vadd.f32 %v2154, 1.0
        %v2159 = vadd.f32 %v2155, 1.0
        %v2160 = vmul.f32 %v2128, %v2156
        %v2161 = vmul.f32 %v2129, %v2157
        %v2162 = vmul.f32 %v2130, %v2158
        %v2163 = vmul.f32 %v2131, %v2159
        %v2164 = vld [vmem:[%s7] sm:$0xff]
        %v2165 = vld [vmem:[%s7 + $0x8] sm:$0xff]
        %v2166 = vld [vmem:[%s7 + $0x10] sm:$0xff]
        %v2167 = vld [vmem:[%s7 + $0x18] sm:$0xff]
        %v2168 = vld [vmem:[%s7 + $0x20] sm:$0xff]
        %v2169 = vld [vmem:[%s7 + $0x28] sm:$0xff]
        %v2170 = vld [vmem:[%s7 + $0x30] sm:$0xff]
        %v2171 = vld [vmem:[%s7 + $0x38] sm:$0xff]
        %v2172 = vperm.slane %v1189, 0
        %vm2173 = vcmask 523264
        %v2175 = vsel %vm2173, %v2160, 0
        %v2178 = vsel %vm2173, %v2161, 0
        %v2181 = vsel %vm2173, %v2162, 0
        %v2184 = vsel %vm2173, %v2163, 0
        %2186 = vmatpush.msra.mxu0 0.0
        %2187 = vmatpush.msra.mxu0 0.0
        %2188 = vmatpush.msra.mxu0 0.0
        %2189 = vmatpush.msra.mxu0 0.0
        %2190 = vmatpush.msra.mxu0 0.0
        %2191 = vmatpush.msra.mxu0 0.0
        %2192 = vmatpush.msra.mxu0 0.0
        %2193 = vmatpush.msra.mxu0 0.0
        %2194 = vmatpush.msra.mxu0 %v2171
        %2195 = vmatpush.msra.mxu0 %v2170
        %2196 = vmatpush.msra.mxu0 %v2169
        %2197 = vmatpush.msra.mxu0 %v2168
        %2198 = vmatpush.msra.mxu0 %v2167
        %2199 = vmatpush.msra.mxu0 %v2166
        %2200 = vmatpush.msra.mxu0 %v2165
        %2201 = vmatpush.msra.mxu0 %v2164
        %2202 = vmatmul.f32.gmra.mxu0 %v2175
        %v2203 = vpop.f32.mrf.mxu0
        %v2204 = vadd.f32 %v2172, %v2203
        %2205 = vmatmul.f32.gmra.mxu0 %v2178
        %v2206 = vpop.f32.mrf.mxu0
        %v2207 = vadd.f32 %v2172, %v2206
        %2208 = vmatmul.f32.gmra.mxu0 %v2181
        %v2209 = vpop.f32.mrf.mxu0
        %v2210 = vadd.f32 %v2172, %v2209
        %2211 = vmatmul.f32.gmra.mxu0 %v2184
        %v2212 = vpop.f32.mrf.mxu0
        %v2213 = vadd.f32 %v2172, %v2212
        %2214 = vdwg.mxu0
        %v2215 = vadd.f32 %v2204, %v2082
        %v2216 = vadd.f32 %v2207, %v2083
        %v2217 = vadd.f32 %v2210, %v2084
        %v2218 = vadd.f32 %v2213, %v2085
        %v2219 = vsel %vm510, %v2215, 0.0
        %2220 = vadd.xlane.f32.xlu0 %v2219
        %v2221 = vpop.xlane.xlu0 %2220
        %v2222 = vsel %vm510, %v2216, 0.0
        %2223 = vadd.xlane.f32.xlu0 %v2222
        %v2224 = vpop.xlane.xlu0 %2223
        %v2225 = vsel %vm510, %v2217, 0.0
        %2226 = vadd.xlane.f32.xlu0 %v2225
        %v2227 = vpop.xlane.xlu0 %2226
        %v2228 = vsel %vm510, %v2218, 0.0
        %2229 = vadd.xlane.f32.xlu0 %v2228
        %v2230 = vpop.xlane.xlu0 %2229
        %v2231 = vmul.f32 %v2221, %v1090
        %v2232 = vmul.f32 %v2224, %v1090
        %v2233 = vmul.f32 %v2227, %v1090
        %v2234 = vmul.f32 %v2230, %v1090
        %v2235 = vsub.f32 %v2215, %v2231
        %v2236 = vsub.f32 %v2216, %v2232
        %v2237 = vsub.f32 %v2217, %v2233
        %v2238 = vsub.f32 %v2218, %v2234
        %v2239 = vmul.f32 %v2235, %v2235
        %v2240 = vmul.f32 %v2236, %v2236
        %v2241 = vmul.f32 %v2237, %v2237
        %v2242 = vmul.f32 %v2238, %v2238
        %v2243 = vsel %vm510, %v2239, 0.0
        %2244 = vadd.xlane.f32.xlu0 %v2243
        %v2245 = vpop.xlane.xlu0 %2244
        %v2246 = vsel %vm510, %v2240, 0.0
        %2247 = vadd.xlane.f32.xlu0 %v2246
        %v2248 = vpop.xlane.xlu0 %2247
        %v2249 = vsel %vm510, %v2241, 0.0
        %2250 = vadd.xlane.f32.xlu0 %v2249
        %v2251 = vpop.xlane.xlu0 %2250
        %v2252 = vsel %vm510, %v2242, 0.0
        %2253 = vadd.xlane.f32.xlu0 %v2252
        %v2254 = vpop.xlane.xlu0 %2253
        %v2255 = vmul.f32 %v2245, %v1090
        %v2256 = vmul.f32 %v2248, %v1090
        %v2257 = vmul.f32 %v2251, %v1090
        %v2258 = vmul.f32 %v2254, %v1090
        %v2259 = vadd.f32 %v2255, 1e-06
        %v2260 = vadd.f32 %v2256, 1e-06
        %v2261 = vadd.f32 %v2257, 1e-06
        %v2262 = vadd.f32 %v2258, 1e-06
        %v2263 = vrsqrt.pop %v2259
        %v2264 = vmul.f32 %v2263, %v2259
        %v2265 = vmul.f32 %v2264, %v2263
        %v2266 = vmul.f32 0.5, %v2265
        %v2267 = vsub.f32 1.5, %v2266
        %v2268 = vmul.f32 %v2263, %v2267
        %vm2269 = vweird.f32 %v2259
        %vm2270 = vweird.f32 %v2263
        %vm2271 = vmor %vm2269, %vm2270
        %v2272 = vsel %vm2271, %v2263, %v2268
        %v2273 = vrsqrt.pop %v2260
        %v2274 = vmul.f32 %v2273, %v2260
        %v2275 = vmul.f32 %v2274, %v2273
        %v2276 = vmul.f32 0.5, %v2275
        %v2277 = vsub.f32 1.5, %v2276
        %v2278 = vmul.f32 %v2273, %v2277
        %vm2279 = vweird.f32 %v2260
        %vm2280 = vweird.f32 %v2273
        %vm2281 = vmor %vm2279, %vm2280
        %v2282 = vsel %vm2281, %v2273, %v2278
        %v2283 = vrsqrt.pop %v2261
        %v2284 = vmul.f32 %v2283, %v2261
        %v2285 = vmul.f32 %v2284, %v2283
        %v2286 = vmul.f32 0.5, %v2285
        %v2287 = vsub.f32 1.5, %v2286
        %v2288 = vmul.f32 %v2283, %v2287
        %vm2289 = vweird.f32 %v2261
        %vm2290 = vweird.f32 %v2283
        %vm2291 = vmor %vm2289, %vm2290
        %v2292 = vsel %vm2291, %v2283, %v2288
        %v2293 = vrsqrt.pop %v2262
        %v2294 = vmul.f32 %v2293, %v2262
        %v2295 = vmul.f32 %v2294, %v2293
        %v2296 = vmul.f32 0.5, %v2295
        %v2297 = vsub.f32 1.5, %v2296
        %v2298 = vmul.f32 %v2293, %v2297
        %vm2299 = vweird.f32 %v2262
        %vm2300 = vweird.f32 %v2293
        %vm2301 = vmor %vm2299, %vm2300
        %v2302 = vsel %vm2301, %v2293, %v2298
        %v2303 = vmul.f32 %v2235, %v2272
        %v2304 = vmul.f32 %v2236, %v2282
        %v2305 = vmul.f32 %v2237, %v2292
        %v2306 = vmul.f32 %v2238, %v2302
        %v2307 = vperm.slane %v1190, 0
        %v2308 = vmul.f32 %v2303, %v2307
        %v2309 = vmul.f32 %v2304, %v2307
        %v2310 = vmul.f32 %v2305, %v2307
        %v2311 = vmul.f32 %v2306, %v2307
        %v2312 = vperm.slane %v1191, 0
        %v2313 = vadd.f32 %v2308, %v2312
        %v2314 = vadd.f32 %v2309, %v2312
        %v2315 = vadd.f32 %v2310, %v2312
        %v2316 = vadd.f32 %v2311, %v2312
        %s2317 = scalar_lea.vmem [#allocation5], 64
        %v2318 = vld [vmem:[%s2317] sm:$0xff]
        %v2319 = vld [vmem:[%s2317 + $0x8] sm:$0xff]
        %v2320 = vld [vmem:[%s2317 + $0x10] sm:$0xff]
        %v2321 = vld [vmem:[%s2317 + $0x18] sm:$0xff]
        %v2322 = vld [vmem:[%s2317 + $0x20] sm:$0xff]
        %v2323 = vld [vmem:[%s2317 + $0x28] sm:$0xff]
        %v2324 = vld [vmem:[%s2317 + $0x30] sm:$0xff]
        %v2325 = vld [vmem:[%s2317 + $0x38] sm:$0xff]
        %v2326 = vld [vmem:[%s8 + $0x10] sm:$0x1]
        %v2327 = vld [vmem:[%s8 + $0x11] sm:$0x1]
        %v2328 = vld [vmem:[%s8 + $0x12] sm:$0x1]
        %v2329 = vld [vmem:[%s8 + $0x13] sm:$0x1]
        %v2330 = vld [vmem:[%s8 + $0x14] sm:$0x1]
        %v2331 = vld [vmem:[%s8 + $0x15] sm:$0x1]
        %v2332 = vld [vmem:[%s8 + $0x16] sm:$0x1]
        %2337 = vrot.lane.b32.xlu0 %v2319, 64
        %v2338 = vpop.permute.xlu0 %2337
        %2339 = vrot.lane.b32.xlu0 %v2321, 64
        %v2340 = vpop.permute.xlu0 %2339
        %2341 = vrot.lane.b32.xlu0 %v2323, 64
        %v2342 = vpop.permute.xlu0 %2341
        %2343 = vrot.lane.b32.xlu0 %v2325, 64
        %v2344 = vpop.permute.xlu0 %2343
        %v2350 = vsel %vm510, %v2313, 0
        %v2353 = vsel %vm510, %v2314, 0
        %v2356 = vsel %vm510, %v2315, 0
        %v2359 = vsel %vm510, %v2316, 0
        %2361 = vmatpush.msra.mxu0 0.0
        %2362 = vmatpush.msra.mxu0 0.0
        %2363 = vmatpush.msra.mxu0 0.0
        %2364 = vmatpush.msra.mxu0 0.0
        %2365 = vmatpush.msra.mxu0 0.0
        %2366 = vmatpush.msra.mxu0 0.0
        %2367 = vmatpush.msra.mxu0 0.0
        %2368 = vmatpush.msra.mxu0 0.0
        %2369 = vmatpush.msra.mxu0 0.0
        %2370 = vmatpush.msra.mxu0 0.0
        %2371 = vmatpush.msra.mxu0 0.0
        %2372 = vmatpush.msra.mxu0 0.0
        %2373 = vmatpush.msra.mxu0 %v2344
        %2374 = vmatpush.msra.mxu0 %v2342
        %2375 = vmatpush.msra.mxu0 %v2340
        %2376 = vmatpush.msra.mxu0 %v2338
        %2377 = vmatmul.f32.gmra.mxu0 %v2350
        %v2378 = vpop.f32.mrf.mxu0
        %v2379 = vadd.f32 0.0, %v2378
        %2380 = vmatmul.f32.gmra.mxu0 %v2353
        %v2381 = vpop.f32.mrf.mxu0
        %v2382 = vadd.f32 0.0, %v2381
        %2383 = vmatmul.f32.gmra.mxu0 %v2356
        %v2384 = vpop.f32.mrf.mxu0
        %v2385 = vadd.f32 0.0, %v2384
        %2386 = vmatmul.f32.gmra.mxu0 %v2359
        %v2387 = vpop.f32.mrf.mxu0
        %v2388 = vadd.f32 0.0, %v2387
        %2389 = vdwg.mxu0
        %2390 = vrot.lane.b32.xlu0 %v2319, 32
        %v2391 = vpop.permute.xlu0 %2390
        %2392 = vrot.lane.b32.xlu0 %v2321, 32
        %v2393 = vpop.permute.xlu0 %2392
        %2394 = vrot.lane.b32.xlu0 %v2323, 32
        %v2395 = vpop.permute.xlu0 %2394
        %2396 = vrot.lane.b32.xlu0 %v2325, 32
        %v2397 = vpop.permute.xlu0 %2396
        %2402 = vmatpush.msra.mxu0 0.0
        %2403 = vmatpush.msra.mxu0 0.0
        %2404 = vmatpush.msra.mxu0 0.0
        %2405 = vmatpush.msra.mxu0 0.0
        %2406 = vmatpush.msra.mxu0 0.0
        %2407 = vmatpush.msra.mxu0 0.0
        %2408 = vmatpush.msra.mxu0 0.0
        %2409 = vmatpush.msra.mxu0 0.0
        %2410 = vmatpush.msra.mxu0 0.0
        %2411 = vmatpush.msra.mxu0 0.0
        %2412 = vmatpush.msra.mxu0 0.0
        %2413 = vmatpush.msra.mxu0 0.0
        %2414 = vmatpush.msra.mxu0 %v2397
        %2415 = vmatpush.msra.mxu0 %v2395
        %2416 = vmatpush.msra.mxu0 %v2393
        %2417 = vmatpush.msra.mxu0 %v2391
        %2418 = vmatmul.f32.gmra.mxu0 %v2350
        %v2419 = vpop.f32.mrf.mxu0
        %v2420 = vadd.f32 0.0, %v2419
        %2421 = vmatmul.f32.gmra.mxu0 %v2353
        %v2422 = vpop.f32.mrf.mxu0
        %v2423 = vadd.f32 0.0, %v2422
        %2424 = vmatmul.f32.gmra.mxu0 %v2356
        %v2425 = vpop.f32.mrf.mxu0
        %v2426 = vadd.f32 0.0, %v2425
        %2427 = vmatmul.f32.gmra.mxu0 %v2359
        %v2428 = vpop.f32.mrf.mxu0
        %v2429 = vadd.f32 0.0, %v2428
        %2430 = vdwg.mxu0
        %2431 = vmatpush.msra.mxu0 0.0
        %2432 = vmatpush.msra.mxu0 0.0
        %2433 = vmatpush.msra.mxu0 0.0
        %2434 = vmatpush.msra.mxu0 0.0
        %2435 = vmatpush.msra.mxu0 0.0
        %2436 = vmatpush.msra.mxu0 0.0
        %2437 = vmatpush.msra.mxu0 0.0
        %2438 = vmatpush.msra.mxu0 0.0
        %2439 = vmatpush.msra.mxu0 0.0
        %2440 = vmatpush.msra.mxu0 0.0
        %2441 = vmatpush.msra.mxu0 0.0
        %2442 = vmatpush.msra.mxu0 0.0
        %2443 = vmatpush.msra.mxu0 %v2324
        %2444 = vmatpush.msra.mxu0 %v2322
        %2445 = vmatpush.msra.mxu0 %v2320
        %2446 = vmatpush.msra.mxu0 %v2318
        %2447 = vmatmul.f32.gmra.mxu0 %v2350
        %v2448 = vpop.f32.mrf.mxu0
        %v2449 = vadd.f32 0.0, %v2448
        %2450 = vmatmul.f32.gmra.mxu0 %v2353
        %v2451 = vpop.f32.mrf.mxu0
        %v2452 = vadd.f32 0.0, %v2451
        %2453 = vmatmul.f32.gmra.mxu0 %v2356
        %v2454 = vpop.f32.mrf.mxu0
        %v2455 = vadd.f32 0.0, %v2454
        %2456 = vmatmul.f32.gmra.mxu0 %v2359
        %v2457 = vpop.f32.mrf.mxu0
        %v2458 = vadd.f32 0.0, %v2457
        %2459 = vdwg.mxu0
        %v2460 = vperm.slane %v2326, 0
        %v2461 = vadd.f32 %v2313, %v2460
        %v2462 = vadd.f32 %v2314, %v2460
        %v2463 = vadd.f32 %v2315, %v2460
        %v2464 = vadd.f32 %v2316, %v2460
        %v2466 = vsel %vm541, %v2379, 0
        %v2469 = vsel %vm541, %v2382, 0
        %v2472 = vsel %vm541, %v2385, 0
        %v2475 = vsel %vm541, %v2388, 0
        %v2478 = vsel %vm541, %v2420, 0
        %v2481 = vsel %vm541, %v2423, 0
        %v2484 = vsel %vm541, %v2426, 0
        %v2487 = vsel %vm541, %v2429, 0
        %2489 = vmatpush.xpose.msra.mxu0 0.0
        %2490 = vmatpush.xpose.msra.mxu0 0.0
        %2491 = vmatpush.xpose.msra.mxu0 0.0
        %2492 = vmatpush.xpose.msra.mxu0 0.0
        %2493 = vmatpush.xpose.msra.mxu0 0.0
        %2494 = vmatpush.xpose.msra.mxu0 0.0
        %2495 = vmatpush.xpose.msra.mxu0 0.0
        %2496 = vmatpush.xpose.msra.mxu0 0.0
        %2497 = vmatpush.xpose.msra.mxu0 0.0
        %2498 = vmatpush.xpose.msra.mxu0 0.0
        %2499 = vmatpush.xpose.msra.mxu0 0.0
        %2500 = vmatpush.xpose.msra.mxu0 0.0
        %2501 = vmatpush.xpose.msra.mxu0 %v2487
        %2502 = vmatpush.xpose.msra.mxu0 %v2484
        %2503 = vmatpush.xpose.msra.mxu0 %v2481
        %2504 = vmatpush.xpose.msra.mxu0 %v2478
        %2505 = vmatmul.f32.gmra.mxu0 %v2466
        %v2506 = vpop.f32.mrf.mxu0
        %v2507 = vadd.f32 0.0, %v2506
        %2508 = vmatmul.f32.gmra.mxu0 %v2469
        %v2509 = vpop.f32.mrf.mxu0
        %v2510 = vadd.f32 0.0, %v2509
        %2511 = vmatmul.f32.gmra.mxu0 %v2472
        %v2512 = vpop.f32.mrf.mxu0
        %v2513 = vadd.f32 0.0, %v2512
        %2514 = vmatmul.f32.gmra.mxu0 %v2475
        %v2515 = vpop.f32.mrf.mxu0
        %v2516 = vadd.f32 0.0, %v2515
        %2517 = vdwg.mxu0
        %v2518 = vmul.f32 %v2507, 0.35355338
        %v2519 = vmul.f32 %v2510, 0.35355338
        %v2520 = vmul.f32 %v2513, 0.35355338
        %v2521 = vmul.f32 %v2516, 0.35355338
        %v2522 = vadd.f32 %v2518, %v387
        %v2523 = vadd.f32 %v2519, %v388
        %v2524 = vadd.f32 %v2520, %v389
        %v2525 = vadd.f32 %v2521, %v390
        %v2526 = vsel %vm510, %v2522, -inf
        %2527 = vmax.xlane.f32.xlu0 %v2526
        %v2528 = vpop.xlane.xlu0 %2527
        %v2529 = vsel %vm510, %v2523, -inf
        %2530 = vmax.xlane.f32.xlu0 %v2529
        %v2531 = vpop.xlane.xlu0 %2530
        %v2532 = vsel %vm510, %v2524, -inf
        %2533 = vmax.xlane.f32.xlu0 %v2532
        %v2534 = vpop.xlane.xlu0 %2533
        %v2535 = vsel %vm510, %v2525, -inf
        %2536 = vmax.xlane.f32.xlu0 %v2535
        %v2537 = vpop.xlane.xlu0 %2536
        %v2538 = vsub.f32 %v2522, %v2528
        %v2539 = vsub.f32 %v2523, %v2531
        %v2540 = vsub.f32 %v2524, %v2534
        %v2541 = vsub.f32 %v2525, %v2537
        %v2542 = vmul.f32 %v2538, 1.442695
        %v2543 = vpow.pop %v2542
        %v2544 = vmul.f32 %v2539, 1.442695
        %v2545 = vpow.pop %v2544
        %v2546 = vmul.f32 %v2540, 1.442695
        %v2547 = vpow.pop %v2546
        %v2548 = vmul.f32 %v2541, 1.442695
        %v2549 = vpow.pop %v2548
        %v2550 = vsel %vm510, %v2543, 0.0
        %2551 = vadd.xlane.f32.xlu0 %v2550
        %v2552 = vpop.xlane.xlu0 %2551
        %v2553 = vsel %vm510, %v2545, 0.0
        %2554 = vadd.xlane.f32.xlu0 %v2553
        %v2555 = vpop.xlane.xlu0 %2554
        %v2556 = vsel %vm510, %v2547, 0.0
        %2557 = vadd.xlane.f32.xlu0 %v2556
        %v2558 = vpop.xlane.xlu0 %2557
        %v2559 = vsel %vm510, %v2549, 0.0
        %2560 = vadd.xlane.f32.xlu0 %v2559
        %v2561 = vpop.xlane.xlu0 %2560
        %v2562 = vrcp.pop %v2552
        %v2563 = vrcp.pop %v2555
        %v2564 = vrcp.pop %v2558
        %v2565 = vrcp.pop %v2561
        %v2566 = vmul.f32 %v2543, %v2562
        %v2567 = vmul.f32 %v2545, %v2563
        %v2568 = vmul.f32 %v2547, %v2564
        %v2569 = vmul.f32 %v2549, %v2565
        %v2571 = vsel %vm510, %v2566, 0
        %v2574 = vsel %vm510, %v2567, 0
        %v2577 = vsel %vm510, %v2568, 0
        %v2580 = vsel %vm510, %v2569, 0
        %2582 = vmatpush.msra.mxu0 0.0
        %2583 = vmatpush.msra.mxu0 0.0
        %2584 = vmatpush.msra.mxu0 0.0
        %2585 = vmatpush.msra.mxu0 0.0
        %2586 = vmatpush.msra.mxu0 0.0
        %2587 = vmatpush.msra.mxu0 0.0
        %2588 = vmatpush.msra.mxu0 0.0
        %2589 = vmatpush.msra.mxu0 0.0
        %2590 = vmatpush.msra.mxu0 0.0
        %2591 = vmatpush.msra.mxu0 0.0
        %2592 = vmatpush.msra.mxu0 0.0
        %2593 = vmatpush.msra.mxu0 0.0
        %2594 = vmatpush.msra.mxu0 %v2458
        %2595 = vmatpush.msra.mxu0 %v2455
        %2596 = vmatpush.msra.mxu0 %v2452
        %2597 = vmatpush.msra.mxu0 %v2449
        %2598 = vmatmul.f32.gmra.mxu0 %v2571
        %v2599 = vpop.f32.mrf.mxu0
        %v2600 = vadd.f32 0.0, %v2599
        %2601 = vmatmul.f32.gmra.mxu0 %v2574
        %v2602 = vpop.f32.mrf.mxu0
        %v2603 = vadd.f32 0.0, %v2602
        %2604 = vmatmul.f32.gmra.mxu0 %v2577
        %v2605 = vpop.f32.mrf.mxu0
        %v2606 = vadd.f32 0.0, %v2605
        %2607 = vmatmul.f32.gmra.mxu0 %v2580
        %v2608 = vpop.f32.mrf.mxu0
        %v2609 = vadd.f32 0.0, %v2608
        %2610 = vdwg.mxu0
        %v2611 = vadd.f32 %v2461, %v2600
        %v2612 = vadd.f32 %v2462, %v2603
        %v2613 = vadd.f32 %v2463, %v2606
        %v2614 = vadd.f32 %v2464, %v2609
        %2615 = vrot.lane.b32.xlu0 %v2379, 120
        %v2616 = vpop.permute.xlu0 %2615
        %2617 = vrot.lane.b32.xlu0 %v2382, 120
        %v2618 = vpop.permute.xlu0 %2617
        %2619 = vrot.lane.b32.xlu0 %v2385, 120
        %v2620 = vpop.permute.xlu0 %2619
        %2621 = vrot.lane.b32.xlu0 %v2388, 120
        %v2622 = vpop.permute.xlu0 %2621
        %2623 = vrot.lane.b32.xlu0 %v2420, 120
        %v2624 = vpop.permute.xlu0 %2623
        %2625 = vrot.lane.b32.xlu0 %v2423, 120
        %v2626 = vpop.permute.xlu0 %2625
        %2627 = vrot.lane.b32.xlu0 %v2426, 120
        %v2628 = vpop.permute.xlu0 %2627
        %2629 = vrot.lane.b32.xlu0 %v2429, 120
        %v2630 = vpop.permute.xlu0 %2629
        %v2631 = vsel %vm541, %v2616, 0
        %v2633 = vsel %vm541, %v2618, 0
        %v2635 = vsel %vm541, %v2620, 0
        %v2637 = vsel %vm541, %v2622, 0
        %v2639 = vsel %vm541, %v2624, 0
        %v2641 = vsel %vm541, %v2626, 0
        %v2643 = vsel %vm541, %v2628, 0
        %v2645 = vsel %vm541, %v2630, 0
        %2647 = vmatpush.xpose.msra.mxu0 0.0
        %2648 = vmatpush.xpose.msra.mxu0 0.0
        %2649 = vmatpush.xpose.msra.mxu0 0.0
        %2650 = vmatpush.xpose.msra.mxu0 0.0
        %2651 = vmatpush.xpose.msra.mxu0 0.0
        %2652 = vmatpush.xpose.msra.mxu0 0.0
        %2653 = vmatpush.xpose.msra.mxu0 0.0
        %2654 = vmatpush.xpose.msra.mxu0 0.0
        %2655 = vmatpush.xpose.msra.mxu0 0.0
        %2656 = vmatpush.xpose.msra.mxu0 0.0
        %2657 = vmatpush.xpose.msra.mxu0 0.0
        %2658 = vmatpush.xpose.msra.mxu0 0.0
        %2659 = vmatpush.xpose.msra.mxu0 %v2645
        %2660 = vmatpush.xpose.msra.mxu0 %v2643
        %2661 = vmatpush.xpose.msra.mxu0 %v2641
        %2662 = vmatpush.xpose.msra.mxu0 %v2639
        %2663 = vmatmul.f32.gmra.mxu0 %v2631
        %v2664 = vpop.f32.mrf.mxu0
        %v2665 = vadd.f32 0.0, %v2664
        %2666 = vmatmul.f32.gmra.mxu0 %v2633
        %v2667 = vpop.f32.mrf.mxu0
        %v2668 = vadd.f32 0.0, %v2667
        %2669 = vmatmul.f32.gmra.mxu0 %v2635
        %v2670 = vpop.f32.mrf.mxu0
        %v2671 = vadd.f32 0.0, %v2670
        %2672 = vmatmul.f32.gmra.mxu0 %v2637
        %v2673 = vpop.f32.mrf.mxu0
        %v2674 = vadd.f32 0.0, %v2673
        %2675 = vdwg.mxu0
        %v2676 = vmul.f32 %v2665, 0.35355338
        %v2677 = vmul.f32 %v2668, 0.35355338
        %v2678 = vmul.f32 %v2671, 0.35355338
        %v2679 = vmul.f32 %v2674, 0.35355338
        %v2680 = vadd.f32 %v2676, %v387
        %v2681 = vadd.f32 %v2677, %v388
        %v2682 = vadd.f32 %v2678, %v389
        %v2683 = vadd.f32 %v2679, %v390
        %v2684 = vsel %vm510, %v2680, -inf
        %2685 = vmax.xlane.f32.xlu0 %v2684
        %v2686 = vpop.xlane.xlu0 %2685
        %v2687 = vsel %vm510, %v2681, -inf
        %2688 = vmax.xlane.f32.xlu0 %v2687
        %v2689 = vpop.xlane.xlu0 %2688
        %v2690 = vsel %vm510, %v2682, -inf
        %2691 = vmax.xlane.f32.xlu0 %v2690
        %v2692 = vpop.xlane.xlu0 %2691
        %v2693 = vsel %vm510, %v2683, -inf
        %2694 = vmax.xlane.f32.xlu0 %v2693
        %v2695 = vpop.xlane.xlu0 %2694
        %v2696 = vsub.f32 %v2680, %v2686
        %v2697 = vsub.f32 %v2681, %v2689
        %v2698 = vsub.f32 %v2682, %v2692
        %v2699 = vsub.f32 %v2683, %v2695
        %v2700 = vmul.f32 %v2696, 1.442695
        %v2701 = vpow.pop %v2700
        %v2702 = vmul.f32 %v2697, 1.442695
        %v2703 = vpow.pop %v2702
        %v2704 = vmul.f32 %v2698, 1.442695
        %v2705 = vpow.pop %v2704
        %v2706 = vmul.f32 %v2699, 1.442695
        %v2707 = vpow.pop %v2706
        %v2708 = vsel %vm510, %v2701, 0.0
        %2709 = vadd.xlane.f32.xlu0 %v2708
        %v2710 = vpop.xlane.xlu0 %2709
        %v2711 = vsel %vm510, %v2703, 0.0
        %2712 = vadd.xlane.f32.xlu0 %v2711
        %v2713 = vpop.xlane.xlu0 %2712
        %v2714 = vsel %vm510, %v2705, 0.0
        %2715 = vadd.xlane.f32.xlu0 %v2714
        %v2716 = vpop.xlane.xlu0 %2715
        %v2717 = vsel %vm510, %v2707, 0.0
        %2718 = vadd.xlane.f32.xlu0 %v2717
        %v2719 = vpop.xlane.xlu0 %2718
        %v2720 = vrcp.pop %v2710
        %v2721 = vrcp.pop %v2713
        %v2722 = vrcp.pop %v2716
        %v2723 = vrcp.pop %v2719
        %v2724 = vmul.f32 %v2701, %v2720
        %v2725 = vmul.f32 %v2703, %v2721
        %v2726 = vmul.f32 %v2705, %v2722
        %v2727 = vmul.f32 %v2707, %v2723
        %2732 = vrot.lane.b32.xlu0 %v2449, 96
        %v2733 = vpop.permute.xlu0 %2732
        %2734 = vrot.lane.b32.xlu0 %v2452, 96
        %v2735 = vpop.permute.xlu0 %2734
        %2736 = vrot.lane.b32.xlu0 %v2455, 96
        %v2737 = vpop.permute.xlu0 %2736
        %2738 = vrot.lane.b32.xlu0 %v2458, 96
        %v2739 = vpop.permute.xlu0 %2738
        %v2745 = vsel %vm510, %v2724, 0
        %v2748 = vsel %vm510, %v2725, 0
        %v2751 = vsel %vm510, %v2726, 0
        %v2754 = vsel %vm510, %v2727, 0
        %2756 = vmatpush.msra.mxu0 0.0
        %2757 = vmatpush.msra.mxu0 0.0
        %2758 = vmatpush.msra.mxu0 0.0
        %2759 = vmatpush.msra.mxu0 0.0
        %2760 = vmatpush.msra.mxu0 0.0
        %2761 = vmatpush.msra.mxu0 0.0
        %2762 = vmatpush.msra.mxu0 0.0
        %2763 = vmatpush.msra.mxu0 0.0
        %2764 = vmatpush.msra.mxu0 0.0
        %2765 = vmatpush.msra.mxu0 0.0
        %2766 = vmatpush.msra.mxu0 0.0
        %2767 = vmatpush.msra.mxu0 0.0
        %2768 = vmatpush.msra.mxu0 %v2739
        %2769 = vmatpush.msra.mxu0 %v2737
        %2770 = vmatpush.msra.mxu0 %v2735
        %2771 = vmatpush.msra.mxu0 %v2733
        %2772 = vmatmul.f32.gmra.mxu0 %v2745
        %v2773 = vpop.f32.mrf.mxu0
        %v2774 = vadd.f32 0.0, %v2773
        %2775 = vmatmul.f32.gmra.mxu0 %v2748
        %v2776 = vpop.f32.mrf.mxu0
        %v2777 = vadd.f32 0.0, %v2776
        %2778 = vmatmul.f32.gmra.mxu0 %v2751
        %v2779 = vpop.f32.mrf.mxu0
        %v2780 = vadd.f32 0.0, %v2779
        %2781 = vmatmul.f32.gmra.mxu0 %v2754
        %v2782 = vpop.f32.mrf.mxu0
        %v2783 = vadd.f32 0.0, %v2782
        %2784 = vdwg.mxu0
        %v2785 = vadd.f32 %v2611, %v2774
        %v2786 = vadd.f32 %v2612, %v2777
        %v2787 = vadd.f32 %v2613, %v2780
        %v2788 = vadd.f32 %v2614, %v2783
        %2789 = vrot.lane.b32.xlu0 %v2379, 112
        %v2790 = vpop.permute.xlu0 %2789
        %2791 = vrot.lane.b32.xlu0 %v2382, 112
        %v2792 = vpop.permute.xlu0 %2791
        %2793 = vrot.lane.b32.xlu0 %v2385, 112
        %v2794 = vpop.permute.xlu0 %2793
        %2795 = vrot.lane.b32.xlu0 %v2388, 112
        %v2796 = vpop.permute.xlu0 %2795
        %2797 = vrot.lane.b32.xlu0 %v2420, 112
        %v2798 = vpop.permute.xlu0 %2797
        %2799 = vrot.lane.b32.xlu0 %v2423, 112
        %v2800 = vpop.permute.xlu0 %2799
        %2801 = vrot.lane.b32.xlu0 %v2426, 112
        %v2802 = vpop.permute.xlu0 %2801
        %2803 = vrot.lane.b32.xlu0 %v2429, 112
        %v2804 = vpop.permute.xlu0 %2803
        %v2805 = vsel %vm541, %v2790, 0
        %v2807 = vsel %vm541, %v2792, 0
        %v2809 = vsel %vm541, %v2794, 0
        %v2811 = vsel %vm541, %v2796, 0
        %v2813 = vsel %vm541, %v2798, 0
        %v2815 = vsel %vm541, %v2800, 0
        %v2817 = vsel %vm541, %v2802, 0
        %v2819 = vsel %vm541, %v2804, 0
        %2821 = vmatpush.xpose.msra.mxu0 0.0
        %2822 = vmatpush.xpose.msra.mxu0 0.0
        %2823 = vmatpush.xpose.msra.mxu0 0.0
        %2824 = vmatpush.xpose.msra.mxu0 0.0
        %2825 = vmatpush.xpose.msra.mxu0 0.0
        %2826 = vmatpush.xpose.msra.mxu0 0.0
        %2827 = vmatpush.xpose.msra.mxu0 0.0
        %2828 = vmatpush.xpose.msra.mxu0 0.0
        %2829 = vmatpush.xpose.msra.mxu0 0.0
        %2830 = vmatpush.xpose.msra.mxu0 0.0
        %2831 = vmatpush.xpose.msra.mxu0 0.0
        %2832 = vmatpush.xpose.msra.mxu0 0.0
        %2833 = vmatpush.xpose.msra.mxu0 %v2819
        %2834 = vmatpush.xpose.msra.mxu0 %v2817
        %2835 = vmatpush.xpose.msra.mxu0 %v2815
        %2836 = vmatpush.xpose.msra.mxu0 %v2813
        %2837 = vmatmul.f32.gmra.mxu0 %v2805
        %v2838 = vpop.f32.mrf.mxu0
        %v2839 = vadd.f32 0.0, %v2838
        %2840 = vmatmul.f32.gmra.mxu0 %v2807
        %v2841 = vpop.f32.mrf.mxu0
        %v2842 = vadd.f32 0.0, %v2841
        %2843 = vmatmul.f32.gmra.mxu0 %v2809
        %v2844 = vpop.f32.mrf.mxu0
        %v2845 = vadd.f32 0.0, %v2844
        %2846 = vmatmul.f32.gmra.mxu0 %v2811
        %v2847 = vpop.f32.mrf.mxu0
        %v2848 = vadd.f32 0.0, %v2847
        %2849 = vdwg.mxu0
        %v2850 = vmul.f32 %v2839, 0.35355338
        %v2851 = vmul.f32 %v2842, 0.35355338
        %v2852 = vmul.f32 %v2845, 0.35355338
        %v2853 = vmul.f32 %v2848, 0.35355338
        %v2854 = vadd.f32 %v2850, %v387
        %v2855 = vadd.f32 %v2851, %v388
        %v2856 = vadd.f32 %v2852, %v389
        %v2857 = vadd.f32 %v2853, %v390
        %v2858 = vsel %vm510, %v2854, -inf
        %2859 = vmax.xlane.f32.xlu0 %v2858
        %v2860 = vpop.xlane.xlu0 %2859
        %v2861 = vsel %vm510, %v2855, -inf
        %2862 = vmax.xlane.f32.xlu0 %v2861
        %v2863 = vpop.xlane.xlu0 %2862
        %v2864 = vsel %vm510, %v2856, -inf
        %2865 = vmax.xlane.f32.xlu0 %v2864
        %v2866 = vpop.xlane.xlu0 %2865
        %v2867 = vsel %vm510, %v2857, -inf
        %2868 = vmax.xlane.f32.xlu0 %v2867
        %v2869 = vpop.xlane.xlu0 %2868
        %v2870 = vsub.f32 %v2854, %v2860
        %v2871 = vsub.f32 %v2855, %v2863
        %v2872 = vsub.f32 %v2856, %v2866
        %v2873 = vsub.f32 %v2857, %v2869
        %v2874 = vmul.f32 %v2870, 1.442695
        %v2875 = vpow.pop %v2874
        %v2876 = vmul.f32 %v2871, 1.442695
        %v2877 = vpow.pop %v2876
        %v2878 = vmul.f32 %v2872, 1.442695
        %v2879 = vpow.pop %v2878
        %v2880 = vmul.f32 %v2873, 1.442695
        %v2881 = vpow.pop %v2880
        %v2882 = vsel %vm510, %v2875, 0.0
        %2883 = vadd.xlane.f32.xlu0 %v2882
        %v2884 = vpop.xlane.xlu0 %2883
        %v2885 = vsel %vm510, %v2877, 0.0
        %2886 = vadd.xlane.f32.xlu0 %v2885
        %v2887 = vpop.xlane.xlu0 %2886
        %v2888 = vsel %vm510, %v2879, 0.0
        %2889 = vadd.xlane.f32.xlu0 %v2888
        %v2890 = vpop.xlane.xlu0 %2889
        %v2891 = vsel %vm510, %v2881, 0.0
        %2892 = vadd.xlane.f32.xlu0 %v2891
        %v2893 = vpop.xlane.xlu0 %2892
        %v2894 = vrcp.pop %v2884
        %v2895 = vrcp.pop %v2887
        %v2896 = vrcp.pop %v2890
        %v2897 = vrcp.pop %v2893
        %v2898 = vmul.f32 %v2875, %v2894
        %v2899 = vmul.f32 %v2877, %v2895
        %v2900 = vmul.f32 %v2879, %v2896
        %v2901 = vmul.f32 %v2881, %v2897
        %2902 = vrot.lane.b32.xlu0 %v2449, 64
        %v2903 = vpop.permute.xlu0 %2902
        %2904 = vrot.lane.b32.xlu0 %v2452, 64
        %v2905 = vpop.permute.xlu0 %2904
        %2906 = vrot.lane.b32.xlu0 %v2455, 64
        %v2907 = vpop.permute.xlu0 %2906
        %2908 = vrot.lane.b32.xlu0 %v2458, 64
        %v2909 = vpop.permute.xlu0 %2908
        %v2915 = vsel %vm510, %v2898, 0
        %v2918 = vsel %vm510, %v2899, 0
        %v2921 = vsel %vm510, %v2900, 0
        %v2924 = vsel %vm510, %v2901, 0
        %2926 = vmatpush.msra.mxu0 0.0
        %2927 = vmatpush.msra.mxu0 0.0
        %2928 = vmatpush.msra.mxu0 0.0
        %2929 = vmatpush.msra.mxu0 0.0
        %2930 = vmatpush.msra.mxu0 0.0
        %2931 = vmatpush.msra.mxu0 0.0
        %2932 = vmatpush.msra.mxu0 0.0
        %2933 = vmatpush.msra.mxu0 0.0
        %2934 = vmatpush.msra.mxu0 0.0
        %2935 = vmatpush.msra.mxu0 0.0
        %2936 = vmatpush.msra.mxu0 0.0
        %2937 = vmatpush.msra.mxu0 0.0
        %2938 = vmatpush.msra.mxu0 %v2909
        %2939 = vmatpush.msra.mxu0 %v2907
        %2940 = vmatpush.msra.mxu0 %v2905
        %2941 = vmatpush.msra.mxu0 %v2903
        %2942 = vmatmul.f32.gmra.mxu0 %v2915
        %v2943 = vpop.f32.mrf.mxu0
        %v2944 = vadd.f32 0.0, %v2943
        %2945 = vmatmul.f32.gmra.mxu0 %v2918
        %v2946 = vpop.f32.mrf.mxu0
        %v2947 = vadd.f32 0.0, %v2946
        %2948 = vmatmul.f32.gmra.mxu0 %v2921
        %v2949 = vpop.f32.mrf.mxu0
        %v2950 = vadd.f32 0.0, %v2949
        %2951 = vmatmul.f32.gmra.mxu0 %v2924
        %v2952 = vpop.f32.mrf.mxu0
        %v2953 = vadd.f32 0.0, %v2952
        %2954 = vdwg.mxu0
        %v2955 = vadd.f32 %v2785, %v2944
        %v2956 = vadd.f32 %v2786, %v2947
        %v2957 = vadd.f32 %v2787, %v2950
        %v2958 = vadd.f32 %v2788, %v2953
        %2959 = vrot.lane.b32.xlu0 %v2379, 104
        %v2960 = vpop.permute.xlu0 %2959
        %2961 = vrot.lane.b32.xlu0 %v2382, 104
        %v2962 = vpop.permute.xlu0 %2961
        %2963 = vrot.lane.b32.xlu0 %v2385, 104
        %v2964 = vpop.permute.xlu0 %2963
        %2965 = vrot.lane.b32.xlu0 %v2388, 104
        %v2966 = vpop.permute.xlu0 %2965
        %2967 = vrot.lane.b32.xlu0 %v2420, 104
        %v2968 = vpop.permute.xlu0 %2967
        %2969 = vrot.lane.b32.xlu0 %v2423, 104
        %v2970 = vpop.permute.xlu0 %2969
        %2971 = vrot.lane.b32.xlu0 %v2426, 104
        %v2972 = vpop.permute.xlu0 %2971
        %2973 = vrot.lane.b32.xlu0 %v2429, 104
        %v2974 = vpop.permute.xlu0 %2973
        %v2975 = vsel %vm541, %v2960, 0
        %v2977 = vsel %vm541, %v2962, 0
        %v2979 = vsel %vm541, %v2964, 0
        %v2981 = vsel %vm541, %v2966, 0
        %v2983 = vsel %vm541, %v2968, 0
        %v2985 = vsel %vm541, %v2970, 0
        %v2987 = vsel %vm541, %v2972, 0
        %v2989 = vsel %vm541, %v2974, 0
        %2991 = vmatpush.xpose.msra.mxu0 0.0
        %2992 = vmatpush.xpose.msra.mxu0 0.0
        %2993 = vmatpush.xpose.msra.mxu0 0.0
        %2994 = vmatpush.xpose.msra.mxu0 0.0
        %2995 = vmatpush.xpose.msra.mxu0 0.0
        %2996 = vmatpush.xpose.msra.mxu0 0.0
        %2997 = vmatpush.xpose.msra.mxu0 0.0
        %2998 = vmatpush.xpose.msra.mxu0 0.0
        %2999 = vmatpush.xpose.msra.mxu0 0.0
        %3000 = vmatpush.xpose.msra.mxu0 0.0
        %3001 = vmatpush.xpose.msra.mxu0 0.0
        %3002 = vmatpush.xpose.msra.mxu0 0.0
        %3003 = vmatpush.xpose.msra.mxu0 %v2989
        %3004 = vmatpush.xpose.msra.mxu0 %v2987
        %3005 = vmatpush.xpose.msra.mxu0 %v2985
        %3006 = vmatpush.xpose.msra.mxu0 %v2983
        %3007 = vmatmul.f32.gmra.mxu0 %v2975
        %v3008 = vpop.f32.mrf.mxu0
        %v3009 = vadd.f32 0.0, %v3008
        %3010 = vmatmul.f32.gmra.mxu0 %v2977
        %v3011 = vpop.f32.mrf.mxu0
        %v3012 = vadd.f32 0.0, %v3011
        %3013 = vmatmul.f32.gmra.mxu0 %v2979
        %v3014 = vpop.f32.mrf.mxu0
        %v3015 = vadd.f32 0.0, %v3014
        %3016 = vmatmul.f32.gmra.mxu0 %v2981
        %v3017 = vpop.f32.mrf.mxu0
        %v3018 = vadd.f32 0.0, %v3017
        %3019 = vdwg.mxu0
        %v3020 = vmul.f32 %v3009, 0.35355338
        %v3021 = vmul.f32 %v3012, 0.35355338
        %v3022 = vmul.f32 %v3015, 0.35355338
        %v3023 = vmul.f32 %v3018, 0.35355338
        %v3024 = vadd.f32 %v3020, %v387
        %v3025 = vadd.f32 %v3021, %v388
        %v3026 = vadd.f32 %v3022, %v389
        %v3027 = vadd.f32 %v3023, %v390
        %v3028 = vsel %vm510, %v3024, -inf
        %3029 = vmax.xlane.f32.xlu0 %v3028
        %v3030 = vpop.xlane.xlu0 %3029
        %v3031 = vsel %vm510, %v3025, -inf
        %3032 = vmax.xlane.f32.xlu0 %v3031
        %v3033 = vpop.xlane.xlu0 %3032
        %v3034 = vsel %vm510, %v3026, -inf
        %3035 = vmax.xlane.f32.xlu0 %v3034
        %v3036 = vpop.xlane.xlu0 %3035
        %v3037 = vsel %vm510, %v3027, -inf
        %3038 = vmax.xlane.f32.xlu0 %v3037
        %v3039 = vpop.xlane.xlu0 %3038
        %v3040 = vsub.f32 %v3024, %v3030
        %v3041 = vsub.f32 %v3025, %v3033
        %v3042 = vsub.f32 %v3026, %v3036
        %v3043 = vsub.f32 %v3027, %v3039
        %v3044 = vmul.f32 %v3040, 1.442695
        %v3045 = vpow.pop %v3044
        %v3046 = vmul.f32 %v3041, 1.442695
        %v3047 = vpow.pop %v3046
        %v3048 = vmul.f32 %v3042, 1.442695
        %v3049 = vpow.pop %v3048
        %v3050 = vmul.f32 %v3043, 1.442695
        %v3051 = vpow.pop %v3050
        %v3052 = vsel %vm510, %v3045, 0.0
        %3053 = vadd.xlane.f32.xlu0 %v3052
        %v3054 = vpop.xlane.xlu0 %3053
        %v3055 = vsel %vm510, %v3047, 0.0
        %3056 = vadd.xlane.f32.xlu0 %v3055
        %v3057 = vpop.xlane.xlu0 %3056
        %v3058 = vsel %vm510, %v3049, 0.0
        %3059 = vadd.xlane.f32.xlu0 %v3058
        %v3060 = vpop.xlane.xlu0 %3059
        %v3061 = vsel %vm510, %v3051, 0.0
        %3062 = vadd.xlane.f32.xlu0 %v3061
        %v3063 = vpop.xlane.xlu0 %3062
        %v3064 = vrcp.pop %v3054
        %v3065 = vrcp.pop %v3057
        %v3066 = vrcp.pop %v3060
        %v3067 = vrcp.pop %v3063
        %v3068 = vmul.f32 %v3045, %v3064
        %v3069 = vmul.f32 %v3047, %v3065
        %v3070 = vmul.f32 %v3049, %v3066
        %v3071 = vmul.f32 %v3051, %v3067
        %3072 = vrot.lane.b32.xlu0 %v2449, 32
        %v3073 = vpop.permute.xlu0 %3072
        %3074 = vrot.lane.b32.xlu0 %v2452, 32
        %v3075 = vpop.permute.xlu0 %3074
        %3076 = vrot.lane.b32.xlu0 %v2455, 32
        %v3077 = vpop.permute.xlu0 %3076
        %3078 = vrot.lane.b32.xlu0 %v2458, 32
        %v3079 = vpop.permute.xlu0 %3078
        %v3085 = vsel %vm510, %v3068, 0
        %v3088 = vsel %vm510, %v3069, 0
        %v3091 = vsel %vm510, %v3070, 0
        %v3094 = vsel %vm510, %v3071, 0
        %3096 = vmatpush.msra.mxu0 0.0
        %3097 = vmatpush.msra.mxu0 0.0
        %3098 = vmatpush.msra.mxu0 0.0
        %3099 = vmatpush.msra.mxu0 0.0
        %3100 = vmatpush.msra.mxu0 0.0
        %3101 = vmatpush.msra.mxu0 0.0
        %3102 = vmatpush.msra.mxu0 0.0
        %3103 = vmatpush.msra.mxu0 0.0
        %3104 = vmatpush.msra.mxu0 0.0
        %3105 = vmatpush.msra.mxu0 0.0
        %3106 = vmatpush.msra.mxu0 0.0
        %3107 = vmatpush.msra.mxu0 0.0
        %3108 = vmatpush.msra.mxu0 %v3079
        %3109 = vmatpush.msra.mxu0 %v3077
        %3110 = vmatpush.msra.mxu0 %v3075
        %3111 = vmatpush.msra.mxu0 %v3073
        %3112 = vmatmul.f32.gmra.mxu0 %v3085
        %v3113 = vpop.f32.mrf.mxu0
        %v3114 = vadd.f32 0.0, %v3113
        %3115 = vmatmul.f32.gmra.mxu0 %v3088
        %v3116 = vpop.f32.mrf.mxu0
        %v3117 = vadd.f32 0.0, %v3116
        %3118 = vmatmul.f32.gmra.mxu0 %v3091
        %v3119 = vpop.f32.mrf.mxu0
        %v3120 = vadd.f32 0.0, %v3119
        %3121 = vmatmul.f32.gmra.mxu0 %v3094
        %v3122 = vpop.f32.mrf.mxu0
        %v3123 = vadd.f32 0.0, %v3122
        %3124 = vdwg.mxu0
        %v3125 = vadd.f32 %v2955, %v3114
        %v3126 = vadd.f32 %v2956, %v3117
        %v3127 = vadd.f32 %v2957, %v3120
        %v3128 = vadd.f32 %v2958, %v3123
        %v3129 = vsel %vm510, %v3125, 0.0
        %3130 = vadd.xlane.f32.xlu0 %v3129
        %v3131 = vpop.xlane.xlu0 %3130
        %v3132 = vsel %vm510, %v3126, 0.0
        %3133 = vadd.xlane.f32.xlu0 %v3132
        %v3134 = vpop.xlane.xlu0 %3133
        %v3135 = vsel %vm510, %v3127, 0.0
        %3136 = vadd.xlane.f32.xlu0 %v3135
        %v3137 = vpop.xlane.xlu0 %3136
        %v3138 = vsel %vm510, %v3128, 0.0
        %3139 = vadd.xlane.f32.xlu0 %v3138
        %v3140 = vpop.xlane.xlu0 %3139
        %v3141 = vmul.f32 %v3131, %v1090
        %v3142 = vmul.f32 %v3134, %v1090
        %v3143 = vmul.f32 %v3137, %v1090
        %v3144 = vmul.f32 %v3140, %v1090
        %v3145 = vsub.f32 %v3125, %v3141
        %v3146 = vsub.f32 %v3126, %v3142
        %v3147 = vsub.f32 %v3127, %v3143
        %v3148 = vsub.f32 %v3128, %v3144
        %v3149 = vmul.f32 %v3145, %v3145
        %v3150 = vmul.f32 %v3146, %v3146
        %v3151 = vmul.f32 %v3147, %v3147
        %v3152 = vmul.f32 %v3148, %v3148
        %v3153 = vsel %vm510, %v3149, 0.0
        %3154 = vadd.xlane.f32.xlu0 %v3153
        %v3155 = vpop.xlane.xlu0 %3154
        %v3156 = vsel %vm510, %v3150, 0.0
        %3157 = vadd.xlane.f32.xlu0 %v3156
        %v3158 = vpop.xlane.xlu0 %3157
        %v3159 = vsel %vm510, %v3151, 0.0
        %3160 = vadd.xlane.f32.xlu0 %v3159
        %v3161 = vpop.xlane.xlu0 %3160
        %v3162 = vsel %vm510, %v3152, 0.0
        %3163 = vadd.xlane.f32.xlu0 %v3162
        %v3164 = vpop.xlane.xlu0 %3163
        %v3165 = vmul.f32 %v3155, %v1090
        %v3166 = vmul.f32 %v3158, %v1090
        %v3167 = vmul.f32 %v3161, %v1090
        %v3168 = vmul.f32 %v3164, %v1090
        %v3169 = vadd.f32 %v3165, 1e-06
        %v3170 = vadd.f32 %v3166, 1e-06
        %v3171 = vadd.f32 %v3167, 1e-06
        %v3172 = vadd.f32 %v3168, 1e-06
        %v3173 = vrsqrt.pop %v3169
        %v3174 = vmul.f32 %v3173, %v3169
        %v3175 = vmul.f32 %v3174, %v3173
        %v3176 = vmul.f32 0.5, %v3175
        %v3177 = vsub.f32 1.5, %v3176
        %v3178 = vmul.f32 %v3173, %v3177
        %vm3179 = vweird.f32 %v3169
        %vm3180 = vweird.f32 %v3173
        %vm3181 = vmor %vm3179, %vm3180
        %v3182 = vsel %vm3181, %v3173, %v3178
        %v3183 = vrsqrt.pop %v3170
        %v3184 = vmul.f32 %v3183, %v3170
        %v3185 = vmul.f32 %v3184, %v3183
        %v3186 = vmul.f32 0.5, %v3185
        %v3187 = vsub.f32 1.5, %v3186
        %v3188 = vmul.f32 %v3183, %v3187
        %vm3189 = vweird.f32 %v3170
        %vm3190 = vweird.f32 %v3183
        %vm3191 = vmor %vm3189, %vm3190
        %v3192 = vsel %vm3191, %v3183, %v3188
        %v3193 = vrsqrt.pop %v3171
        %v3194 = vmul.f32 %v3193, %v3171
        %v3195 = vmul.f32 %v3194, %v3193
        %v3196 = vmul.f32 0.5, %v3195
        %v3197 = vsub.f32 1.5, %v3196
        %v3198 = vmul.f32 %v3193, %v3197
        %vm3199 = vweird.f32 %v3171
        %vm3200 = vweird.f32 %v3193
        %vm3201 = vmor %vm3199, %vm3200
        %v3202 = vsel %vm3201, %v3193, %v3198
        %v3203 = vrsqrt.pop %v3172
        %v3204 = vmul.f32 %v3203, %v3172
        %v3205 = vmul.f32 %v3204, %v3203
        %v3206 = vmul.f32 0.5, %v3205
        %v3207 = vsub.f32 1.5, %v3206
        %v3208 = vmul.f32 %v3203, %v3207
        %vm3209 = vweird.f32 %v3172
        %vm3210 = vweird.f32 %v3203
        %vm3211 = vmor %vm3209, %vm3210
        %v3212 = vsel %vm3211, %v3203, %v3208
        %v3213 = vmul.f32 %v3145, %v3182
        %v3214 = vmul.f32 %v3146, %v3192
        %v3215 = vmul.f32 %v3147, %v3202
        %v3216 = vmul.f32 %v3148, %v3212
        %v3217 = vperm.slane %v2327, 0
        %v3218 = vmul.f32 %v3213, %v3217
        %v3219 = vmul.f32 %v3214, %v3217
        %v3220 = vmul.f32 %v3215, %v3217
        %v3221 = vmul.f32 %v3216, %v3217
        %v3222 = vperm.slane %v2328, 0
        %v3223 = vadd.f32 %v3218, %v3222
        %v3224 = vadd.f32 %v3219, %v3222
        %v3225 = vadd.f32 %v3220, %v3222
        %v3226 = vadd.f32 %v3221, %v3222
        %v3227 = vperm.slane %v2329, 0
        %v3229 = vsel %vm510, %v3223, 0
        %v3232 = vsel %vm510, %v3224, 0
        %v3235 = vsel %vm510, %v3225, 0
        %v3238 = vsel %vm510, %v3226, 0
        %3240 = vmatpush.msra.mxu0 0.0
        %3241 = vmatpush.msra.mxu0 0.0
        %3242 = vmatpush.msra.mxu0 0.0
        %3243 = vmatpush.msra.mxu0 0.0
        %3244 = vmatpush.msra.mxu0 0.0
        %3245 = vmatpush.msra.mxu0 0.0
        %3246 = vmatpush.msra.mxu0 0.0
        %3247 = vmatpush.msra.mxu0 0.0
        %3248 = vmatpush.msra.mxu0 0.0
        %3249 = vmatpush.msra.mxu0 0.0
        %3250 = vmatpush.msra.mxu0 0.0
        %3251 = vmatpush.msra.mxu0 0.0
        %3252 = vmatpush.msra.mxu0 %v2325
        %3253 = vmatpush.msra.mxu0 %v2323
        %3254 = vmatpush.msra.mxu0 %v2321
        %3255 = vmatpush.msra.mxu0 %v2319
        %3256 = vmatmul.f32.gmra.mxu0 %v3229
        %v3257 = vpop.f32.mrf.mxu0
        %v3258 = vadd.f32 %v3227, %v3257
        %3259 = vmatmul.f32.gmra.mxu0 %v3232
        %v3260 = vpop.f32.mrf.mxu0
        %v3261 = vadd.f32 %v3227, %v3260
        %3262 = vmatmul.f32.gmra.mxu0 %v3235
        %v3263 = vpop.f32.mrf.mxu0
        %v3264 = vadd.f32 %v3227, %v3263
        %3265 = vmatmul.f32.gmra.mxu0 %v3238
        %v3266 = vpop.f32.mrf.mxu0
        %v3267 = vadd.f32 %v3227, %v3266
        %3268 = vdwg.mxu0
        %v3269 = vmul.f32 %v3258, 0.5
        %v3270 = vmul.f32 %v3261, 0.5
        %v3271 = vmul.f32 %v3264, 0.5
        %v3272 = vmul.f32 %v3267, 0.5
        %v3273 = vmul.f32 %v3258, 0.044715
        %v3274 = vmul.f32 %v3261, 0.044715
        %v3275 = vmul.f32 %v3264, 0.044715
        %v3276 = vmul.f32 %v3267, 0.044715
        %v3277 = vmul.f32 %v3273, %v3258
        %v3278 = vmul.f32 %v3274, %v3261
        %v3279 = vmul.f32 %v3275, %v3264
        %v3280 = vmul.f32 %v3276, %v3267
        %v3281 = vmul.f32 %v3277, %v3258
        %v3282 = vmul.f32 %v3278, %v3261
        %v3283 = vmul.f32 %v3279, %v3264
        %v3284 = vmul.f32 %v3280, %v3267
        %v3285 = vadd.f32 %v3258, %v3281
        %v3286 = vadd.f32 %v3261, %v3282
        %v3287 = vadd.f32 %v3264, %v3283
        %v3288 = vadd.f32 %v3267, %v3284
        %v3289 = vmul.f32 %v3285, 0.7978846
        %v3290 = vmul.f32 %v3286, 0.7978846
        %v3291 = vmul.f32 %v3287, 0.7978846
        %v3292 = vmul.f32 %v3288, 0.7978846
        %v3293 = vtanh.pop %v3289
        %v3294 = vtanh.pop %v3290
        %v3295 = vtanh.pop %v3291
        %v3296 = vtanh.pop %v3292
        %v3297 = vadd.f32 %v3293, 1.0
        %v3298 = vadd.f32 %v3294, 1.0
        %v3299 = vadd.f32 %v3295, 1.0
        %v3300 = vadd.f32 %v3296, 1.0
        %v3301 = vmul.f32 %v3269, %v3297
        %v3302 = vmul.f32 %v3270, %v3298
        %v3303 = vmul.f32 %v3271, %v3299
        %v3304 = vmul.f32 %v3272, %v3300
        %s3305 = scalar_lea.vmem %s7, 64
        %v3306 = vld [vmem:[%s3305] sm:$0xff]
        %v3307 = vld [vmem:[%s3305 + $0x8] sm:$0xff]
        %v3308 = vld [vmem:[%s3305 + $0x10] sm:$0xff]
        %v3309 = vld [vmem:[%s3305 + $0x18] sm:$0xff]
        %v3310 = vld [vmem:[%s3305 + $0x20] sm:$0xff]
        %v3311 = vld [vmem:[%s3305 + $0x28] sm:$0xff]
        %v3312 = vld [vmem:[%s3305 + $0x30] sm:$0xff]
        %v3313 = vld [vmem:[%s3305 + $0x38] sm:$0xff]
        %v3314 = vperm.slane %v2330, 0
        %v3316 = vsel %vm2173, %v3301, 0
        %v3319 = vsel %vm2173, %v3302, 0
        %v3322 = vsel %vm2173, %v3303, 0
        %v3325 = vsel %vm2173, %v3304, 0
        %3327 = vmatpush.msra.mxu0 0.0
        %3328 = vmatpush.msra.mxu0 0.0
        %3329 = vmatpush.msra.mxu0 0.0
        %3330 = vmatpush.msra.mxu0 0.0
        %3331 = vmatpush.msra.mxu0 0.0
        %3332 = vmatpush.msra.mxu0 0.0
        %3333 = vmatpush.msra.mxu0 0.0
        %3334 = vmatpush.msra.mxu0 0.0
        %3335 = vmatpush.msra.mxu0 %v3313
        %3336 = vmatpush.msra.mxu0 %v3312
        %3337 = vmatpush.msra.mxu0 %v3311
        %3338 = vmatpush.msra.mxu0 %v3310
        %3339 = vmatpush.msra.mxu0 %v3309
        %3340 = vmatpush.msra.mxu0 %v3308
        %3341 = vmatpush.msra.mxu0 %v3307
        %3342 = vmatpush.msra.mxu0 %v3306
        %3343 = vmatmul.f32.gmra.mxu0 %v3316
        %v3344 = vpop.f32.mrf.mxu0
        %v3345 = vadd.f32 %v3314, %v3344
        %3346 = vmatmul.f32.gmra.mxu0 %v3319
        %v3347 = vpop.f32.mrf.mxu0
        %v3348 = vadd.f32 %v3314, %v3347
        %3349 = vmatmul.f32.gmra.mxu0 %v3322
        %v3350 = vpop.f32.mrf.mxu0
        %v3351 = vadd.f32 %v3314, %v3350
        %3352 = vmatmul.f32.gmra.mxu0 %v3325
        %v3353 = vpop.f32.mrf.mxu0
        %v3354 = vadd.f32 %v3314, %v3353
        %3355 = vdwg.mxu0
        %v3356 = vadd.f32 %v3345, %v3223
        %v3357 = vadd.f32 %v3348, %v3224
        %v3358 = vadd.f32 %v3351, %v3225
        %v3359 = vadd.f32 %v3354, %v3226
        %v3360 = vsel %vm510, %v3356, 0.0
        %3361 = vadd.xlane.f32.xlu0 %v3360
        %v3362 = vpop.xlane.xlu0 %3361
        %v3363 = vsel %vm510, %v3357, 0.0
        %3364 = vadd.xlane.f32.xlu0 %v3363
        %v3365 = vpop.xlane.xlu0 %3364
        %v3366 = vsel %vm510, %v3358, 0.0
        %3367 = vadd.xlane.f32.xlu0 %v3366
        %v3368 = vpop.xlane.xlu0 %3367
        %v3369 = vsel %vm510, %v3359, 0.0
        %3370 = vadd.xlane.f32.xlu0 %v3369
        %v3371 = vpop.xlane.xlu0 %3370
        %v3372 = vmul.f32 %v3362, %v1090
        %v3373 = vmul.f32 %v3365, %v1090
        %v3374 = vmul.f32 %v3368, %v1090
        %v3375 = vmul.f32 %v3371, %v1090
        %v3376 = vsub.f32 %v3356, %v3372
        %v3377 = vsub.f32 %v3357, %v3373
        %v3378 = vsub.f32 %v3358, %v3374
        %v3379 = vsub.f32 %v3359, %v3375
        %v3380 = vmul.f32 %v3376, %v3376
        %v3381 = vmul.f32 %v3377, %v3377
        %v3382 = vmul.f32 %v3378, %v3378
        %v3383 = vmul.f32 %v3379, %v3379
        %v3384 = vsel %vm510, %v3380, 0.0
        %3385 = vadd.xlane.f32.xlu0 %v3384
        %v3386 = vpop.xlane.xlu0 %3385
        %v3387 = vsel %vm510, %v3381, 0.0
        %3388 = vadd.xlane.f32.xlu0 %v3387
        %v3389 = vpop.xlane.xlu0 %3388
        %v3390 = vsel %vm510, %v3382, 0.0
        %3391 = vadd.xlane.f32.xlu0 %v3390
        %v3392 = vpop.xlane.xlu0 %3391
        %v3393 = vsel %vm510, %v3383, 0.0
        %3394 = vadd.xlane.f32.xlu0 %v3393
        %v3395 = vpop.xlane.xlu0 %3394
        %v3396 = vmul.f32 %v3386, %v1090
        %v3397 = vmul.f32 %v3389, %v1090
        %v3398 = vmul.f32 %v3392, %v1090
        %v3399 = vmul.f32 %v3395, %v1090
        %v3400 = vadd.f32 %v3396, 1e-06
        %v3401 = vadd.f32 %v3397, 1e-06
        %v3402 = vadd.f32 %v3398, 1e-06
        %v3403 = vadd.f32 %v3399, 1e-06
        %v3404 = vrsqrt.pop %v3400
        %v3405 = vmul.f32 %v3404, %v3400
        %v3406 = vmul.f32 %v3405, %v3404
        %v3407 = vmul.f32 0.5, %v3406
        %v3408 = vsub.f32 1.5, %v3407
        %v3409 = vmul.f32 %v3404, %v3408
        %vm3410 = vweird.f32 %v3400
        %vm3411 = vweird.f32 %v3404
        %vm3412 = vmor %vm3410, %vm3411
        %v3413 = vsel %vm3412, %v3404, %v3409
        %v3414 = vrsqrt.pop %v3401
        %v3415 = vmul.f32 %v3414, %v3401
        %v3416 = vmul.f32 %v3415, %v3414
        %v3417 = vmul.f32 0.5, %v3416
        %v3418 = vsub.f32 1.5, %v3417
        %v3419 = vmul.f32 %v3414, %v3418
        %vm3420 = vweird.f32 %v3401
        %vm3421 = vweird.f32 %v3414
        %vm3422 = vmor %vm3420, %vm3421
        %v3423 = vsel %vm3422, %v3414, %v3419
        %v3424 = vrsqrt.pop %v3402
        %v3425 = vmul.f32 %v3424, %v3402
        %v3426 = vmul.f32 %v3425, %v3424
        %v3427 = vmul.f32 0.5, %v3426
        %v3428 = vsub.f32 1.5, %v3427
        %v3429 = vmul.f32 %v3424, %v3428
        %vm3430 = vweird.f32 %v3402
        %vm3431 = vweird.f32 %v3424
        %vm3432 = vmor %vm3430, %vm3431
        %v3433 = vsel %vm3432, %v3424, %v3429
        %v3434 = vrsqrt.pop %v3403
        %v3435 = vmul.f32 %v3434, %v3403
        %v3436 = vmul.f32 %v3435, %v3434
        %v3437 = vmul.f32 0.5, %v3436
        %v3438 = vsub.f32 1.5, %v3437
        %v3439 = vmul.f32 %v3434, %v3438
        %vm3440 = vweird.f32 %v3403
        %vm3441 = vweird.f32 %v3434
        %vm3442 = vmor %vm3440, %vm3441
        %v3443 = vsel %vm3442, %v3434, %v3439
        %v3444 = vmul.f32 %v3376, %v3413
        %v3445 = vmul.f32 %v3377, %v3423
        %v3446 = vmul.f32 %v3378, %v3433
        %v3447 = vmul.f32 %v3379, %v3443
        %v3448 = vperm.slane %v2331, 0
        %v3449 = vmul.f32 %v3444, %v3448
        %v3450 = vmul.f32 %v3445, %v3448
        %v3451 = vmul.f32 %v3446, %v3448
        %v3452 = vmul.f32 %v3447, %v3448
        %v3453 = vperm.slane %v2332, 0
        %v3454 = vadd.f32 %v3449, %v3453
        %v3455 = vadd.f32 %v3450, %v3453
        %v3456 = vadd.f32 %v3451, %v3453
        %v3457 = vadd.f32 %v3452, %v3453
        %v3458 = vld [vmem:[%s2 + $0x30] sm:$0xff]
        %v3459 = vld [vmem:[%s2 + $0x38] sm:$0xff]
        %v3461 = vsel %vm510, %v3458, 0
        %v3464 = vsel %vm510, %v3459, 0
        %3466 = vmatpush.msra.mxu0 0.0
        %3467 = vmatpush.msra.mxu0 0.0
        %3468 = vmatpush.msra.mxu0 0.0
        %3469 = vmatpush.msra.mxu0 0.0
        %3470 = vmatpush.msra.mxu0 0.0
        %3471 = vmatpush.msra.mxu0 0.0
        %3472 = vmatpush.msra.mxu0 0.0
        %3473 = vmatpush.msra.mxu0 0.0
        %3474 = vmatpush.msra.mxu0 0.0
        %3475 = vmatpush.msra.mxu0 0.0
        %3476 = vmatpush.msra.mxu0 0.0
        %3477 = vmatpush.msra.mxu0 0.0
        %3478 = vmatpush.msra.mxu0 %v3457
        %3479 = vmatpush.msra.mxu0 %v3456
        %3480 = vmatpush.msra.mxu0 %v3455
        %3481 = vmatpush.msra.mxu0 %v3454
        %3482 = vmatmul.f32.gmra.mxu0 %v3461
        %v3483 = vpop.f32.mrf.mxu0
        %v3484 = vadd.f32 0.0, %v3483
        %3485 = vmatmul.f32.gmra.mxu0 %v3464
        %v3486 = vpop.f32.mrf.mxu0
        %v3487 = vadd.f32 0.0, %v3486
        %3488 = vdwg.mxu0
        %v3489 = vld [vmem:[#allocation2] sm:$0xff]
        %v3490 = vld [vmem:[#allocation2 + $0x8] sm:$0xff]
        %v3491 = vld [vmem:[#allocation2 + $0x10] sm:$0xff]
        %v3492 = vld [vmem:[#allocation2 + $0x18] sm:$0xff]
        %v3493 = vld [vmem:[%s2 + $0x40] sm:$0xff]
        %v3494 = vld [vmem:[%s2 + $0x48] sm:$0xff]
        %v3496 = vsel %vm510, %v3493, 0
        %v3499 = vsel %vm510, %v3494, 0
        %3501 = vmatpush.msra.mxu0 0.0
        %3502 = vmatpush.msra.mxu0 0.0
        %3503 = vmatpush.msra.mxu0 0.0
        %3504 = vmatpush.msra.mxu0 0.0
        %3505 = vmatpush.msra.mxu0 0.0
        %3506 = vmatpush.msra.mxu0 0.0
        %3507 = vmatpush.msra.mxu0 0.0
        %3508 = vmatpush.msra.mxu0 0.0
        %3509 = vmatpush.msra.mxu0 0.0
        %3510 = vmatpush.msra.mxu0 0.0
        %3511 = vmatpush.msra.mxu0 0.0
        %3512 = vmatpush.msra.mxu0 0.0
        %3513 = vmatpush.msra.mxu0 %v3457
        %3514 = vmatpush.msra.mxu0 %v3456
        %3515 = vmatpush.msra.mxu0 %v3455
        %3516 = vmatpush.msra.mxu0 %v3454
        %3517 = vmatmul.f32.gmra.mxu0 %v3496
        %v3518 = vpop.f32.mrf.mxu0
        %v3519 = vadd.f32 0.0, %v3518
        %3520 = vmatmul.f32.gmra.mxu0 %v3499
        %v3521 = vpop.f32.mrf.mxu0
        %v3522 = vadd.f32 0.0, %v3521
        %3523 = vdwg.mxu0
        %s3524 = scalar_lea.vmem [#allocation2], 32
        %v3525 = vld [vmem:[%s3524] sm:$0xff]
        %v3526 = vld [vmem:[%s3524 + $0x8] sm:$0xff]
        %v3527 = vld [vmem:[%s3524 + $0x10] sm:$0xff]
        %v3528 = vld [vmem:[%s3524 + $0x18] sm:$0xff]
        %v3530 = vsel %vm510, %v3519, 0
        %v3533 = vsel %vm510, %v3522, 0
        %3535 = vmatpush.msra.mxu0 0.0
        %3536 = vmatpush.msra.mxu0 0.0
        %3537 = vmatpush.msra.mxu0 0.0
        %3538 = vmatpush.msra.mxu0 0.0
        %3539 = vmatpush.msra.mxu0 0.0
        %3540 = vmatpush.msra.mxu0 0.0
        %3541 = vmatpush.msra.mxu0 0.0
        %3542 = vmatpush.msra.mxu0 0.0
        %3543 = vmatpush.msra.mxu0 0.0
        %3544 = vmatpush.msra.mxu0 0.0
        %3545 = vmatpush.msra.mxu0 0.0
        %3546 = vmatpush.msra.mxu0 0.0
        %3547 = vmatpush.msra.mxu0 %v3528
        %3548 = vmatpush.msra.mxu0 %v3527
        %3549 = vmatpush.msra.mxu0 %v3526
        %3550 = vmatpush.msra.mxu0 %v3525
        %3551 = vmatmul.f32.gmra.mxu0 %v3530
        %v3552 = vpop.f32.mrf.mxu0
        %v3553 = vadd.f32 0.0, %v3552
        %3554 = vmatmul.f32.gmra.mxu0 %v3533
        %v3555 = vpop.f32.mrf.mxu0
        %v3556 = vadd.f32 0.0, %v3555
        %3557 = vdwg.mxu0
        %v3559 = vsel %vm510, %v3484, 0
        %v3562 = vsel %vm510, %v3487, 0
        %3564 = vmatpush.msra.mxu0 0.0
        %3565 = vmatpush.msra.mxu0 0.0
        %3566 = vmatpush.msra.mxu0 0.0
        %3567 = vmatpush.msra.mxu0 0.0
        %3568 = vmatpush.msra.mxu0 0.0
        %3569 = vmatpush.msra.mxu0 0.0
        %3570 = vmatpush.msra.mxu0 0.0
        %3571 = vmatpush.msra.mxu0 0.0
        %3572 = vmatpush.msra.mxu0 0.0
        %3573 = vmatpush.msra.mxu0 0.0
        %3574 = vmatpush.msra.mxu0 0.0
        %3575 = vmatpush.msra.mxu0 0.0
        %3576 = vmatpush.msra.mxu0 %v3492
        %3577 = vmatpush.msra.mxu0 %v3491
        %3578 = vmatpush.msra.mxu0 %v3490
        %3579 = vmatpush.msra.mxu0 %v3489
        %3580 = vmatmul.f32.gmra.mxu0 %v3559
        %v3581 = vpop.f32.mrf.mxu0
        %v3582 = vadd.f32 %v3553, %v3581
        %3583 = vmatmul.f32.gmra.mxu0 %v3562
        %v3584 = vpop.f32.mrf.mxu0
        %v3585 = vadd.f32 %v3556, %v3584
        %3586 = vdwg.mxu0
        %v3587 = vld [vmem:[%s2 + $0x50] sm:$0xff]
        %v3588 = vld [vmem:[%s2 + $0x58] sm:$0xff]
        %v3590 = vsel %vm510, %v3587, 0
        %v3593 = vsel %vm510, %v3588, 0
        %3595 = vmatpush.msra.mxu0 0.0
        %3596 = vmatpush.msra.mxu0 0.0
        %3597 = vmatpush.msra.mxu0 0.0
        %3598 = vmatpush.msra.mxu0 0.0
        %3599 = vmatpush.msra.mxu0 0.0
        %3600 = vmatpush.msra.mxu0 0.0
        %3601 = vmatpush.msra.mxu0 0.0
        %3602 = vmatpush.msra.mxu0 0.0
        %3603 = vmatpush.msra.mxu0 0.0
        %3604 = vmatpush.msra.mxu0 0.0
        %3605 = vmatpush.msra.mxu0 0.0
        %3606 = vmatpush.msra.mxu0 0.0
        %3607 = vmatpush.msra.mxu0 %v3457
        %3608 = vmatpush.msra.mxu0 %v3456
        %3609 = vmatpush.msra.mxu0 %v3455
        %3610 = vmatpush.msra.mxu0 %v3454
        %3611 = vmatmul.f32.gmra.mxu0 %v3590
        %v3612 = vpop.f32.mrf.mxu0
        %v3613 = vadd.f32 0.0, %v3612
        %3614 = vmatmul.f32.gmra.mxu0 %v3593
        %v3615 = vpop.f32.mrf.mxu0
        %v3616 = vadd.f32 0.0, %v3615
        %3617 = vdwg.mxu0
        %s3618 = scalar_lea.vmem [#allocation2], 64
        %v3619 = vld [vmem:[%s3618] sm:$0xff]
        %v3620 = vld [vmem:[%s3618 + $0x8] sm:$0xff]
        %v3621 = vld [vmem:[%s3618 + $0x10] sm:$0xff]
        %v3622 = vld [vmem:[%s3618 + $0x18] sm:$0xff]
        %v3624 = vsel %vm510, %v3613, 0
        %v3627 = vsel %vm510, %v3616, 0
        %3629 = vmatpush.msra.mxu0 0.0
        %3630 = vmatpush.msra.mxu0 0.0
        %3631 = vmatpush.msra.mxu0 0.0
        %3632 = vmatpush.msra.mxu0 0.0
        %3633 = vmatpush.msra.mxu0 0.0
        %3634 = vmatpush.msra.mxu0 0.0
        %3635 = vmatpush.msra.mxu0 0.0
        %3636 = vmatpush.msra.mxu0 0.0
        %3637 = vmatpush.msra.mxu0 0.0
        %3638 = vmatpush.msra.mxu0 0.0
        %3639 = vmatpush.msra.mxu0 0.0
        %3640 = vmatpush.msra.mxu0 0.0
        %3641 = vmatpush.msra.mxu0 %v3622
        %3642 = vmatpush.msra.mxu0 %v3621
        %3643 = vmatpush.msra.mxu0 %v3620
        %3644 = vmatpush.msra.mxu0 %v3619
        %3645 = vmatmul.f32.gmra.mxu0 %v3624
        %v3646 = vpop.f32.mrf.mxu0
        %v3647 = vadd.f32 0.0, %v3646
        %3648 = vmatmul.f32.gmra.mxu0 %v3627
        %v3649 = vpop.f32.mrf.mxu0
        %v3650 = vadd.f32 0.0, %v3649
        %3651 = vdwg.mxu0
        %v3652 = vadd.f32 %v3582, %v3647
        %v3653 = vadd.f32 %v3585, %v3650
        %v3654 = vld [vmem:[%s2 + $0x60] sm:$0xff]
        %v3655 = vld [vmem:[%s2 + $0x68] sm:$0xff]
        %v3657 = vsel %vm510, %v3654, 0
        %v3660 = vsel %vm510, %v3655, 0
        %3662 = vmatpush.msra.mxu0 0.0
        %3663 = vmatpush.msra.mxu0 0.0
        %3664 = vmatpush.msra.mxu0 0.0
        %3665 = vmatpush.msra.mxu0 0.0
        %3666 = vmatpush.msra.mxu0 0.0
        %3667 = vmatpush.msra.mxu0 0.0
        %3668 = vmatpush.msra.mxu0 0.0
        %3669 = vmatpush.msra.mxu0 0.0
        %3670 = vmatpush.msra.mxu0 0.0
        %3671 = vmatpush.msra.mxu0 0.0
        %3672 = vmatpush.msra.mxu0 0.0
        %3673 = vmatpush.msra.mxu0 0.0
        %3674 = vmatpush.msra.mxu0 %v3457
        %3675 = vmatpush.msra.mxu0 %v3456
        %3676 = vmatpush.msra.mxu0 %v3455
        %3677 = vmatpush.msra.mxu0 %v3454
        %3678 = vmatmul.f32.gmra.mxu0 %v3657
        %v3679 = vpop.f32.mrf.mxu0
        %v3680 = vadd.f32 0.0, %v3679
        %3681 = vmatmul.f32.gmra.mxu0 %v3660
        %v3682 = vpop.f32.mrf.mxu0
        %v3683 = vadd.f32 0.0, %v3682
        %3684 = vdwg.mxu0
        %s3685 = scalar_lea.vmem [#allocation2], 96
        %v3686 = vld [vmem:[%s3685] sm:$0xff]
        %v3687 = vld [vmem:[%s3685 + $0x8] sm:$0xff]
        %v3688 = vld [vmem:[%s3685 + $0x10] sm:$0xff]
        %v3689 = vld [vmem:[%s3685 + $0x18] sm:$0xff]
        %v3691 = vsel %vm510, %v3680, 0
        %v3694 = vsel %vm510, %v3683, 0
        %3696 = vmatpush.msra.mxu0 0.0
        %3697 = vmatpush.msra.mxu0 0.0
        %3698 = vmatpush.msra.mxu0 0.0
        %3699 = vmatpush.msra.mxu0 0.0
        %3700 = vmatpush.msra.mxu0 0.0
        %3701 = vmatpush.msra.mxu0 0.0
        %3702 = vmatpush.msra.mxu0 0.0
        %3703 = vmatpush.msra.mxu0 0.0
        %3704 = vmatpush.msra.mxu0 0.0
        %3705 = vmatpush.msra.mxu0 0.0
        %3706 = vmatpush.msra.mxu0 0.0
        %3707 = vmatpush.msra.mxu0 0.0
        %3708 = vmatpush.msra.mxu0 %v3689
        %3709 = vmatpush.msra.mxu0 %v3688
        %3710 = vmatpush.msra.mxu0 %v3687
        %3711 = vmatpush.msra.mxu0 %v3686
        %3712 = vmatmul.f32.gmra.mxu0 %v3691
        %v3713 = vpop.f32.mrf.mxu0
        %v3714 = vadd.f32 0.0, %v3713
        %3715 = vmatmul.f32.gmra.mxu0 %v3694
        %v3716 = vpop.f32.mrf.mxu0
        %v3717 = vadd.f32 0.0, %v3716
        %3718 = vdwg.mxu0
        %v3719 = vadd.f32 %v3652, %v3714
        %v3720 = vadd.f32 %v3653, %v3717
        %3721 = vst [vmem:[%s374] sm:$0xff] %v3719
        %3722 = vst [vmem:[%s374 + $0x8] sm:$0xff] %v3720
        %s3723 = sand.u32 %s232, 1
        %s3724 = scalar_lea.sflag [#allocation4], %s3723
        %s3725 = sand.u32 %s232, 1
        %s3726 = smul.addr %s3725, 16
        %s3727 = scalar_lea.vmem [#allocation7], %s3726
        // Predicated region
        $region65: #{_lambda_.1} parent=55 // pred_check
          %p3728 = pneg %p242
        $region66: #{_lambda_.1} parent=55 // pred_check_branch
          %3730 = sbr.rel (%p3728) target = $region68
        $region67: #{_lambda_.1} parent=55 // pred_region
          %3732 = vsyncadd %s3724, 0
          %s3733 = smul.addr %s25, 2
          %s3734 = smul.addr %s3733, 8
          %s3735 = scalar_lea.hbm %s9, %s3734
          %s3736 = sshll.u32 %s3727, 4
          %s3737 = int_to_ptr.vmem [resolvable:$true] %s3736
          %s3738 = sshll.u32 %s3735, 4
          %s3739 = int_to_ptr.hbm [resolvable:$true] %s3738
          %3744 = dma.vmem_to_hbm [thread:$0]  %s3737, 256, %s3739, %s3724, 128, 128, 8
        $region68: #{_lambda_.1} parent=55 // pred_fallthru
          _
      $region56: #{_lambda_.1} parent=5 // pred_fallthru
        _
      %p3745 = scmp.le.s32.totalorder 2, %s20
      // Predicated region
      $region69: #{_lambda_.1} parent=5 // pred_check
        %p3746 = pneg %p3745
      $region70: #{_lambda_.1} parent=5 // pred_check_branch
        %3748 = sbr.rel (%p3746) target = $region72
      $region71: #{_lambda_.1} parent=5 // pred_region
        %s3749 = ssub.s32 %s20, 2
        // Predicated region
        $region73: #{_lambda_.1} parent=71 // pred_check
          %p3750 = pneg %p248
        $region74: #{_lambda_.1} parent=71 // pred_check_branch
          %3752 = sbr.rel (%p3750) target = $region76
        $region75: #{_lambda_.1} parent=71 // pred_region
          %s3753 = sand.u32 %s233, 1
          %s3754 = scalar_lea.sflag [#allocation4], %s3753
          %s3755 = sand.u32 %s233, 1
          %s3756 = smul.addr %s3755, 16
          %s3757 = scalar_lea.vmem [#allocation7], %s3756
          %3759 = dma.done %s3754, 256
        $region76: #{_lambda_.1} parent=71 // pred_fallthru
          _
      $region72: #{_lambda_.1} parent=5 // pred_fallthru
        _
    $region6: #{_lambda_.1} parent=1 // loop_footer
      %s24 = sadd.s32 1, %s20
    $region7: #{_lambda_.1} parent=1 // loop_footer_branch
      %19 = sbr.rel target = $region3
    $region8: #{_lambda_.1} parent=1 // loop_exit
      _
    %3760 = vsyncpa [#allocation3], 1
    %s3761 = scalar_lea.sflag [#allocation3], 1
    %3762 = vsyncpa %s3761, 1
    %3763 = vsyncpa [#allocation6], 1
    %3764 = vsyncpa [#allocation4], 1
    %s3765 = scalar_lea.sflag [#allocation4], 1
    %3766 = vsyncpa %s3765, 1

</llo_original>
